<compile_context>
chip_gen: v7x
topology: tpu7x:2x2x1
jax: 0.10.0
libtpu: 0.0.40
codegen_flags: <defaults>
</compile_context>

<pallas_src>
import functools

import jax
import jax.numpy as jnp
from jax.experimental import pallas as pl
from jax.experimental.pallas import tpu as pltpu


def _gelu(x):
    # tanh-approximate GELU (~3e-4 abs deviation from torch's exact erf GELU).
    c = 0.7978845608028654  # sqrt(2/pi)
    u = c * (x + 0.044715 * x * x * x)
    return 0.5 * x * (1.0 + jnp.tanh(u))


def _mixer_kernel(x_ref, fw1_ref, fw2_ref, bias_ref, pw1_ref, pw2_ref, o_ref,
                  *, ksize, width):
    Bt, C, N = x_ref.shape          # (batch tile, channels, H*W)
    K = ksize
    p = K // 2
    center = p * K + p

    biases = bias_ref[...]          # (C, 4): [dw1_b, pw1_b, dw2_b, pw2_b]
    dw1_b = biases[:, 0:1]
    pw1_b = biases[:, 1:2]
    dw2_b = biases[:, 2:3]
    pw2_b = biases[:, 3:4]
    pw1_w = pw1_ref[...]            # (C, C) bf16 MXU operands, loaded once
    pw2_w = pw2_ref[...]

    def dwconv(val, fw_ref, bias):
        # Depthwise KxK "same" conv, fully in registers:
        #   tap (ky,kx) -> static lane roll (XLU) of the flattened spatial axis
        #   times a pre-fused (border-mask x per-channel-weight) operand:
        #   1 vmul + 1 vadd per tap per element.
        acc = val * fw_ref[center]                  # center tap: no roll
        for ky in range(K):
            for kx in range(K):
                t = ky * K + kx
                if t == center:
                    continue
                s = (ky - p) * width + (kx - p)     # flattened source offset
                acc = acc + pltpu.roll(val, (-s) % N, 1) * fw_ref[t]
        return acc + bias

    def pwconv(val, w, bias):
        # 1x1 conv == (C, C) @ (C, H*W) on the MXU, bf16 inputs / f32 accum.
        y = jnp.dot(w, val.astype(jnp.bfloat16),
                    preferred_element_type=jnp.float32)
        return y + bias

    # Unrolled loop over the images of this batch tile: amortizes the per-step
    # pipeline overhead across Bt images while keeping every op 2D (C, N).
    for bi in range(Bt):
        x = x_ref[bi].astype(jnp.float32)           # (C, H*W)
        s = _gelu(dwconv(x, fw1_ref, dw1_b)) + x
        s = x + _gelu(pwconv(s, pw1_w, pw1_b))
        s = _gelu(dwconv(s, fw2_ref, dw2_b)) + x
        s = x + _gelu(pwconv(s, pw2_w, pw2_b))
        o_ref[bi] = s.astype(o_ref.dtype)


def _pick_batch_tile(B, C, N):
    # Largest divisor of B that (a) keeps >= 2 grid steps (feeds both v7x
    # TensorCores) and (b) keeps the per-step f32 working set modest.
    budget = 8 * 1024 * 1024
    per_image = 8 * C * N * 4        # ~8 live (C, N) f32 arrays per image
    max_bt = max(1, budget // per_image)
    bt = 1
    for d in range(1, B + 1):
        if B % d == 0 and B // d >= 2 and d <= max_bt:
            bt = d
    return bt


def _pick_vmem_limit():
    # ~75% of physical per-core VMEM, capped; conservative fallback is safe on
    # every chip (never request all of v7x's 64 MiB/TC).
    try:
        cap = pltpu.get_tpu_info().vmem_capacity_bytes
        return min(int(0.75 * cap), 96 * 1024 * 1024)
    except Exception:
        return 48 * 1024 * 1024


def mixerlayer_pallas(x_nchw, params, *, mix_kernel_size, batch_tile=None):
    """Forward pass of Mixerlayer. x_nchw: (B, C, H, W), same as the torch module."""
    B, C, H, W = x_nchw.shape
    K = mix_kernel_size
    p = K // 2
    N = H * W

    if batch_tile is None:
        batch_tile = _pick_batch_tile(B, C, N)
    assert B % batch_tile == 0, "batch_tile must divide the batch"
    grid = (B // batch_tile,)

    # NCHW -> (B, C, H*W): a free reshape, no transpose / extra HBM pass.
    x2 = x_nchw.reshape(B, C, N).astype(jnp.float32)

    # Per-tap border-validity masks on the flattened spatial axis.
    hh = jnp.arange(H)[:, None]
    ww = jnp.arange(W)[None, :]
    rows = []
    for ky in range(K):
        for kx in range(K):
            dy, dx = ky - p, kx - p
            valid = ((hh + dy >= 0) & (hh + dy < H) &
                     (ww + dx >= 0) & (ww + dx < W))
            rows.append(valid.reshape(N))
    masks = jnp.stack(rows).astype(jnp.float32)               # (K*K, H*W)

    def dw_fuse(w):
        # torch depthwise weight (C, 1, K, K) -> pre-fused
        # (tap, channel, lane) = per-channel-weight x border-mask, so the
        # kernel's tap loop does one vmul instead of two.  (At production
        # resolutions build this per spatial tile, not for the full image.)
        w_t = jnp.transpose(w[:, 0].reshape(C, K * K))        # (K*K, C)
        return (w_t[:, :, None] * masks[:, None, :]).astype(jnp.float32)

    def bias_or_zero(b):
        return b if b is not None else jnp.zeros((C,), jnp.float32)

    fw1 = dw_fuse(params["dw1_w"])                            # (K*K, C, H*W)
    fw2 = dw_fuse(params["dw2_w"])
    biases = jnp.stack(
        [bias_or_zero(params.get("dw1_b")), params["pw1_b"],
         bias_or_zero(params.get("dw2_b")), params["pw2_b"]],
        axis=1).astype(jnp.float32)                           # (C, 4) lane-dense
    pw1_w = params["pw1_w"][:, :, 0, 0].astype(jnp.bfloat16)  # (C, C)
    pw2_w = params["pw2_w"][:, :, 0, 0].astype(jnp.bfloat16)

    x_spec = pl.BlockSpec((batch_tile, C, N), lambda g: (g, 0, 0))

    def const(shape):
        return pl.BlockSpec(shape, lambda g: (0,) * len(shape))

    kernel = functools.partial(_mixer_kernel, ksize=K, width=W)

    out = pl.pallas_call(
        kernel,
        out_shape=jax.ShapeDtypeStruct((B, C, N), jnp.float32),
        grid_spec=pltpu.PrefetchScalarGridSpec(
            num_scalar_prefetch=0,
            grid=grid,
            in_specs=[
                x_spec,
                const((K * K, C, N)), const((K * K, C, N)),
                const((C, 4)),
                const((C, C)), const((C, C)),
            ],
            out_specs=x_spec,
        ),
        compiler_params=pltpu.CompilerParams(
            dimension_semantics=("parallel",),
            vmem_limit_bytes=_pick_vmem_limit()),
    )(x2, fw1, fw2, biases, pw1_w, pw2_w)

    return out.reshape(B, C, H, W)


def mixerlayer_ref(x, params, *, mix_kernel_size):
    """Pure-JAX reference (NCHW), mirrors the PyTorch forward exactly."""
    C = x.shape[1]
    K = mix_kernel_size

    def dw(v, w, b):
        y = jax.lax.conv_general_dilated(
            v, w, window_strides=(1, 1),
            padding=[(K // 2, K // 2)] * 2,
            dimension_numbers=("NCHW", "OIHW", "NCHW"),
            feature_group_count=C)
        if b is not None:
            y = y + b.reshape(1, C, 1, 1)
        return y

    def pw(v, w, b):
        y = jax.lax.conv_general_dilated(
            v, w, window_strides=(1, 1), padding="VALID",
            dimension_numbers=("NCHW", "OIHW", "NCHW"))
        return y + b.reshape(1, C, 1, 1)

    gelu = lambda v: jax.nn.gelu(v, approximate=False)
    s1 = gelu(dw(x, params["dw1_w"], params.get("dw1_b"))) + x
    s1 = x + gelu(pw(s1, params["pw1_w"], params["pw1_b"]))
    s2 = gelu(dw(s1, params["dw2_w"], params.get("dw2_b"))) + x
    s2 = x + gelu(pw(s2, params["pw2_w"], params["pw2_b"]))
    return s2


if __name__ == "__main__":
    key = jax.random.PRNGKey(0)
    dim, K = 32, 3            # dim (channels), mix_kernel_size, bias=True
    B, H, W = 4, 16, 16       # B=4 exercises the batch-tiled path (Bt=2, grid=2)
    ks = jax.random.split(key, 9)
    params = {
        "dw1_w": 0.1 * jax.random.normal(ks[0], (dim, 1, K, K), jnp.float32),
        "dw1_b": 0.1 * jax.random.normal(ks[1], (dim,), jnp.float32),
        "pw1_w": 0.1 * jax.random.normal(ks[2], (dim, dim, 1, 1), jnp.float32),
        "pw1_b": 0.1 * jax.random.normal(ks[3], (dim,), jnp.float32),
        "dw2_w": 0.1 * jax.random.normal(ks[4], (dim, 1, K, K), jnp.float32),
        "dw2_b": 0.1 * jax.random.normal(ks[5], (dim,), jnp.float32),
        "pw2_w": 0.1 * jax.random.normal(ks[6], (dim, dim, 1, 1), jnp.float32),
        "pw2_b": 0.1 * jax.random.normal(ks[7], (dim,), jnp.float32),
    }
    x = jax.random.normal(ks[8], (B, dim, H, W), jnp.float32)

    y = mixerlayer_pallas(x, params, mix_kernel_size=K)
    jax.block_until_ready(y)

    y_ref = mixerlayer_ref(x, params, mix_kernel_size=K)
    assert y.shape == (B, dim, H, W)
    # bf16 MXU inputs for the 1x1 convs and the tanh-GELU approximation add
    # ~1e-3-level deviation vs the all-f32 exact-erf reference.
    err = float(jnp.max(jnp.abs(y - y_ref)))
    assert err < 1e-2, err

    print("KERNEL_OK")
</pallas_src>

<mosaic_0001>
module attributes {stable_mosaic.version = 11 : i64} {
  func.func @_mixer_kernel(%arg0: i32, %arg1: memref<2x32x256xf32, #tpu.memory_space<vmem>>, %arg2: memref<9x32x256xf32, #tpu.memory_space<vmem>>, %arg3: memref<9x32x256xf32, #tpu.memory_space<vmem>>, %arg4: memref<32x4xf32, #tpu.memory_space<vmem>>, %arg5: memref<32x32xbf16, #tpu.memory_space<vmem>>, %arg6: memref<32x32xbf16, #tpu.memory_space<vmem>>, %arg7: memref<2x32x256xf32, #tpu.memory_space<vmem>>) attributes {dimension_semantics = [#tpu.dimension_semantics<parallel>], iteration_bounds = array<i64: 2>, scalar_prefetch = 0 : i64, scratch_operands = 0 : i64, tpu.core_type = #tpu.core_type<tc>, window_params = [{transform_indices = @transform_0, window_bounds = array<i64: 2, 32, 256>}, {pipeline_mode = #tpu.pipeline_mode<synchronous>, transform_indices = @transform_1, window_bounds = array<i64: 9, 32, 256>}, {pipeline_mode = #tpu.pipeline_mode<synchronous>, transform_indices = @transform_2, window_bounds = array<i64: 9, 32, 256>}, {pipeline_mode = #tpu.pipeline_mode<synchronous>, transform_indices = @transform_3, window_bounds = array<i64: 32, 4>}, {pipeline_mode = #tpu.pipeline_mode<synchronous>, transform_indices = @transform_4, window_bounds = array<i64: 32, 32>}, {pipeline_mode = #tpu.pipeline_mode<synchronous>, transform_indices = @transform_5, window_bounds = array<i64: 32, 32>}, {transform_indices = @transform_6, window_bounds = array<i64: 2, 32, 256>}]} {
    %c0 = arith.constant 0 : index
    %c0_0 = arith.constant 0 : index
    %0 = vector.load %arg4[%c0, %c0_0] : memref<32x4xf32, #tpu.memory_space<vmem>>, vector<32x4xf32>
    %1 = vector.extract_strided_slice %0 {offsets = [0, 0], sizes = [32, 1], strides = [1, 1]} : vector<32x4xf32> to vector<32x1xf32>
    %2 = vector.extract_strided_slice %0 {offsets = [0, 1], sizes = [32, 1], strides = [1, 1]} : vector<32x4xf32> to vector<32x1xf32>
    %3 = vector.extract_strided_slice %0 {offsets = [0, 2], sizes = [32, 1], strides = [1, 1]} : vector<32x4xf32> to vector<32x1xf32>
    %4 = vector.extract_strided_slice %0 {offsets = [0, 3], sizes = [32, 1], strides = [1, 1]} : vector<32x4xf32> to vector<32x1xf32>
    %c0_1 = arith.constant 0 : index
    %c0_2 = arith.constant 0 : index
    %5 = vector.load %arg5[%c0_1, %c0_2] : memref<32x32xbf16, #tpu.memory_space<vmem>>, vector<32x32xbf16>
    %c0_3 = arith.constant 0 : index
    %c0_4 = arith.constant 0 : index
    %6 = vector.load %arg6[%c0_3, %c0_4] : memref<32x32xbf16, #tpu.memory_space<vmem>>, vector<32x32xbf16>
    %c0_5 = arith.constant 0 : index
    %c0_6 = arith.constant 0 : index
    %c0_7 = arith.constant 0 : index
    %7 = vector.load %arg1[%c0_5, %c0_6, %c0_7] : memref<2x32x256xf32, #tpu.memory_space<vmem>>, vector<1x32x256xf32>
    %8 = vector.shape_cast %7 : vector<1x32x256xf32> to vector<32x256xf32>
    %c4 = arith.constant 4 : index
    %c0_8 = arith.constant 0 : index
    %c0_9 = arith.constant 0 : index
    %9 = vector.load %arg2[%c4, %c0_8, %c0_9] : memref<9x32x256xf32, #tpu.memory_space<vmem>>, vector<1x32x256xf32>
    %10 = vector.shape_cast %9 : vector<1x32x256xf32> to vector<32x256xf32>
    %11 = arith.mulf %8, %10 : vector<32x256xf32>
    %c17_i32 = arith.constant 17 : i32
    %12 = tpu.dynamic_rotate %8 by %c17_i32 dim 1 : vector<32x256xf32>, i32 -> vector<32x256xf32>
    %c0_10 = arith.constant 0 : index
    %c0_11 = arith.constant 0 : index
    %c0_12 = arith.constant 0 : index
    %13 = vector.load %arg2[%c0_10, %c0_11, %c0_12] : memref<9x32x256xf32, #tpu.memory_space<vmem>>, vector<1x32x256xf32>
    %14 = vector.shape_cast %13 : vector<1x32x256xf32> to vector<32x256xf32>
    %15 = arith.mulf %12, %14 : vector<32x256xf32>
    %16 = arith.addf %11, %15 : vector<32x256xf32>
    %c16_i32 = arith.constant 16 : i32
    %17 = tpu.dynamic_rotate %8 by %c16_i32 dim 1 : vector<32x256xf32>, i32 -> vector<32x256xf32>
    %c1 = arith.constant 1 : index
    %c0_13 = arith.constant 0 : index
    %c0_14 = arith.constant 0 : index
    %18 = vector.load %arg2[%c1, %c0_13, %c0_14] : memref<9x32x256xf32, #tpu.memory_space<vmem>>, vector<1x32x256xf32>
    %19 = vector.shape_cast %18 : vector<1x32x256xf32> to vector<32x256xf32>
    %20 = arith.mulf %17, %19 : vector<32x256xf32>
    %21 = arith.addf %16, %20 : vector<32x256xf32>
    %c15_i32 = arith.constant 15 : i32
    %22 = tpu.dynamic_rotate %8 by %c15_i32 dim 1 : vector<32x256xf32>, i32 -> vector<32x256xf32>
    %c2 = arith.constant 2 : index
    %c0_15 = arith.constant 0 : index
    %c0_16 = arith.constant 0 : index
    %23 = vector.load %arg2[%c2, %c0_15, %c0_16] : memref<9x32x256xf32, #tpu.memory_space<vmem>>, vector<1x32x256xf32>
    %24 = vector.shape_cast %23 : vector<1x32x256xf32> to vector<32x256xf32>
    %25 = arith.mulf %22, %24 : vector<32x256xf32>
    %26 = arith.addf %21, %25 : vector<32x256xf32>
    %c1_i32 = arith.constant 1 : i32
    %27 = tpu.dynamic_rotate %8 by %c1_i32 dim 1 : vector<32x256xf32>, i32 -> vector<32x256xf32>
    %c3 = arith.constant 3 : index
    %c0_17 = arith.constant 0 : index
    %c0_18 = arith.constant 0 : index
    %28 = vector.load %arg2[%c3, %c0_17, %c0_18] : memref<9x32x256xf32, #tpu.memory_space<vmem>>, vector<1x32x256xf32>
    %29 = vector.shape_cast %28 : vector<1x32x256xf32> to vector<32x256xf32>
    %30 = arith.mulf %27, %29 : vector<32x256xf32>
    %31 = arith.addf %26, %30 : vector<32x256xf32>
    %c255_i32 = arith.constant 255 : i32
    %32 = tpu.dynamic_rotate %8 by %c255_i32 dim 1 : vector<32x256xf32>, i32 -> vector<32x256xf32>
    %c5 = arith.constant 5 : index
    %c0_19 = arith.constant 0 : index
    %c0_20 = arith.constant 0 : index
    %33 = vector.load %arg2[%c5, %c0_19, %c0_20] : memref<9x32x256xf32, #tpu.memory_space<vmem>>, vector<1x32x256xf32>
    %34 = vector.shape_cast %33 : vector<1x32x256xf32> to vector<32x256xf32>
    %35 = arith.mulf %32, %34 : vector<32x256xf32>
    %36 = arith.addf %31, %35 : vector<32x256xf32>
    %c241_i32 = arith.constant 241 : i32
    %37 = tpu.dynamic_rotate %8 by %c241_i32 dim 1 : vector<32x256xf32>, i32 -> vector<32x256xf32>
    %c6 = arith.constant 6 : index
    %c0_21 = arith.constant 0 : index
    %c0_22 = arith.constant 0 : index
    %38 = vector.load %arg2[%c6, %c0_21, %c0_22] : memref<9x32x256xf32, #tpu.memory_space<vmem>>, vector<1x32x256xf32>
    %39 = vector.shape_cast %38 : vector<1x32x256xf32> to vector<32x256xf32>
    %40 = arith.mulf %37, %39 : vector<32x256xf32>
    %41 = arith.addf %36, %40 : vector<32x256xf32>
    %c240_i32 = arith.constant 240 : i32
    %42 = tpu.dynamic_rotate %8 by %c240_i32 dim 1 : vector<32x256xf32>, i32 -> vector<32x256xf32>
    %c7 = arith.constant 7 : index
    %c0_23 = arith.constant 0 : index
    %c0_24 = arith.constant 0 : index
    %43 = vector.load %arg2[%c7, %c0_23, %c0_24] : memref<9x32x256xf32, #tpu.memory_space<vmem>>, vector<1x32x256xf32>
    %44 = vector.shape_cast %43 : vector<1x32x256xf32> to vector<32x256xf32>
    %45 = arith.mulf %42, %44 : vector<32x256xf32>
    %46 = arith.addf %41, %45 : vector<32x256xf32>
    %c239_i32 = arith.constant 239 : i32
    %47 = tpu.dynamic_rotate %8 by %c239_i32 dim 1 : vector<32x256xf32>, i32 -> vector<32x256xf32>
    %c8 = arith.constant 8 : index
    %c0_25 = arith.constant 0 : index
    %c0_26 = arith.constant 0 : index
    %48 = vector.load %arg2[%c8, %c0_25, %c0_26] : memref<9x32x256xf32, #tpu.memory_space<vmem>>, vector<1x32x256xf32>
    %49 = vector.shape_cast %48 : vector<1x32x256xf32> to vector<32x256xf32>
    %50 = arith.mulf %47, %49 : vector<32x256xf32>
    %51 = arith.addf %46, %50 : vector<32x256xf32>
    %52 = vector.broadcast %1 : vector<32x1xf32> to vector<32x256xf32>
    %53 = arith.addf %51, %52 : vector<32x256xf32>
    %cst = arith.constant 4.471500e-02 : f32
    %54 = vector.broadcast %cst : f32 to vector<32x256xf32>
    %55 = arith.mulf %54, %53 : vector<32x256xf32>
    %56 = arith.mulf %55, %53 : vector<32x256xf32>
    %57 = arith.mulf %56, %53 : vector<32x256xf32>
    %58 = arith.addf %53, %57 : vector<32x256xf32>
    %cst_27 = arith.constant 0.797884583 : f32
    %59 = vector.broadcast %cst_27 : f32 to vector<32x256xf32>
    %60 = arith.mulf %59, %58 : vector<32x256xf32>
    %cst_28 = arith.constant 5.000000e-01 : f32
    %61 = vector.broadcast %cst_28 : f32 to vector<32x256xf32>
    %62 = arith.mulf %61, %53 : vector<32x256xf32>
    %63 = math.tanh %60 : vector<32x256xf32>
    %cst_29 = arith.constant 1.000000e+00 : f32
    %64 = vector.broadcast %cst_29 : f32 to vector<32x256xf32>
    %65 = arith.addf %64, %63 : vector<32x256xf32>
    %66 = arith.mulf %62, %65 : vector<32x256xf32>
    %67 = arith.addf %66, %8 : vector<32x256xf32>
    %68 = arith.truncf %67 : vector<32x256xf32> to vector<32x256xbf16>
    %cst_30 = arith.constant dense<0.000000e+00> : vector<32x256xf32>
    %69 = tpu.matmul %5, %68, %cst_30 {dimension_numbers = #tpu.dot_dimension_numbers<[1], [0], [0], [1], [0, 0, 1, 1], [], []>} : vector<32x32xbf16>, vector<32x256xbf16>, vector<32x256xf32> -> vector<32x256xf32>
    %70 = vector.broadcast %2 : vector<32x1xf32> to vector<32x256xf32>
    %71 = arith.addf %69, %70 : vector<32x256xf32>
    %cst_31 = arith.constant 4.471500e-02 : f32
    %72 = vector.broadcast %cst_31 : f32 to vector<32x256xf32>
    %73 = arith.mulf %72, %71 : vector<32x256xf32>
    %74 = arith.mulf %73, %71 : vector<32x256xf32>
    %75 = arith.mulf %74, %71 : vector<32x256xf32>
    %76 = arith.addf %71, %75 : vector<32x256xf32>
    %cst_32 = arith.constant 0.797884583 : f32
    %77 = vector.broadcast %cst_32 : f32 to vector<32x256xf32>
    %78 = arith.mulf %77, %76 : vector<32x256xf32>
    %cst_33 = arith.constant 5.000000e-01 : f32
    %79 = vector.broadcast %cst_33 : f32 to vector<32x256xf32>
    %80 = arith.mulf %79, %71 : vector<32x256xf32>
    %81 = math.tanh %78 : vector<32x256xf32>
    %cst_34 = arith.constant 1.000000e+00 : f32
    %82 = vector.broadcast %cst_34 : f32 to vector<32x256xf32>
    %83 = arith.addf %82, %81 : vector<32x256xf32>
    %84 = arith.mulf %80, %83 : vector<32x256xf32>
    %85 = arith.addf %8, %84 : vector<32x256xf32>
    %c4_35 = arith.constant 4 : index
    %c0_36 = arith.constant 0 : index
    %c0_37 = arith.constant 0 : index
    %86 = vector.load %arg3[%c4_35, %c0_36, %c0_37] : memref<9x32x256xf32, #tpu.memory_space<vmem>>, vector<1x32x256xf32>
    %87 = vector.shape_cast %86 : vector<1x32x256xf32> to vector<32x256xf32>
    %88 = arith.mulf %85, %87 : vector<32x256xf32>
    %c17_i32_38 = arith.constant 17 : i32
    %89 = tpu.dynamic_rotate %85 by %c17_i32_38 dim 1 : vector<32x256xf32>, i32 -> vector<32x256xf32>
    %c0_39 = arith.constant 0 : index
    %c0_40 = arith.constant 0 : index
    %c0_41 = arith.constant 0 : index
    %90 = vector.load %arg3[%c0_39, %c0_40, %c0_41] : memref<9x32x256xf32, #tpu.memory_space<vmem>>, vector<1x32x256xf32>
    %91 = vector.shape_cast %90 : vector<1x32x256xf32> to vector<32x256xf32>
    %92 = arith.mulf %89, %91 : vector<32x256xf32>
    %93 = arith.addf %88, %92 : vector<32x256xf32>
    %c16_i32_42 = arith.constant 16 : i32
    %94 = tpu.dynamic_rotate %85 by %c16_i32_42 dim 1 : vector<32x256xf32>, i32 -> vector<32x256xf32>
    %c1_43 = arith.constant 1 : index
    %c0_44 = arith.constant 0 : index
    %c0_45 = arith.constant 0 : index
    %95 = vector.load %arg3[%c1_43, %c0_44, %c0_45] : memref<9x32x256xf32, #tpu.memory_space<vmem>>, vector<1x32x256xf32>
    %96 = vector.shape_cast %95 : vector<1x32x256xf32> to vector<32x256xf32>
    %97 = arith.mulf %94, %96 : vector<32x256xf32>
    %98 = arith.addf %93, %97 : vector<32x256xf32>
    %c15_i32_46 = arith.constant 15 : i32
    %99 = tpu.dynamic_rotate %85 by %c15_i32_46 dim 1 : vector<32x256xf32>, i32 -> vector<32x256xf32>
    %c2_47 = arith.constant 2 : index
    %c0_48 = arith.constant 0 : index
    %c0_49 = arith.constant 0 : index
    %100 = vector.load %arg3[%c2_47, %c0_48, %c0_49] : memref<9x32x256xf32, #tpu.memory_space<vmem>>, vector<1x32x256xf32>
    %101 = vector.shape_cast %100 : vector<1x32x256xf32> to vector<32x256xf32>
    %102 = arith.mulf %99, %101 : vector<32x256xf32>
    %103 = arith.addf %98, %102 : vector<32x256xf32>
    %c1_i32_50 = arith.constant 1 : i32
    %104 = tpu.dynamic_rotate %85 by %c1_i32_50 dim 1 : vector<32x256xf32>, i32 -> vector<32x256xf32>
    %c3_51 = arith.constant 3 : index
    %c0_52 = arith.constant 0 : index
    %c0_53 = arith.constant 0 : index
    %105 = vector.load %arg3[%c3_51, %c0_52, %c0_53] : memref<9x32x256xf32, #tpu.memory_space<vmem>>, vector<1x32x256xf32>
    %106 = vector.shape_cast %105 : vector<1x32x256xf32> to vector<32x256xf32>
    %107 = arith.mulf %104, %106 : vector<32x256xf32>
    %108 = arith.addf %103, %107 : vector<32x256xf32>
    %c255_i32_54 = arith.constant 255 : i32
    %109 = tpu.dynamic_rotate %85 by %c255_i32_54 dim 1 : vector<32x256xf32>, i32 -> vector<32x256xf32>
    %c5_55 = arith.constant 5 : index
    %c0_56 = arith.constant 0 : index
    %c0_57 = arith.constant 0 : index
    %110 = vector.load %arg3[%c5_55, %c0_56, %c0_57] : memref<9x32x256xf32, #tpu.memory_space<vmem>>, vector<1x32x256xf32>
    %111 = vector.shape_cast %110 : vector<1x32x256xf32> to vector<32x256xf32>
    %112 = arith.mulf %109, %111 : vector<32x256xf32>
    %113 = arith.addf %108, %112 : vector<32x256xf32>
    %c241_i32_58 = arith.constant 241 : i32
    %114 = tpu.dynamic_rotate %85 by %c241_i32_58 dim 1 : vector<32x256xf32>, i32 -> vector<32x256xf32>
    %c6_59 = arith.constant 6 : index
    %c0_60 = arith.constant 0 : index
    %c0_61 = arith.constant 0 : index
    %115 = vector.load %arg3[%c6_59, %c0_60, %c0_61] : memref<9x32x256xf32, #tpu.memory_space<vmem>>, vector<1x32x256xf32>
    %116 = vector.shape_cast %115 : vector<1x32x256xf32> to vector<32x256xf32>
    %117 = arith.mulf %114, %116 : vector<32x256xf32>
    %118 = arith.addf %113, %117 : vector<32x256xf32>
    %c240_i32_62 = arith.constant 240 : i32
    %119 = tpu.dynamic_rotate %85 by %c240_i32_62 dim 1 : vector<32x256xf32>, i32 -> vector<32x256xf32>
    %c7_63 = arith.constant 7 : index
    %c0_64 = arith.constant 0 : index
    %c0_65 = arith.constant 0 : index
    %120 = vector.load %arg3[%c7_63, %c0_64, %c0_65] : memref<9x32x256xf32, #tpu.memory_space<vmem>>, vector<1x32x256xf32>
    %121 = vector.shape_cast %120 : vector<1x32x256xf32> to vector<32x256xf32>
    %122 = arith.mulf %119, %121 : vector<32x256xf32>
    %123 = arith.addf %118, %122 : vector<32x256xf32>
    %c239_i32_66 = arith.constant 239 : i32
    %124 = tpu.dynamic_rotate %85 by %c239_i32_66 dim 1 : vector<32x256xf32>, i32 -> vector<32x256xf32>
    %c8_67 = arith.constant 8 : index
    %c0_68 = arith.constant 0 : index
    %c0_69 = arith.constant 0 : index
    %125 = vector.load %arg3[%c8_67, %c0_68, %c0_69] : memref<9x32x256xf32, #tpu.memory_space<vmem>>, vector<1x32x256xf32>
    %126 = vector.shape_cast %125 : vector<1x32x256xf32> to vector<32x256xf32>
    %127 = arith.mulf %124, %126 : vector<32x256xf32>
    %128 = arith.addf %123, %127 : vector<32x256xf32>
    %129 = vector.broadcast %3 : vector<32x1xf32> to vector<32x256xf32>
    %130 = arith.addf %128, %129 : vector<32x256xf32>
    %cst_70 = arith.constant 4.471500e-02 : f32
    %131 = vector.broadcast %cst_70 : f32 to vector<32x256xf32>
    %132 = arith.mulf %131, %130 : vector<32x256xf32>
    %133 = arith.mulf %132, %130 : vector<32x256xf32>
    %134 = arith.mulf %133, %130 : vector<32x256xf32>
    %135 = arith.addf %130, %134 : vector<32x256xf32>
    %cst_71 = arith.constant 0.797884583 : f32
    %136 = vector.broadcast %cst_71 : f32 to vector<32x256xf32>
    %137 = arith.mulf %136, %135 : vector<32x256xf32>
    %cst_72 = arith.constant 5.000000e-01 : f32
    %138 = vector.broadcast %cst_72 : f32 to vector<32x256xf32>
    %139 = arith.mulf %138, %130 : vector<32x256xf32>
    %140 = math.tanh %137 : vector<32x256xf32>
    %cst_73 = arith.constant 1.000000e+00 : f32
    %141 = vector.broadcast %cst_73 : f32 to vector<32x256xf32>
    %142 = arith.addf %141, %140 : vector<32x256xf32>
    %143 = arith.mulf %139, %142 : vector<32x256xf32>
    %144 = arith.addf %143, %8 : vector<32x256xf32>
    %145 = arith.truncf %144 : vector<32x256xf32> to vector<32x256xbf16>
    %cst_74 = arith.constant dense<0.000000e+00> : vector<32x256xf32>
    %146 = tpu.matmul %6, %145, %cst_74 {dimension_numbers = #tpu.dot_dimension_numbers<[1], [0], [0], [1], [0, 0, 1, 1], [], []>} : vector<32x32xbf16>, vector<32x256xbf16>, vector<32x256xf32> -> vector<32x256xf32>
    %147 = vector.broadcast %4 : vector<32x1xf32> to vector<32x256xf32>
    %148 = arith.addf %146, %147 : vector<32x256xf32>
    %cst_75 = arith.constant 4.471500e-02 : f32
    %149 = vector.broadcast %cst_75 : f32 to vector<32x256xf32>
    %150 = arith.mulf %149, %148 : vector<32x256xf32>
    %151 = arith.mulf %150, %148 : vector<32x256xf32>
    %152 = arith.mulf %151, %148 : vector<32x256xf32>
    %153 = arith.addf %148, %152 : vector<32x256xf32>
    %cst_76 = arith.constant 0.797884583 : f32
    %154 = vector.broadcast %cst_76 : f32 to vector<32x256xf32>
    %155 = arith.mulf %154, %153 : vector<32x256xf32>
    %cst_77 = arith.constant 5.000000e-01 : f32
    %156 = vector.broadcast %cst_77 : f32 to vector<32x256xf32>
    %157 = arith.mulf %156, %148 : vector<32x256xf32>
    %158 = math.tanh %155 : vector<32x256xf32>
    %cst_78 = arith.constant 1.000000e+00 : f32
    %159 = vector.broadcast %cst_78 : f32 to vector<32x256xf32>
    %160 = arith.addf %159, %158 : vector<32x256xf32>
    %161 = arith.mulf %157, %160 : vector<32x256xf32>
    %162 = arith.addf %8, %161 : vector<32x256xf32>
    %c0_79 = arith.constant 0 : index
    %c0_80 = arith.constant 0 : index
    %c0_81 = arith.constant 0 : index
    %163 = vector.load %arg7[%c0_79, %c0_80, %c0_81] : memref<2x32x256xf32, #tpu.memory_space<vmem>>, vector<1x32x256xf32>
    %164 = vector.shape_cast %163 : vector<1x32x256xf32> to vector<32x256xf32>
    %165 = vector.shape_cast %162 : vector<32x256xf32> to vector<1x32x256xf32>
    tpu.vector_store %arg7[%c0_79, %c0_80, %c0_81], %165 {strides = array<i32>} : memref<2x32x256xf32, #tpu.memory_space<vmem>>, vector<1x32x256xf32>,
    %c1_82 = arith.constant 1 : index
    %c0_83 = arith.constant 0 : index
    %c0_84 = arith.constant 0 : index
    %166 = vector.load %arg1[%c1_82, %c0_83, %c0_84] : memref<2x32x256xf32, #tpu.memory_space<vmem>>, vector<1x32x256xf32>
    %167 = vector.shape_cast %166 : vector<1x32x256xf32> to vector<32x256xf32>
    %c4_85 = arith.constant 4 : index
    %c0_86 = arith.constant 0 : index
    %c0_87 = arith.constant 0 : index
    %168 = vector.load %arg2[%c4_85, %c0_86, %c0_87] : memref<9x32x256xf32, #tpu.memory_space<vmem>>, vector<1x32x256xf32>
    %169 = vector.shape_cast %168 : vector<1x32x256xf32> to vector<32x256xf32>
    %170 = arith.mulf %167, %169 : vector<32x256xf32>
    %c17_i32_88 = arith.constant 17 : i32
    %171 = tpu.dynamic_rotate %167 by %c17_i32_88 dim 1 : vector<32x256xf32>, i32 -> vector<32x256xf32>
    %c0_89 = arith.constant 0 : index
    %c0_90 = arith.constant 0 : index
    %c0_91 = arith.constant 0 : index
    %172 = vector.load %arg2[%c0_89, %c0_90, %c0_91] : memref<9x32x256xf32, #tpu.memory_space<vmem>>, vector<1x32x256xf32>
    %173 = vector.shape_cast %172 : vector<1x32x256xf32> to vector<32x256xf32>
    %174 = arith.mulf %171, %173 : vector<32x256xf32>
    %175 = arith.addf %170, %174 : vector<32x256xf32>
    %c16_i32_92 = arith.constant 16 : i32
    %176 = tpu.dynamic_rotate %167 by %c16_i32_92 dim 1 : vector<32x256xf32>, i32 -> vector<32x256xf32>
    %c1_93 = arith.constant 1 : index
    %c0_94 = arith.constant 0 : index
    %c0_95 = arith.constant 0 : index
    %177 = vector.load %arg2[%c1_93, %c0_94, %c0_95] : memref<9x32x256xf32, #tpu.memory_space<vmem>>, vector<1x32x256xf32>
    %178 = vector.shape_cast %177 : vector<1x32x256xf32> to vector<32x256xf32>
    %179 = arith.mulf %176, %178 : vector<32x256xf32>
    %180 = arith.addf %175, %179 : vector<32x256xf32>
    %c15_i32_96 = arith.constant 15 : i32
    %181 = tpu.dynamic_rotate %167 by %c15_i32_96 dim 1 : vector<32x256xf32>, i32 -> vector<32x256xf32>
    %c2_97 = arith.constant 2 : index
    %c0_98 = arith.constant 0 : index
    %c0_99 = arith.constant 0 : index
    %182 = vector.load %arg2[%c2_97, %c0_98, %c0_99] : memref<9x32x256xf32, #tpu.memory_space<vmem>>, vector<1x32x256xf32>
    %183 = vector.shape_cast %182 : vector<1x32x256xf32> to vector<32x256xf32>
    %184 = arith.mulf %181, %183 : vector<32x256xf32>
    %185 = arith.addf %180, %184 : vector<32x256xf32>
    %c1_i32_100 = arith.constant 1 : i32
    %186 = tpu.dynamic_rotate %167 by %c1_i32_100 dim 1 : vector<32x256xf32>, i32 -> vector<32x256xf32>
    %c3_101 = arith.constant 3 : index
    %c0_102 = arith.constant 0 : index
    %c0_103 = arith.constant 0 : index
    %187 = vector.load %arg2[%c3_101, %c0_102, %c0_103] : memref<9x32x256xf32, #tpu.memory_space<vmem>>, vector<1x32x256xf32>
    %188 = vector.shape_cast %187 : vector<1x32x256xf32> to vector<32x256xf32>
    %189 = arith.mulf %186, %188 : vector<32x256xf32>
    %190 = arith.addf %185, %189 : vector<32x256xf32>
    %c255_i32_104 = arith.constant 255 : i32
    %191 = tpu.dynamic_rotate %167 by %c255_i32_104 dim 1 : vector<32x256xf32>, i32 -> vector<32x256xf32>
    %c5_105 = arith.constant 5 : index
    %c0_106 = arith.constant 0 : index
    %c0_107 = arith.constant 0 : index
    %192 = vector.load %arg2[%c5_105, %c0_106, %c0_107] : memref<9x32x256xf32, #tpu.memory_space<vmem>>, vector<1x32x256xf32>
    %193 = vector.shape_cast %192 : vector<1x32x256xf32> to vector<32x256xf32>
    %194 = arith.mulf %191, %193 : vector<32x256xf32>
    %195 = arith.addf %190, %194 : vector<32x256xf32>
    %c241_i32_108 = arith.constant 241 : i32
    %196 = tpu.dynamic_rotate %167 by %c241_i32_108 dim 1 : vector<32x256xf32>, i32 -> vector<32x256xf32>
    %c6_109 = arith.constant 6 : index
    %c0_110 = arith.constant 0 : index
    %c0_111 = arith.constant 0 : index
    %197 = vector.load %arg2[%c6_109, %c0_110, %c0_111] : memref<9x32x256xf32, #tpu.memory_space<vmem>>, vector<1x32x256xf32>
    %198 = vector.shape_cast %197 : vector<1x32x256xf32> to vector<32x256xf32>
    %199 = arith.mulf %196, %198 : vector<32x256xf32>
    %200 = arith.addf %195, %199 : vector<32x256xf32>
    %c240_i32_112 = arith.constant 240 : i32
    %201 = tpu.dynamic_rotate %167 by %c240_i32_112 dim 1 : vector<32x256xf32>, i32 -> vector<32x256xf32>
    %c7_113 = arith.constant 7 : index
    %c0_114 = arith.constant 0 : index
    %c0_115 = arith.constant 0 : index
    %202 = vector.load %arg2[%c7_113, %c0_114, %c0_115] : memref<9x32x256xf32, #tpu.memory_space<vmem>>, vector<1x32x256xf32>
    %203 = vector.shape_cast %202 : vector<1x32x256xf32> to vector<32x256xf32>
    %204 = arith.mulf %201, %203 : vector<32x256xf32>
    %205 = arith.addf %200, %204 : vector<32x256xf32>
    %c239_i32_116 = arith.constant 239 : i32
    %206 = tpu.dynamic_rotate %167 by %c239_i32_116 dim 1 : vector<32x256xf32>, i32 -> vector<32x256xf32>
    %c8_117 = arith.constant 8 : index
    %c0_118 = arith.constant 0 : index
    %c0_119 = arith.constant 0 : index
    %207 = vector.load %arg2[%c8_117, %c0_118, %c0_119] : memref<9x32x256xf32, #tpu.memory_space<vmem>>, vector<1x32x256xf32>
    %208 = vector.shape_cast %207 : vector<1x32x256xf32> to vector<32x256xf32>
    %209 = arith.mulf %206, %208 : vector<32x256xf32>
    %210 = arith.addf %205, %209 : vector<32x256xf32>
    %211 = vector.broadcast %1 : vector<32x1xf32> to vector<32x256xf32>
    %212 = arith.addf %210, %211 : vector<32x256xf32>
    %cst_120 = arith.constant 4.471500e-02 : f32
    %213 = vector.broadcast %cst_120 : f32 to vector<32x256xf32>
    %214 = arith.mulf %213, %212 : vector<32x256xf32>
    %215 = arith.mulf %214, %212 : vector<32x256xf32>
    %216 = arith.mulf %215, %212 : vector<32x256xf32>
    %217 = arith.addf %212, %216 : vector<32x256xf32>
    %cst_121 = arith.constant 0.797884583 : f32
    %218 = vector.broadcast %cst_121 : f32 to vector<32x256xf32>
    %219 = arith.mulf %218, %217 : vector<32x256xf32>
    %cst_122 = arith.constant 5.000000e-01 : f32
    %220 = vector.broadcast %cst_122 : f32 to vector<32x256xf32>
    %221 = arith.mulf %220, %212 : vector<32x256xf32>
    %222 = math.tanh %219 : vector<32x256xf32>
    %cst_123 = arith.constant 1.000000e+00 : f32
    %223 = vector.broadcast %cst_123 : f32 to vector<32x256xf32>
    %224 = arith.addf %223, %222 : vector<32x256xf32>
    %225 = arith.mulf %221, %224 : vector<32x256xf32>
    %226 = arith.addf %225, %167 : vector<32x256xf32>
    %227 = arith.truncf %226 : vector<32x256xf32> to vector<32x256xbf16>
    %cst_124 = arith.constant dense<0.000000e+00> : vector<32x256xf32>
    %228 = tpu.matmul %5, %227, %cst_124 {dimension_numbers = #tpu.dot_dimension_numbers<[1], [0], [0], [1], [0, 0, 1, 1], [], []>} : vector<32x32xbf16>, vector<32x256xbf16>, vector<32x256xf32> -> vector<32x256xf32>
    %229 = vector.broadcast %2 : vector<32x1xf32> to vector<32x256xf32>
    %230 = arith.addf %228, %229 : vector<32x256xf32>
    %cst_125 = arith.constant 4.471500e-02 : f32
    %231 = vector.broadcast %cst_125 : f32 to vector<32x256xf32>
    %232 = arith.mulf %231, %230 : vector<32x256xf32>
    %233 = arith.mulf %232, %230 : vector<32x256xf32>
    %234 = arith.mulf %233, %230 : vector<32x256xf32>
    %235 = arith.addf %230, %234 : vector<32x256xf32>
    %cst_126 = arith.constant 0.797884583 : f32
    %236 = vector.broadcast %cst_126 : f32 to vector<32x256xf32>
    %237 = arith.mulf %236, %235 : vector<32x256xf32>
    %cst_127 = arith.constant 5.000000e-01 : f32
    %238 = vector.broadcast %cst_127 : f32 to vector<32x256xf32>
    %239 = arith.mulf %238, %230 : vector<32x256xf32>
    %240 = math.tanh %237 : vector<32x256xf32>
    %cst_128 = arith.constant 1.000000e+00 : f32
    %241 = vector.broadcast %cst_128 : f32 to vector<32x256xf32>
    %242 = arith.addf %241, %240 : vector<32x256xf32>
    %243 = arith.mulf %239, %242 : vector<32x256xf32>
    %244 = arith.addf %167, %243 : vector<32x256xf32>
    %c4_129 = arith.constant 4 : index
    %c0_130 = arith.constant 0 : index
    %c0_131 = arith.constant 0 : index
    %245 = vector.load %arg3[%c4_129, %c0_130, %c0_131] : memref<9x32x256xf32, #tpu.memory_space<vmem>>, vector<1x32x256xf32>
    %246 = vector.shape_cast %245 : vector<1x32x256xf32> to vector<32x256xf32>
    %247 = arith.mulf %244, %246 : vector<32x256xf32>
    %c17_i32_132 = arith.constant 17 : i32
    %248 = tpu.dynamic_rotate %244 by %c17_i32_132 dim 1 : vector<32x256xf32>, i32 -> vector<32x256xf32>
    %c0_133 = arith.constant 0 : index
    %c0_134 = arith.constant 0 : index
    %c0_135 = arith.constant 0 : index
    %249 = vector.load %arg3[%c0_133, %c0_134, %c0_135] : memref<9x32x256xf32, #tpu.memory_space<vmem>>, vector<1x32x256xf32>
    %250 = vector.shape_cast %249 : vector<1x32x256xf32> to vector<32x256xf32>
    %251 = arith.mulf %248, %250 : vector<32x256xf32>
    %252 = arith.addf %247, %251 : vector<32x256xf32>
    %c16_i32_136 = arith.constant 16 : i32
    %253 = tpu.dynamic_rotate %244 by %c16_i32_136 dim 1 : vector<32x256xf32>, i32 -> vector<32x256xf32>
    %c1_137 = arith.constant 1 : index
    %c0_138 = arith.constant 0 : index
    %c0_139 = arith.constant 0 : index
    %254 = vector.load %arg3[%c1_137, %c0_138, %c0_139] : memref<9x32x256xf32, #tpu.memory_space<vmem>>, vector<1x32x256xf32>
    %255 = vector.shape_cast %254 : vector<1x32x256xf32> to vector<32x256xf32>
    %256 = arith.mulf %253, %255 : vector<32x256xf32>
    %257 = arith.addf %252, %256 : vector<32x256xf32>
    %c15_i32_140 = arith.constant 15 : i32
    %258 = tpu.dynamic_rotate %244 by %c15_i32_140 dim 1 : vector<32x256xf32>, i32 -> vector<32x256xf32>
    %c2_141 = arith.constant 2 : index
    %c0_142 = arith.constant 0 : index
    %c0_143 = arith.constant 0 : index
    %259 = vector.load %arg3[%c2_141, %c0_142, %c0_143] : memref<9x32x256xf32, #tpu.memory_space<vmem>>, vector<1x32x256xf32>
    %260 = vector.shape_cast %259 : vector<1x32x256xf32> to vector<32x256xf32>
    %261 = arith.mulf %258, %260 : vector<32x256xf32>
    %262 = arith.addf %257, %261 : vector<32x256xf32>
    %c1_i32_144 = arith.constant 1 : i32
    %263 = tpu.dynamic_rotate %244 by %c1_i32_144 dim 1 : vector<32x256xf32>, i32 -> vector<32x256xf32>
    %c3_145 = arith.constant 3 : index
    %c0_146 = arith.constant 0 : index
    %c0_147 = arith.constant 0 : index
    %264 = vector.load %arg3[%c3_145, %c0_146, %c0_147] : memref<9x32x256xf32, #tpu.memory_space<vmem>>, vector<1x32x256xf32>
    %265 = vector.shape_cast %264 : vector<1x32x256xf32> to vector<32x256xf32>
    %266 = arith.mulf %263, %265 : vector<32x256xf32>
    %267 = arith.addf %262, %266 : vector<32x256xf32>
    %c255_i32_148 = arith.constant 255 : i32
    %268 = tpu.dynamic_rotate %244 by %c255_i32_148 dim 1 : vector<32x256xf32>, i32 -> vector<32x256xf32>
    %c5_149 = arith.constant 5 : index
    %c0_150 = arith.constant 0 : index
    %c0_151 = arith.constant 0 : index
    %269 = vector.load %arg3[%c5_149, %c0_150, %c0_151] : memref<9x32x256xf32, #tpu.memory_space<vmem>>, vector<1x32x256xf32>
    %270 = vector.shape_cast %269 : vector<1x32x256xf32> to vector<32x256xf32>
    %271 = arith.mulf %268, %270 : vector<32x256xf32>
    %272 = arith.addf %267, %271 : vector<32x256xf32>
    %c241_i32_152 = arith.constant 241 : i32
    %273 = tpu.dynamic_rotate %244 by %c241_i32_152 dim 1 : vector<32x256xf32>, i32 -> vector<32x256xf32>
    %c6_153 = arith.constant 6 : index
    %c0_154 = arith.constant 0 : index
    %c0_155 = arith.constant 0 : index
    %274 = vector.load %arg3[%c6_153, %c0_154, %c0_155] : memref<9x32x256xf32, #tpu.memory_space<vmem>>, vector<1x32x256xf32>
    %275 = vector.shape_cast %274 : vector<1x32x256xf32> to vector<32x256xf32>
    %276 = arith.mulf %273, %275 : vector<32x256xf32>
    %277 = arith.addf %272, %276 : vector<32x256xf32>
    %c240_i32_156 = arith.constant 240 : i32
    %278 = tpu.dynamic_rotate %244 by %c240_i32_156 dim 1 : vector<32x256xf32>, i32 -> vector<32x256xf32>
    %c7_157 = arith.constant 7 : index
    %c0_158 = arith.constant 0 : index
    %c0_159 = arith.constant 0 : index
    %279 = vector.load %arg3[%c7_157, %c0_158, %c0_159] : memref<9x32x256xf32, #tpu.memory_space<vmem>>, vector<1x32x256xf32>
    %280 = vector.shape_cast %279 : vector<1x32x256xf32> to vector<32x256xf32>
    %281 = arith.mulf %278, %280 : vector<32x256xf32>
    %282 = arith.addf %277, %281 : vector<32x256xf32>
    %c239_i32_160 = arith.constant 239 : i32
    %283 = tpu.dynamic_rotate %244 by %c239_i32_160 dim 1 : vector<32x256xf32>, i32 -> vector<32x256xf32>
    %c8_161 = arith.constant 8 : index
    %c0_162 = arith.constant 0 : index
    %c0_163 = arith.constant 0 : index
    %284 = vector.load %arg3[%c8_161, %c0_162, %c0_163] : memref<9x32x256xf32, #tpu.memory_space<vmem>>, vector<1x32x256xf32>
    %285 = vector.shape_cast %284 : vector<1x32x256xf32> to vector<32x256xf32>
    %286 = arith.mulf %283, %285 : vector<32x256xf32>
    %287 = arith.addf %282, %286 : vector<32x256xf32>
    %288 = vector.broadcast %3 : vector<32x1xf32> to vector<32x256xf32>
    %289 = arith.addf %287, %288 : vector<32x256xf32>
    %cst_164 = arith.constant 4.471500e-02 : f32
    %290 = vector.broadcast %cst_164 : f32 to vector<32x256xf32>
    %291 = arith.mulf %290, %289 : vector<32x256xf32>
    %292 = arith.mulf %291, %289 : vector<32x256xf32>
    %293 = arith.mulf %292, %289 : vector<32x256xf32>
    %294 = arith.addf %289, %293 : vector<32x256xf32>
    %cst_165 = arith.constant 0.797884583 : f32
    %295 = vector.broadcast %cst_165 : f32 to vector<32x256xf32>
    %296 = arith.mulf %295, %294 : vector<32x256xf32>
    %cst_166 = arith.constant 5.000000e-01 : f32
    %297 = vector.broadcast %cst_166 : f32 to vector<32x256xf32>
    %298 = arith.mulf %297, %289 : vector<32x256xf32>
    %299 = math.tanh %296 : vector<32x256xf32>
    %cst_167 = arith.constant 1.000000e+00 : f32
    %300 = vector.broadcast %cst_167 : f32 to vector<32x256xf32>
    %301 = arith.addf %300, %299 : vector<32x256xf32>
    %302 = arith.mulf %298, %301 : vector<32x256xf32>
    %303 = arith.addf %302, %167 : vector<32x256xf32>
    %304 = arith.truncf %303 : vector<32x256xf32> to vector<32x256xbf16>
    %cst_168 = arith.constant dense<0.000000e+00> : vector<32x256xf32>
    %305 = tpu.matmul %6, %304, %cst_168 {dimension_numbers = #tpu.dot_dimension_numbers<[1], [0], [0], [1], [0, 0, 1, 1], [], []>} : vector<32x32xbf16>, vector<32x256xbf16>, vector<32x256xf32> -> vector<32x256xf32>
    %306 = vector.broadcast %4 : vector<32x1xf32> to vector<32x256xf32>
    %307 = arith.addf %305, %306 : vector<32x256xf32>
    %cst_169 = arith.constant 4.471500e-02 : f32
    %308 = vector.broadcast %cst_169 : f32 to vector<32x256xf32>
    %309 = arith.mulf %308, %307 : vector<32x256xf32>
    %310 = arith.mulf %309, %307 : vector<32x256xf32>
    %311 = arith.mulf %310, %307 : vector<32x256xf32>
    %312 = arith.addf %307, %311 : vector<32x256xf32>
    %cst_170 = arith.constant 0.797884583 : f32
    %313 = vector.broadcast %cst_170 : f32 to vector<32x256xf32>
    %314 = arith.mulf %313, %312 : vector<32x256xf32>
    %cst_171 = arith.constant 5.000000e-01 : f32
    %315 = vector.broadcast %cst_171 : f32 to vector<32x256xf32>
    %316 = arith.mulf %315, %307 : vector<32x256xf32>
    %317 = math.tanh %314 : vector<32x256xf32>
    %cst_172 = arith.constant 1.000000e+00 : f32
    %318 = vector.broadcast %cst_172 : f32 to vector<32x256xf32>
    %319 = arith.addf %318, %317 : vector<32x256xf32>
    %320 = arith.mulf %316, %319 : vector<32x256xf32>
    %321 = arith.addf %167, %320 : vector<32x256xf32>
    %c1_173 = arith.constant 1 : index
    %c0_174 = arith.constant 0 : index
    %c0_175 = arith.constant 0 : index
    %322 = vector.load %arg7[%c1_173, %c0_174, %c0_175] : memref<2x32x256xf32, #tpu.memory_space<vmem>>, vector<1x32x256xf32>
    %323 = vector.shape_cast %322 : vector<1x32x256xf32> to vector<32x256xf32>
    %324 = vector.shape_cast %321 : vector<32x256xf32> to vector<1x32x256xf32>
    tpu.vector_store %arg7[%c1_173, %c0_174, %c0_175], %324 {strides = array<i32>} : memref<2x32x256xf32, #tpu.memory_space<vmem>>, vector<1x32x256xf32>,
    return
  }
  func.func @transform_0(%arg0: i32) -> (i32, i32, i32) {
    %c0_i32 = arith.constant 0 : i32
    %c0_i32_0 = arith.constant 0 : i32
    %c0_i32_1 = arith.constant 0 : i32
    return %arg0, %c0_i32, %c0_i32_0 : i32, i32, i32
  }
  func.func @transform_1(%arg0: i32) -> (i32, i32, i32) {
    %c0_i32 = arith.constant 0 : i32
    %c0_i32_0 = arith.constant 0 : i32
    %c0_i32_1 = arith.constant 0 : i32
    %c0_i32_2 = arith.constant 0 : i32
    return %c0_i32, %c0_i32_0, %c0_i32_1 : i32, i32, i32
  }
  func.func @transform_2(%arg0: i32) -> (i32, i32, i32) {
    %c0_i32 = arith.constant 0 : i32
    %c0_i32_0 = arith.constant 0 : i32
    %c0_i32_1 = arith.constant 0 : i32
    %c0_i32_2 = arith.constant 0 : i32
    return %c0_i32, %c0_i32_0, %c0_i32_1 : i32, i32, i32
  }
  func.func @transform_3(%arg0: i32) -> (i32, i32) {
    %c0_i32 = arith.constant 0 : i32
    %c0_i32_0 = arith.constant 0 : i32
    %c0_i32_1 = arith.constant 0 : i32
    return %c0_i32, %c0_i32_0 : i32, i32
  }
  func.func @transform_4(%arg0: i32) -> (i32, i32) {
    %c0_i32 = arith.constant 0 : i32
    %c0_i32_0 = arith.constant 0 : i32
    %c0_i32_1 = arith.constant 0 : i32
    return %c0_i32, %c0_i32_0 : i32, i32
  }
  func.func @transform_5(%arg0: i32) -> (i32, i32) {
    %c0_i32 = arith.constant 0 : i32
    %c0_i32_0 = arith.constant 0 : i32
    %c0_i32_1 = arith.constant 0 : i32
    return %c0_i32, %c0_i32_0 : i32, i32
  }
  func.func @transform_6(%arg0: i32) -> (i32, i32, i32) {
    %c0_i32 = arith.constant 0 : i32
    %c0_i32_0 = arith.constant 0 : i32
    %c0_i32_1 = arith.constant 0 : i32
    return %arg0, %c0_i32, %c0_i32_0 : i32, i32, i32
  }
}

</mosaic_0001>

<llo_original>
// kernel: tpu_custom_call.1
$region0: #{tpu_custom_call.1}
  #allocation0 [shape = 'u32[]', space=smem, size = 0x4, offset = 0x4, fixed_abs, tag = 'smem constant byte address 0x4 - core index']
  #allocation1 [shape = 'u32[144,128]{1,0:T(1,128)}', space=vmem, size = 0x12000, scoped, tag = 'internal scratch']
  %s0 = inlined_call_operand.hbm [shape: f32[4,32,256], index: 0, kind: input, shape index: {}]
  %s1 = inlined_call_operand.hbm [shape: f32[9,32,256], index: 1, kind: input, shape index: {}]
  %s2 = inlined_call_operand.hbm [shape: f32[9,32,256], index: 2, kind: input, shape index: {}]
  %s3 = inlined_call_operand.vmem [shape: f32[32,4], index: 3, kind: input, shape index: {}]
  %s4 = inlined_call_operand.vmem [shape: bf16[32,32], index: 4, kind: input, shape index: {}]
  %s5 = inlined_call_operand.vmem [shape: bf16[32,32], index: 5, kind: input, shape index: {}]
  %s6 = inlined_call_operand.hbm [shape: f32[4,32,256], index: 6, kind: output, shape index: {}]
  %s7 = sld [smem:[#allocation0]]
  $region69: #{tpu_custom_call.1} parent=0
    _
  %s9 = ssub.s32 1, %s7
  %s10 = scalar_select 0, %s9, %s7
  $region1: #{tpu_custom_call.1} parent=0
    #allocation2 [shape = 'u8[131072]{0}', space=vmem, size = 0x20000, scoped, tag = 'input window, operand 0']
    #allocation3 [shape = 's32[2]{0}', space=sflag, size = 0x8, scoped, tag = 'scoped memory for tpu_custom_call.1']
    #allocation4 [shape = 's32[2]{0}', space=sflag, size = 0x8, scoped, tag = 'scoped memory for tpu_custom_call.1']
    #allocation5 [shape = 'u8[294912]{0}', space=vmem, size = 0x48000, scoped, tag = 'input window, operand 1, single buffered']
    #allocation6 [shape = 's32[1]{0}', space=sflag, size = 0x4, scoped, tag = 'scoped memory for tpu_custom_call.1']
    #allocation7 [shape = 'u8[294912]{0}', space=vmem, size = 0x48000, scoped, tag = 'input window, operand 2, single buffered']
    #allocation8 [shape = 'u8[131072]{0}', space=vmem, size = 0x20000, scoped, tag = 'output window, operand 0']
    %11 = vsyncpa [#allocation3], 0
    %s12 = scalar_lea.sflag [#allocation3], 1
    %13 = vsyncpa %s12, 0
    %14 = vsyncpa [#allocation6], 0
    %15 = vsyncpa [#allocation4], 0
    %s16 = scalar_lea.sflag [#allocation4], 1
    %17 = vsyncpa %s16, 0
    loop: start=0, step=1, limit=4
    $region2: #{tpu_custom_call.1} parent=1 // loop_pre_header
      _
    $region3: #{tpu_custom_call.1} parent=1 // loop_header
      %s19 = sphi 0, %s23
      %p20 = scmp.ge.s32.totalorder %s19, 4
      %s29 = sphi 0, %s31
      %s32 = sphi 0, %s29
      %s33 = sphi 0, %s32
      %s49 = sphi 0, %s33
      %s53 = sphi 0, %s53
      %s55 = sphi 0, %s53
      %s56 = sphi 0, %s55
      %s70 = sphi 0, %s56
      %s74 = sphi 0, %s74
      %s76 = sphi 0, %s74
      %s77 = sphi 0, %s76
      %s91 = sphi 0, %s77
      %s95 = sphi 0, %s95
      %s97 = sphi 0, %s95
      %s98 = sphi 0, %s97
      %s112 = sphi 0, %s98
      %s116 = sphi 0, %s116
      %s118 = sphi 0, %s116
      %s119 = sphi 0, %s118
      %s133 = sphi 0, %s119
      %s137 = sphi 0, %s137
      %s139 = sphi 0, %s137
      %s140 = sphi 0, %s139
      %s154 = sphi 0, %s140
      %s160 = sphi 0, %s162
      %s163 = sphi 0, %s160
      %s164 = sphi 0, %s163
      %s180 = sphi 0, %s164
    $region4: #{tpu_custom_call.1} parent=1 // loop_header_branch
      %22 = sbr.rel (%p20) target = $region8
    $region5: #{tpu_custom_call.1} parent=1 // loop_body
      %s24 = ssub.s32 %s19, 1
      %s25 = ssub.s32 %s19, 2
      %s26 = sadd.s32 %s19, 1
      %s27 = ssub.s32 %s19, %s26
      %p28 = scmp.eq.s32.totalorder %s27, 0
      %s30 = sadd.s32 %s29, 1
      %s31 = scalar_select %p28, %s29, %s30
      %p34 = pneg %p28
      %p35 = scmp.eq.s32.totalorder %s19, 1
      %p36 = por %p34, %p35
      %p37 = scmp.ne.s32.totalorder %s29, %s32
      %p38 = scmp.eq.s32.totalorder %s19, 0
      %p39 = por %p37, %p38
      %p40 = scmp.ne.s32.totalorder %s29, %s32
      %p41 = scmp.eq.s32.totalorder %s24, 1
      %p42 = por %p40, %p41
      %p43 = scmp.ne.s32.totalorder %s32, %s33
      %p44 = scmp.eq.s32.totalorder %s24, 0
      %p45 = por %p43, %p44
      %p46 = scmp.ne.s32.totalorder %s32, %s33
      %p47 = scmp.eq.s32.totalorder %s25, 1
      %p48 = por %p46, %p47
      %p50 = scmp.ne.s32.totalorder %s33, %s49
      %p51 = scmp.eq.s32.totalorder %s25, 0
      %p52 = por %p50, %p51
      %s54 = sadd.s32 %s53, 1
      %p57 = scmp.eq.s32.totalorder %s19, 1
      %p58 = scmp.ne.s32.totalorder %s53, %s55
      %p59 = scmp.eq.s32.totalorder %s19, 0
      %p60 = por %p58, %p59
      %p61 = scmp.ne.s32.totalorder %s53, %s55
      %p62 = scmp.eq.s32.totalorder %s24, 1
      %p63 = por %p61, %p62
      %p64 = scmp.ne.s32.totalorder %s55, %s56
      %p65 = scmp.eq.s32.totalorder %s24, 0
      %p66 = por %p64, %p65
      %p67 = scmp.ne.s32.totalorder %s55, %s56
      %p68 = scmp.eq.s32.totalorder %s25, 1
      %p69 = por %p67, %p68
      %p71 = scmp.ne.s32.totalorder %s56, %s70
      %p72 = scmp.eq.s32.totalorder %s25, 0
      %p73 = por %p71, %p72
      %s75 = sadd.s32 %s74, 1
      %p78 = scmp.eq.s32.totalorder %s19, 1
      %p79 = scmp.ne.s32.totalorder %s74, %s76
      %p80 = scmp.eq.s32.totalorder %s19, 0
      %p81 = por %p79, %p80
      %p82 = scmp.ne.s32.totalorder %s74, %s76
      %p83 = scmp.eq.s32.totalorder %s24, 1
      %p84 = por %p82, %p83
      %p85 = scmp.ne.s32.totalorder %s76, %s77
      %p86 = scmp.eq.s32.totalorder %s24, 0
      %p87 = por %p85, %p86
      %p88 = scmp.ne.s32.totalorder %s76, %s77
      %p89 = scmp.eq.s32.totalorder %s25, 1
      %p90 = por %p88, %p89
      %p92 = scmp.ne.s32.totalorder %s77, %s91
      %p93 = scmp.eq.s32.totalorder %s25, 0
      %p94 = por %p92, %p93
      %s96 = sadd.s32 %s95, 1
      %p99 = scmp.eq.s32.totalorder %s19, 1
      %p100 = scmp.ne.s32.totalorder %s95, %s97
      %p101 = scmp.eq.s32.totalorder %s19, 0
      %p102 = por %p100, %p101
      %p103 = scmp.ne.s32.totalorder %s95, %s97
      %p104 = scmp.eq.s32.totalorder %s24, 1
      %p105 = por %p103, %p104
      %p106 = scmp.ne.s32.totalorder %s97, %s98
      %p107 = scmp.eq.s32.totalorder %s24, 0
      %p108 = por %p106, %p107
      %p109 = scmp.ne.s32.totalorder %s97, %s98
      %p110 = scmp.eq.s32.totalorder %s25, 1
      %p111 = por %p109, %p110
      %p113 = scmp.ne.s32.totalorder %s98, %s112
      %p114 = scmp.eq.s32.totalorder %s25, 0
      %p115 = por %p113, %p114
      %s117 = sadd.s32 %s116, 1
      %p120 = scmp.eq.s32.totalorder %s19, 1
      %p121 = scmp.ne.s32.totalorder %s116, %s118
      %p122 = scmp.eq.s32.totalorder %s19, 0
      %p123 = por %p121, %p122
      %p124 = scmp.ne.s32.totalorder %s116, %s118
      %p125 = scmp.eq.s32.totalorder %s24, 1
      %p126 = por %p124, %p125
      %p127 = scmp.ne.s32.totalorder %s118, %s119
      %p128 = scmp.eq.s32.totalorder %s24, 0
      %p129 = por %p127, %p128
      %p130 = scmp.ne.s32.totalorder %s118, %s119
      %p131 = scmp.eq.s32.totalorder %s25, 1
      %p132 = por %p130, %p131
      %p134 = scmp.ne.s32.totalorder %s119, %s133
      %p135 = scmp.eq.s32.totalorder %s25, 0
      %p136 = por %p134, %p135
      %s138 = sadd.s32 %s137, 1
      %p141 = scmp.eq.s32.totalorder %s19, 1
      %p142 = scmp.ne.s32.totalorder %s137, %s139
      %p143 = scmp.eq.s32.totalorder %s19, 0
      %p144 = por %p142, %p143
      %p145 = scmp.ne.s32.totalorder %s137, %s139
      %p146 = scmp.eq.s32.totalorder %s24, 1
      %p147 = por %p145, %p146
      %p148 = scmp.ne.s32.totalorder %s139, %s140
      %p149 = scmp.eq.s32.totalorder %s24, 0
      %p150 = por %p148, %p149
      %p151 = scmp.ne.s32.totalorder %s139, %s140
      %p152 = scmp.eq.s32.totalorder %s25, 1
      %p153 = por %p151, %p152
      %p155 = scmp.ne.s32.totalorder %s140, %s154
      %p156 = scmp.eq.s32.totalorder %s25, 0
      %p157 = por %p155, %p156
      %s158 = ssub.s32 %s19, %s26
      %p159 = scmp.eq.s32.totalorder %s158, 0
      %s161 = sadd.s32 %s160, 1
      %s162 = scalar_select %p159, %s160, %s161
      %p165 = pneg %p159
      %p166 = scmp.eq.s32.totalorder %s19, 1
      %p167 = por %p165, %p166
      %p168 = scmp.ne.s32.totalorder %s160, %s163
      %p169 = scmp.eq.s32.totalorder %s19, 0
      %p170 = por %p168, %p169
      %p171 = scmp.ne.s32.totalorder %s160, %s163
      %p172 = scmp.eq.s32.totalorder %s24, 1
      %p173 = por %p171, %p172
      %p174 = scmp.ne.s32.totalorder %s163, %s164
      %p175 = scmp.eq.s32.totalorder %s24, 0
      %p176 = por %p174, %p175
      %p177 = scmp.ne.s32.totalorder %s163, %s164
      %p178 = scmp.eq.s32.totalorder %s25, 1
      %p179 = por %p177, %p178
      %p181 = scmp.ne.s32.totalorder %s164, %s180
      %p182 = scmp.eq.s32.totalorder %s25, 0
      %p183 = por %p181, %p182
      %p184 = scmp.le.s32.totalorder 1, %s19
      %p185 = scmp.lt.s32.totalorder %s19, 3
      %p186 = pnand %p184, %p185
      %p187 = pneg %p186
      // Predicated region
      $region9: #{tpu_custom_call.1} parent=5 // pred_check
        _
      $region10: #{tpu_custom_call.1} parent=5 // pred_check_branch
        %189 = sbr.rel (%p186) target = $region12
      $region11: #{tpu_custom_call.1} parent=5 // pred_region
        %s190 = ssub.s32 %s19, 1
        // Predicated region
        $region13: #{tpu_custom_call.1} parent=11 // pred_check
          %p191 = pneg %p66
        $region14: #{tpu_custom_call.1} parent=11 // pred_check_branch
          %193 = sbr.rel (%p191) target = $region16
        $region15: #{tpu_custom_call.1} parent=11 // pred_region
          %s195 = ssub.s32 9216, 9216
          %196 = vsyncadd [#allocation6], %s195
          %s197 = sshll.u32 [#allocation5], 4
          %s198 = int_to_ptr.vmem [resolvable:$true] %s197
          %203 = dma.hbm_to_vmem [thread:$0]  %s1, 9216, %s198, [#allocation6], 256, 256, 16
        $region16: #{tpu_custom_call.1} parent=11 // pred_fallthru
          _
        // Predicated region
        $region17: #{tpu_custom_call.1} parent=11 // pred_check
          %p204 = pneg %p87
        $region18: #{tpu_custom_call.1} parent=11 // pred_check_branch
          %206 = sbr.rel (%p204) target = $region20
        $region19: #{tpu_custom_call.1} parent=11 // pred_region
          %s208 = ssub.s32 9216, 9216
          %209 = vsyncadd [#allocation6], %s208
          %s210 = sshll.u32 [#allocation7], 4
          %s211 = int_to_ptr.vmem [resolvable:$true] %s210
          %216 = dma.hbm_to_vmem [thread:$0]  %s2, 9216, %s211, [#allocation6], 256, 256, 16
        $region20: #{tpu_custom_call.1} parent=11 // pred_fallthru
          _
        // Predicated region
        $region21: #{tpu_custom_call.1} parent=11 // pred_check
          %p217 = pneg %p108
        $region22: #{tpu_custom_call.1} parent=11 // pred_check_branch
          %219 = sbr.rel (%p217) target = $region24
        $region23: #{tpu_custom_call.1} parent=11 // pred_region
          _
        $region24: #{tpu_custom_call.1} parent=11 // pred_fallthru
          _
        // Predicated region
        $region25: #{tpu_custom_call.1} parent=11 // pred_check
          %p220 = pneg %p129
        $region26: #{tpu_custom_call.1} parent=11 // pred_check_branch
          %222 = sbr.rel (%p220) target = $region28
        $region27: #{tpu_custom_call.1} parent=11 // pred_region
          _
        $region28: #{tpu_custom_call.1} parent=11 // pred_fallthru
          _
        // Predicated region
        $region29: #{tpu_custom_call.1} parent=11 // pred_check
          %p223 = pneg %p150
        $region30: #{tpu_custom_call.1} parent=11 // pred_check_branch
          %225 = sbr.rel (%p223) target = $region32
        $region31: #{tpu_custom_call.1} parent=11 // pred_region
          _
        $region32: #{tpu_custom_call.1} parent=11 // pred_fallthru
          _
      $region12: #{tpu_custom_call.1} parent=5 // pred_fallthru
        _
      %p226 = scmp.lt.s32.totalorder %s19, 2
      // Predicated region
      $region33: #{tpu_custom_call.1} parent=5 // pred_check
        %p227 = pneg %p226
      $region34: #{tpu_custom_call.1} parent=5 // pred_check_branch
        %229 = sbr.rel (%p227) target = $region36
      $region35: #{tpu_custom_call.1} parent=5 // pred_region
        // Predicated region
        $region37: #{tpu_custom_call.1} parent=35 // pred_check
          %p230 = pneg %p39
        $region38: #{tpu_custom_call.1} parent=35 // pred_check_branch
          %232 = sbr.rel (%p230) target = $region40
        $region39: #{tpu_custom_call.1} parent=35 // pred_region
          %s233 = sand.u32 %s29, 1
          %s234 = scalar_lea.sflag [#allocation3], %s233
          %s235 = sand.u32 %s29, 1
          %s236 = smul.addr %s235, 128
          %s237 = scalar_lea.vmem [#allocation2], %s236
          %s238 = smul.u32 2, %s19
          %s240 = ssub.s32 2048, 2048
          %241 = vsyncadd %s234, %s240
          %s242 = smul.addr %s238, 8
          %s243 = smul.addr %s242, 128
          %s244 = scalar_lea.hbm %s0, %s243
          %s245 = sshll.u32 %s237, 4
          %s246 = int_to_ptr.vmem [resolvable:$true] %s245
          %251 = dma.hbm_to_vmem [thread:$0]  %s244, 2048, %s246, %s234, 256, 256, 16
        $region40: #{tpu_custom_call.1} parent=35 // pred_fallthru
          _
      $region36: #{tpu_custom_call.1} parent=5 // pred_fallthru
        _
      %p252 = scmp.le.s32.totalorder 1, %s19
      %p253 = scmp.lt.s32.totalorder %s19, 3
      %p254 = pnand %p252, %p253
      %p255 = pneg %p254
      // Predicated region
      $region41: #{tpu_custom_call.1} parent=5 // pred_check
        _
      $region42: #{tpu_custom_call.1} parent=5 // pred_check_branch
        %257 = sbr.rel (%p254) target = $region44
      $region43: #{tpu_custom_call.1} parent=5 // pred_region
        %s258 = ssub.s32 %s19, 1
        %s259 = sand.u32 %s32, 1
        %s260 = scalar_lea.sflag [#allocation3], %s259
        %s261 = sand.u32 %s32, 1
        %s262 = smul.addr %s261, 128
        %s263 = scalar_lea.vmem [#allocation2], %s262
        // Predicated region
        $region45: #{tpu_custom_call.1} parent=43 // pred_check
          %p264 = pneg %p45
        $region46: #{tpu_custom_call.1} parent=43 // pred_check_branch
          %266 = sbr.rel (%p264) target = $region48
        $region47: #{tpu_custom_call.1} parent=43 // pred_region
          %267 = dma.done %s260, 2048
        $region48: #{tpu_custom_call.1} parent=43 // pred_fallthru
          _
        // Predicated region
        $region49: #{tpu_custom_call.1} parent=43 // pred_check
          %p268 = pneg %p66
        $region50: #{tpu_custom_call.1} parent=43 // pred_check_branch
          %270 = sbr.rel (%p268) target = $region52
        $region51: #{tpu_custom_call.1} parent=43 // pred_region
          %271 = dma.done [#allocation6], 9216
        $region52: #{tpu_custom_call.1} parent=43 // pred_fallthru
          _
        // Predicated region
        $region53: #{tpu_custom_call.1} parent=43 // pred_check
          %p272 = pneg %p87
        $region54: #{tpu_custom_call.1} parent=43 // pred_check_branch
          %274 = sbr.rel (%p272) target = $region56
        $region55: #{tpu_custom_call.1} parent=43 // pred_region
          %275 = dma.done [#allocation6], 9216
        $region56: #{tpu_custom_call.1} parent=43 // pred_fallthru
          _
        %s276 = sand.u32 %s32, 1
        %s277 = scalar_lea.sflag [#allocation3], %s276
        %s278 = sand.u32 %s32, 1
        %s279 = smul.addr %s278, 128
        %s280 = scalar_lea.vmem [#allocation2], %s279
        %p281 = pneg %p45
        %p282 = pneg %p42
        %p283 = pneg %p66
        %p284 = pneg %p63
        %p285 = pneg %p87
        %p286 = pneg %p84
        %p287 = pneg %p108
        %p288 = pneg %p105
        %p289 = pneg %p129
        %p290 = pneg %p126
        %p291 = pneg %p150
        %p292 = pneg %p147
        %p293 = pneg %p176
        %p294 = pneg %p173
        %s295 = sand.u32 %s163, 1
        %s296 = scalar_lea.sflag [#allocation4], %s295
        %s297 = sand.u32 %s163, 1
        %s298 = smul.addr %s297, 128
        %s299 = scalar_lea.vmem [#allocation8], %s298
        %s300 = smul.u32 2, %s24
        %s301 = smul.u32 2, %s24
        %v303 = vld [vmem:[%s3] sm:$0xff]
        %v304 = vld [vmem:[%s3 + $0x8] sm:$0xff]
        %v305 = vld [vmem:[%s3 + $0x10] sm:$0xff]
        %v306 = vld [vmem:[%s3 + $0x18] sm:$0xff]
        %v307 = vld [vmem:[%s4] sm:$0xf]
        %v308 = vld [vmem:[%s4 + $0x4] sm:$0xf]
        %v309 = vld [vmem:[%s4 + $0x8] sm:$0xf]
        %v310 = vld [vmem:[%s4 + $0xc] sm:$0xf]
        %v311 = vld [vmem:[%s5] sm:$0xf]
        %v312 = vld [vmem:[%s5 + $0x4] sm:$0xf]
        %v313 = vld [vmem:[%s5 + $0x8] sm:$0xf]
        %v314 = vld [vmem:[%s5 + $0xc] sm:$0xf]
        %v315 = vld [vmem:[%s263] sm:$0xff]
        %v316 = vld [vmem:[%s263 + $0x8] sm:$0xff]
        %v317 = vld [vmem:[%s263 + $0x10] sm:$0xff]
        %v318 = vld [vmem:[%s263 + $0x18] sm:$0xff]
        %v319 = vld [vmem:[%s263 + $0x20] sm:$0xff]
        %v320 = vld [vmem:[%s263 + $0x28] sm:$0xff]
        %v321 = vld [vmem:[%s263 + $0x30] sm:$0xff]
        %v322 = vld [vmem:[%s263 + $0x38] sm:$0xff]
        %s323 = scalar_lea.vmem [#allocation5], 256
        %v324 = vld [vmem:[%s323] sm:$0xff]
        %v325 = vld [vmem:[%s323 + $0x8] sm:$0xff]
        %v326 = vld [vmem:[%s323 + $0x10] sm:$0xff]
        %v327 = vld [vmem:[%s323 + $0x18] sm:$0xff]
        %v328 = vld [vmem:[%s323 + $0x20] sm:$0xff]
        %v329 = vld [vmem:[%s323 + $0x28] sm:$0xff]
        %v330 = vld [vmem:[%s323 + $0x30] sm:$0xff]
        %v331 = vld [vmem:[%s323 + $0x38] sm:$0xff]
        %v332 = vmul.f32 %v315, %v324
        %v333 = vmul.f32 %v316, %v325
        %v334 = vmul.f32 %v317, %v326
        %v335 = vmul.f32 %v318, %v327
        %v336 = vmul.f32 %v319, %v328
        %v337 = vmul.f32 %v320, %v329
        %v338 = vmul.f32 %v321, %v330
        %v339 = vmul.f32 %v322, %v331
        %340 = vrot.lane.b32.xlu0 %v315, 17
        %v341 = vpop.permute.xlu0 %340
        %342 = vrot.lane.b32.xlu0 %v317, 17
        %v343 = vpop.permute.xlu0 %342
        %344 = vrot.lane.b32.xlu0 %v319, 17
        %v345 = vpop.permute.xlu0 %344
        %346 = vrot.lane.b32.xlu0 %v321, 17
        %v347 = vpop.permute.xlu0 %346
        %348 = vrot.lane.b32.xlu0 %v316, 17
        %v349 = vpop.permute.xlu0 %348
        %350 = vrot.lane.b32.xlu0 %v318, 17
        %v351 = vpop.permute.xlu0 %350
        %352 = vrot.lane.b32.xlu0 %v320, 17
        %v353 = vpop.permute.xlu0 %352
        %354 = vrot.lane.b32.xlu0 %v322, 17
        %v355 = vpop.permute.xlu0 %354
        %v356 = vlaneseq
        %v357 = vand.u32 %v356, 127
        %vm358 = vcmp.lt.s32.totalorder %v357, 17
        %v359 = vsel %vm358, %v341, %v349
        %v360 = vsel %vm358, %v343, %v351
        %v361 = vsel %vm358, %v345, %v353
        %v362 = vsel %vm358, %v347, %v355
        %v363 = vsel %vm358, %v349, %v341
        %v364 = vsel %vm358, %v351, %v343
        %v365 = vsel %vm358, %v353, %v345
        %v366 = vsel %vm358, %v355, %v347
        %v367 = vld [vmem:[#allocation5] sm:$0xff]
        %v368 = vld [vmem:[#allocation5 + $0x8] sm:$0xff]
        %v369 = vld [vmem:[#allocation5 + $0x10] sm:$0xff]
        %v370 = vld [vmem:[#allocation5 + $0x18] sm:$0xff]
        %v371 = vld [vmem:[#allocation5 + $0x20] sm:$0xff]
        %v372 = vld [vmem:[#allocation5 + $0x28] sm:$0xff]
        %v373 = vld [vmem:[#allocation5 + $0x30] sm:$0xff]
        %v374 = vld [vmem:[#allocation5 + $0x38] sm:$0xff]
        %v375 = vmul.f32 %v363, %v367
        %v376 = vmul.f32 %v359, %v368
        %v377 = vmul.f32 %v364, %v369
        %v378 = vmul.f32 %v360, %v370
        %v379 = vmul.f32 %v365, %v371
        %v380 = vmul.f32 %v361, %v372
        %v381 = vmul.f32 %v366, %v373
        %v382 = vmul.f32 %v362, %v374
        %v383 = vadd.f32 %v332, %v375
        %v384 = vadd.f32 %v333, %v376
        %v385 = vadd.f32 %v334, %v377
        %v386 = vadd.f32 %v335, %v378
        %v387 = vadd.f32 %v336, %v379
        %v388 = vadd.f32 %v337, %v380
        %v389 = vadd.f32 %v338, %v381
        %v390 = vadd.f32 %v339, %v382
        %391 = vrot.lane.b32.xlu0 %v315, 16
        %v392 = vpop.permute.xlu0 %391
        %393 = vrot.lane.b32.xlu0 %v317, 16
        %v394 = vpop.permute.xlu0 %393
        %395 = vrot.lane.b32.xlu0 %v319, 16
        %v396 = vpop.permute.xlu0 %395
        %397 = vrot.lane.b32.xlu0 %v321, 16
        %v398 = vpop.permute.xlu0 %397
        %399 = vrot.lane.b32.xlu0 %v316, 16
        %v400 = vpop.permute.xlu0 %399
        %401 = vrot.lane.b32.xlu0 %v318, 16
        %v402 = vpop.permute.xlu0 %401
        %403 = vrot.lane.b32.xlu0 %v320, 16
        %v404 = vpop.permute.xlu0 %403
        %405 = vrot.lane.b32.xlu0 %v322, 16
        %v406 = vpop.permute.xlu0 %405
        %vm407 = vcmp.lt.s32.totalorder %v357, 16
        %v408 = vsel %vm407, %v392, %v400
        %v409 = vsel %vm407, %v394, %v402
        %v410 = vsel %vm407, %v396, %v404
        %v411 = vsel %vm407, %v398, %v406
        %v412 = vsel %vm407, %v400, %v392
        %v413 = vsel %vm407, %v402, %v394
        %v414 = vsel %vm407, %v404, %v396
        %v415 = vsel %vm407, %v406, %v398
        %s416 = scalar_lea.vmem [#allocation5], 64
        %v417 = vld [vmem:[%s416] sm:$0xff]
        %v418 = vld [vmem:[%s416 + $0x8] sm:$0xff]
        %v419 = vld [vmem:[%s416 + $0x10] sm:$0xff]
        %v420 = vld [vmem:[%s416 + $0x18] sm:$0xff]
        %v421 = vld [vmem:[%s416 + $0x20] sm:$0xff]
        %v422 = vld [vmem:[%s416 + $0x28] sm:$0xff]
        %v423 = vld [vmem:[%s416 + $0x30] sm:$0xff]
        %v424 = vld [vmem:[%s416 + $0x38] sm:$0xff]
        %v425 = vmul.f32 %v412, %v417
        %v426 = vmul.f32 %v408, %v418
        %v427 = vmul.f32 %v413, %v419
        %v428 = vmul.f32 %v409, %v420
        %v429 = vmul.f32 %v414, %v421
        %v430 = vmul.f32 %v410, %v422
        %v431 = vmul.f32 %v415, %v423
        %v432 = vmul.f32 %v411, %v424
        %v433 = vadd.f32 %v383, %v425
        %v434 = vadd.f32 %v384, %v426
        %v435 = vadd.f32 %v385, %v427
        %v436 = vadd.f32 %v386, %v428
        %v437 = vadd.f32 %v387, %v429
        %v438 = vadd.f32 %v388, %v430
        %v439 = vadd.f32 %v389, %v431
        %v440 = vadd.f32 %v390, %v432
        %441 = vrot.lane.b32.xlu0 %v315, 15
        %v442 = vpop.permute.xlu0 %441
        %443 = vrot.lane.b32.xlu0 %v317, 15
        %v444 = vpop.permute.xlu0 %443
        %445 = vrot.lane.b32.xlu0 %v319, 15
        %v446 = vpop.permute.xlu0 %445
        %447 = vrot.lane.b32.xlu0 %v321, 15
        %v448 = vpop.permute.xlu0 %447
        %449 = vrot.lane.b32.xlu0 %v316, 15
        %v450 = vpop.permute.xlu0 %449
        %451 = vrot.lane.b32.xlu0 %v318, 15
        %v452 = vpop.permute.xlu0 %451
        %453 = vrot.lane.b32.xlu0 %v320, 15
        %v454 = vpop.permute.xlu0 %453
        %455 = vrot.lane.b32.xlu0 %v322, 15
        %v456 = vpop.permute.xlu0 %455
        %vm457 = vcmp.lt.s32.totalorder %v357, 15
        %v458 = vsel %vm457, %v442, %v450
        %v459 = vsel %vm457, %v444, %v452
        %v460 = vsel %vm457, %v446, %v454
        %v461 = vsel %vm457, %v448, %v456
        %v462 = vsel %vm457, %v450, %v442
        %v463 = vsel %vm457, %v452, %v444
        %v464 = vsel %vm457, %v454, %v446
        %v465 = vsel %vm457, %v456, %v448
        %s466 = scalar_lea.vmem [#allocation5], 128
        %v467 = vld [vmem:[%s466] sm:$0xff]
        %v468 = vld [vmem:[%s466 + $0x8] sm:$0xff]
        %v469 = vld [vmem:[%s466 + $0x10] sm:$0xff]
        %v470 = vld [vmem:[%s466 + $0x18] sm:$0xff]
        %v471 = vld [vmem:[%s466 + $0x20] sm:$0xff]
        %v472 = vld [vmem:[%s466 + $0x28] sm:$0xff]
        %v473 = vld [vmem:[%s466 + $0x30] sm:$0xff]
        %v474 = vld [vmem:[%s466 + $0x38] sm:$0xff]
        %v475 = vmul.f32 %v462, %v467
        %v476 = vmul.f32 %v458, %v468
        %v477 = vmul.f32 %v463, %v469
        %v478 = vmul.f32 %v459, %v470
        %v479 = vmul.f32 %v464, %v471
        %v480 = vmul.f32 %v460, %v472
        %v481 = vmul.f32 %v465, %v473
        %v482 = vmul.f32 %v461, %v474
        %v483 = vadd.f32 %v433, %v475
        %v484 = vadd.f32 %v434, %v476
        %v485 = vadd.f32 %v435, %v477
        %v486 = vadd.f32 %v436, %v478
        %v487 = vadd.f32 %v437, %v479
        %v488 = vadd.f32 %v438, %v480
        %v489 = vadd.f32 %v439, %v481
        %v490 = vadd.f32 %v440, %v482
        %491 = vrot.lane.b32.xlu0 %v315, 1
        %v492 = vpop.permute.xlu0 %491
        %493 = vrot.lane.b32.xlu0 %v317, 1
        %v494 = vpop.permute.xlu0 %493
        %495 = vrot.lane.b32.xlu0 %v319, 1
        %v496 = vpop.permute.xlu0 %495
        %497 = vrot.lane.b32.xlu0 %v321, 1
        %v498 = vpop.permute.xlu0 %497
        %499 = vrot.lane.b32.xlu0 %v316, 1
        %v500 = vpop.permute.xlu0 %499
        %501 = vrot.lane.b32.xlu0 %v318, 1
        %v502 = vpop.permute.xlu0 %501
        %503 = vrot.lane.b32.xlu0 %v320, 1
        %v504 = vpop.permute.xlu0 %503
        %505 = vrot.lane.b32.xlu0 %v322, 1
        %v506 = vpop.permute.xlu0 %505
        %vm507 = vcmp.lt.s32.totalorder %v357, 1
        %v508 = vsel %vm507, %v492, %v500
        %v509 = vsel %vm507, %v494, %v502
        %v510 = vsel %vm507, %v496, %v504
        %v511 = vsel %vm507, %v498, %v506
        %v512 = vsel %vm507, %v500, %v492
        %v513 = vsel %vm507, %v502, %v494
        %v514 = vsel %vm507, %v504, %v496
        %v515 = vsel %vm507, %v506, %v498
        %s516 = scalar_lea.vmem [#allocation5], 192
        %v517 = vld [vmem:[%s516] sm:$0xff]
        %v518 = vld [vmem:[%s516 + $0x8] sm:$0xff]
        %v519 = vld [vmem:[%s516 + $0x10] sm:$0xff]
        %v520 = vld [vmem:[%s516 + $0x18] sm:$0xff]
        %v521 = vld [vmem:[%s516 + $0x20] sm:$0xff]
        %v522 = vld [vmem:[%s516 + $0x28] sm:$0xff]
        %v523 = vld [vmem:[%s516 + $0x30] sm:$0xff]
        %v524 = vld [vmem:[%s516 + $0x38] sm:$0xff]
        %v525 = vmul.f32 %v512, %v517
        %v526 = vmul.f32 %v508, %v518
        %v527 = vmul.f32 %v513, %v519
        %v528 = vmul.f32 %v509, %v520
        %v529 = vmul.f32 %v514, %v521
        %v530 = vmul.f32 %v510, %v522
        %v531 = vmul.f32 %v515, %v523
        %v532 = vmul.f32 %v511, %v524
        %v533 = vadd.f32 %v483, %v525
        %v534 = vadd.f32 %v484, %v526
        %v535 = vadd.f32 %v485, %v527
        %v536 = vadd.f32 %v486, %v528
        %v537 = vadd.f32 %v487, %v529
        %v538 = vadd.f32 %v488, %v530
        %v539 = vadd.f32 %v489, %v531
        %v540 = vadd.f32 %v490, %v532
        %541 = vrot.lane.b32.xlu0 %v315, 127
        %v542 = vpop.permute.xlu0 %541
        %543 = vrot.lane.b32.xlu0 %v317, 127
        %v544 = vpop.permute.xlu0 %543
        %545 = vrot.lane.b32.xlu0 %v319, 127
        %v546 = vpop.permute.xlu0 %545
        %547 = vrot.lane.b32.xlu0 %v321, 127
        %v548 = vpop.permute.xlu0 %547
        %549 = vrot.lane.b32.xlu0 %v316, 127
        %v550 = vpop.permute.xlu0 %549
        %551 = vrot.lane.b32.xlu0 %v318, 127
        %v552 = vpop.permute.xlu0 %551
        %553 = vrot.lane.b32.xlu0 %v320, 127
        %v554 = vpop.permute.xlu0 %553
        %555 = vrot.lane.b32.xlu0 %v322, 127
        %v556 = vpop.permute.xlu0 %555
        %vm557 = vcmp.lt.s32.totalorder %v357, 127
        %v558 = vsel %vm557, %v542, %v550
        %v559 = vsel %vm557, %v544, %v552
        %v560 = vsel %vm557, %v546, %v554
        %v561 = vsel %vm557, %v548, %v556
        %v562 = vsel %vm557, %v550, %v542
        %v563 = vsel %vm557, %v552, %v544
        %v564 = vsel %vm557, %v554, %v546
        %v565 = vsel %vm557, %v556, %v548
        %s566 = scalar_lea.vmem [#allocation5], 320
        %v567 = vld [vmem:[%s566] sm:$0xff]
        %v568 = vld [vmem:[%s566 + $0x8] sm:$0xff]
        %v569 = vld [vmem:[%s566 + $0x10] sm:$0xff]
        %v570 = vld [vmem:[%s566 + $0x18] sm:$0xff]
        %v571 = vld [vmem:[%s566 + $0x20] sm:$0xff]
        %v572 = vld [vmem:[%s566 + $0x28] sm:$0xff]
        %v573 = vld [vmem:[%s566 + $0x30] sm:$0xff]
        %v574 = vld [vmem:[%s566 + $0x38] sm:$0xff]
        %v575 = vmul.f32 %v558, %v567
        %v576 = vmul.f32 %v562, %v568
        %v577 = vmul.f32 %v559, %v569
        %v578 = vmul.f32 %v563, %v570
        %v579 = vmul.f32 %v560, %v571
        %v580 = vmul.f32 %v564, %v572
        %v581 = vmul.f32 %v561, %v573
        %v582 = vmul.f32 %v565, %v574
        %v583 = vadd.f32 %v533, %v575
        %v584 = vadd.f32 %v534, %v576
        %v585 = vadd.f32 %v535, %v577
        %v586 = vadd.f32 %v536, %v578
        %v587 = vadd.f32 %v537, %v579
        %v588 = vadd.f32 %v538, %v580
        %v589 = vadd.f32 %v539, %v581
        %v590 = vadd.f32 %v540, %v582
        %591 = vrot.lane.b32.xlu0 %v315, 113
        %v592 = vpop.permute.xlu0 %591
        %593 = vrot.lane.b32.xlu0 %v317, 113
        %v594 = vpop.permute.xlu0 %593
        %595 = vrot.lane.b32.xlu0 %v319, 113
        %v596 = vpop.permute.xlu0 %595
        %597 = vrot.lane.b32.xlu0 %v321, 113
        %v598 = vpop.permute.xlu0 %597
        %599 = vrot.lane.b32.xlu0 %v316, 113
        %v600 = vpop.permute.xlu0 %599
        %601 = vrot.lane.b32.xlu0 %v318, 113
        %v602 = vpop.permute.xlu0 %601
        %603 = vrot.lane.b32.xlu0 %v320, 113
        %v604 = vpop.permute.xlu0 %603
        %605 = vrot.lane.b32.xlu0 %v322, 113
        %v606 = vpop.permute.xlu0 %605
        %vm607 = vcmp.lt.s32.totalorder %v357, 113
        %v608 = vsel %vm607, %v592, %v600
        %v609 = vsel %vm607, %v594, %v602
        %v610 = vsel %vm607, %v596, %v604
        %v611 = vsel %vm607, %v598, %v606
        %v612 = vsel %vm607, %v600, %v592
        %v613 = vsel %vm607, %v602, %v594
        %v614 = vsel %vm607, %v604, %v596
        %v615 = vsel %vm607, %v606, %v598
        %s616 = scalar_lea.vmem [#allocation5], 384
        %v617 = vld [vmem:[%s616] sm:$0xff]
        %v618 = vld [vmem:[%s616 + $0x8] sm:$0xff]
        %v619 = vld [vmem:[%s616 + $0x10] sm:$0xff]
        %v620 = vld [vmem:[%s616 + $0x18] sm:$0xff]
        %v621 = vld [vmem:[%s616 + $0x20] sm:$0xff]
        %v622 = vld [vmem:[%s616 + $0x28] sm:$0xff]
        %v623 = vld [vmem:[%s616 + $0x30] sm:$0xff]
        %v624 = vld [vmem:[%s616 + $0x38] sm:$0xff]
        %v625 = vmul.f32 %v608, %v617
        %v626 = vmul.f32 %v612, %v618
        %v627 = vmul.f32 %v609, %v619
        %v628 = vmul.f32 %v613, %v620
        %v629 = vmul.f32 %v610, %v621
        %v630 = vmul.f32 %v614, %v622
        %v631 = vmul.f32 %v611, %v623
        %v632 = vmul.f32 %v615, %v624
        %v633 = vadd.f32 %v583, %v625
        %v634 = vadd.f32 %v584, %v626
        %v635 = vadd.f32 %v585, %v627
        %v636 = vadd.f32 %v586, %v628
        %v637 = vadd.f32 %v587, %v629
        %v638 = vadd.f32 %v588, %v630
        %v639 = vadd.f32 %v589, %v631
        %v640 = vadd.f32 %v590, %v632
        %641 = vrot.lane.b32.xlu0 %v315, 112
        %v642 = vpop.permute.xlu0 %641
        %643 = vrot.lane.b32.xlu0 %v317, 112
        %v644 = vpop.permute.xlu0 %643
        %645 = vrot.lane.b32.xlu0 %v319, 112
        %v646 = vpop.permute.xlu0 %645
        %647 = vrot.lane.b32.xlu0 %v321, 112
        %v648 = vpop.permute.xlu0 %647
        %649 = vrot.lane.b32.xlu0 %v316, 112
        %v650 = vpop.permute.xlu0 %649
        %651 = vrot.lane.b32.xlu0 %v318, 112
        %v652 = vpop.permute.xlu0 %651
        %653 = vrot.lane.b32.xlu0 %v320, 112
        %v654 = vpop.permute.xlu0 %653
        %655 = vrot.lane.b32.xlu0 %v322, 112
        %v656 = vpop.permute.xlu0 %655
        %vm657 = vcmp.lt.s32.totalorder %v357, 112
        %v658 = vsel %vm657, %v642, %v650
        %v659 = vsel %vm657, %v644, %v652
        %v660 = vsel %vm657, %v646, %v654
        %v661 = vsel %vm657, %v648, %v656
        %v662 = vsel %vm657, %v650, %v642
        %v663 = vsel %vm657, %v652, %v644
        %v664 = vsel %vm657, %v654, %v646
        %v665 = vsel %vm657, %v656, %v648
        %s666 = scalar_lea.vmem [#allocation5], 448
        %v667 = vld [vmem:[%s666] sm:$0xff]
        %v668 = vld [vmem:[%s666 + $0x8] sm:$0xff]
        %v669 = vld [vmem:[%s666 + $0x10] sm:$0xff]
        %v670 = vld [vmem:[%s666 + $0x18] sm:$0xff]
        %v671 = vld [vmem:[%s666 + $0x20] sm:$0xff]
        %v672 = vld [vmem:[%s666 + $0x28] sm:$0xff]
        %v673 = vld [vmem:[%s666 + $0x30] sm:$0xff]
        %v674 = vld [vmem:[%s666 + $0x38] sm:$0xff]
        %v675 = vmul.f32 %v658, %v667
        %v676 = vmul.f32 %v662, %v668
        %v677 = vmul.f32 %v659, %v669
        %v678 = vmul.f32 %v663, %v670
        %v679 = vmul.f32 %v660, %v671
        %v680 = vmul.f32 %v664, %v672
        %v681 = vmul.f32 %v661, %v673
        %v682 = vmul.f32 %v665, %v674
        %v683 = vadd.f32 %v633, %v675
        %v684 = vadd.f32 %v634, %v676
        %v685 = vadd.f32 %v635, %v677
        %v686 = vadd.f32 %v636, %v678
        %v687 = vadd.f32 %v637, %v679
        %v688 = vadd.f32 %v638, %v680
        %v689 = vadd.f32 %v639, %v681
        %v690 = vadd.f32 %v640, %v682
        %691 = vrot.lane.b32.xlu0 %v315, 111
        %v692 = vpop.permute.xlu0 %691
        %693 = vrot.lane.b32.xlu0 %v317, 111
        %v694 = vpop.permute.xlu0 %693
        %695 = vrot.lane.b32.xlu0 %v319, 111
        %v696 = vpop.permute.xlu0 %695
        %697 = vrot.lane.b32.xlu0 %v321, 111
        %v698 = vpop.permute.xlu0 %697
        %699 = vrot.lane.b32.xlu0 %v316, 111
        %v700 = vpop.permute.xlu0 %699
        %701 = vrot.lane.b32.xlu0 %v318, 111
        %v702 = vpop.permute.xlu0 %701
        %703 = vrot.lane.b32.xlu0 %v320, 111
        %v704 = vpop.permute.xlu0 %703
        %705 = vrot.lane.b32.xlu0 %v322, 111
        %v706 = vpop.permute.xlu0 %705
        %vm707 = vcmp.lt.s32.totalorder %v357, 111
        %v708 = vsel %vm707, %v692, %v700
        %v709 = vsel %vm707, %v694, %v702
        %v710 = vsel %vm707, %v696, %v704
        %v711 = vsel %vm707, %v698, %v706
        %v712 = vsel %vm707, %v700, %v692
        %v713 = vsel %vm707, %v702, %v694
        %v714 = vsel %vm707, %v704, %v696
        %v715 = vsel %vm707, %v706, %v698
        %s716 = scalar_lea.vmem [#allocation5], 512
        %v717 = vld [vmem:[%s716] sm:$0xff]
        %v718 = vld [vmem:[%s716 + $0x8] sm:$0xff]
        %v719 = vld [vmem:[%s716 + $0x10] sm:$0xff]
        %v720 = vld [vmem:[%s716 + $0x18] sm:$0xff]
        %v721 = vld [vmem:[%s716 + $0x20] sm:$0xff]
        %v722 = vld [vmem:[%s716 + $0x28] sm:$0xff]
        %v723 = vld [vmem:[%s716 + $0x30] sm:$0xff]
        %v724 = vld [vmem:[%s716 + $0x38] sm:$0xff]
        %v725 = vmul.f32 %v708, %v717
        %v726 = vmul.f32 %v712, %v718
        %v727 = vmul.f32 %v709, %v719
        %v728 = vmul.f32 %v713, %v720
        %v729 = vmul.f32 %v710, %v721
        %v730 = vmul.f32 %v714, %v722
        %v731 = vmul.f32 %v711, %v723
        %v732 = vmul.f32 %v715, %v724
        %v733 = vadd.f32 %v683, %v725
        %v734 = vadd.f32 %v684, %v726
        %v735 = vadd.f32 %v685, %v727
        %v736 = vadd.f32 %v686, %v728
        %v737 = vadd.f32 %v687, %v729
        %v738 = vadd.f32 %v688, %v730
        %v739 = vadd.f32 %v689, %v731
        %v740 = vadd.f32 %v690, %v732
        %742 = vset.pattern.permute.xlu0 0
        %743 = vperm.xlu0 %742, %v303
        %v744 = vpop.permute.xlu0 %743
        %747 = vset.pattern.permute.xlu0 0
        %748 = vperm.xlu0 %747, %v304
        %v749 = vpop.permute.xlu0 %748
        %752 = vset.pattern.permute.xlu0 0
        %753 = vperm.xlu0 %752, %v305
        %v754 = vpop.permute.xlu0 %753
        %757 = vset.pattern.permute.xlu0 0
        %758 = vperm.xlu0 %757, %v306
        %v759 = vpop.permute.xlu0 %758
        %v761 = vadd.f32 %v733, %v744
        %v762 = vadd.f32 %v734, %v744
        %v763 = vadd.f32 %v735, %v749
        %v764 = vadd.f32 %v736, %v749
        %v765 = vadd.f32 %v737, %v754
        %v766 = vadd.f32 %v738, %v754
        %v767 = vadd.f32 %v739, %v759
        %v768 = vadd.f32 %v740, %v759
        %v769 = vmul.f32 %v761, 0.044715
        %v770 = vmul.f32 %v762, 0.044715
        %v771 = vmul.f32 %v763, 0.044715
        %v772 = vmul.f32 %v764, 0.044715
        %v773 = vmul.f32 %v765, 0.044715
        %v774 = vmul.f32 %v766, 0.044715
        %v775 = vmul.f32 %v767, 0.044715
        %v776 = vmul.f32 %v768, 0.044715
        %v777 = vmul.f32 %v769, %v761
        %v778 = vmul.f32 %v770, %v762
        %v779 = vmul.f32 %v771, %v763
        %v780 = vmul.f32 %v772, %v764
        %v781 = vmul.f32 %v773, %v765
        %v782 = vmul.f32 %v774, %v766
        %v783 = vmul.f32 %v775, %v767
        %v784 = vmul.f32 %v776, %v768
        %v785 = vmul.f32 %v777, %v761
        %v786 = vmul.f32 %v778, %v762
        %v787 = vmul.f32 %v779, %v763
        %v788 = vmul.f32 %v780, %v764
        %v789 = vmul.f32 %v781, %v765
        %v790 = vmul.f32 %v782, %v766
        %v791 = vmul.f32 %v783, %v767
        %v792 = vmul.f32 %v784, %v768
        %v793 = vadd.f32 %v761, %v785
        %v794 = vadd.f32 %v762, %v786
        %v795 = vadd.f32 %v763, %v787
        %v796 = vadd.f32 %v764, %v788
        %v797 = vadd.f32 %v765, %v789
        %v798 = vadd.f32 %v766, %v790
        %v799 = vadd.f32 %v767, %v791
        %v800 = vadd.f32 %v768, %v792
        %v801 = vmul.f32 %v793, 0.7978846
        %v802 = vmul.f32 %v794, 0.7978846
        %v803 = vmul.f32 %v795, 0.7978846
        %v804 = vmul.f32 %v796, 0.7978846
        %v805 = vmul.f32 %v797, 0.7978846
        %v806 = vmul.f32 %v798, 0.7978846
        %v807 = vmul.f32 %v799, 0.7978846
        %v808 = vmul.f32 %v800, 0.7978846
        %v809 = vmul.f32 %v761, 0.5
        %v810 = vmul.f32 %v762, 0.5
        %v811 = vmul.f32 %v763, 0.5
        %v812 = vmul.f32 %v764, 0.5
        %v813 = vmul.f32 %v765, 0.5
        %v814 = vmul.f32 %v766, 0.5
        %v815 = vmul.f32 %v767, 0.5
        %v816 = vmul.f32 %v768, 0.5
        %v817 = vtanh.pop %v801
        %v818 = vtanh.pop %v802
        %v819 = vtanh.pop %v803
        %v820 = vtanh.pop %v804
        %v821 = vtanh.pop %v805
        %v822 = vtanh.pop %v806
        %v823 = vtanh.pop %v807
        %v824 = vtanh.pop %v808
        %v825 = vadd.f32 %v817, 1.0
        %v826 = vadd.f32 %v818, 1.0
        %v827 = vadd.f32 %v819, 1.0
        %v828 = vadd.f32 %v820, 1.0
        %v829 = vadd.f32 %v821, 1.0
        %v830 = vadd.f32 %v822, 1.0
        %v831 = vadd.f32 %v823, 1.0
        %v832 = vadd.f32 %v824, 1.0
        %v833 = vmul.f32 %v809, %v825
        %v834 = vmul.f32 %v810, %v826
        %v835 = vmul.f32 %v811, %v827
        %v836 = vmul.f32 %v812, %v828
        %v837 = vmul.f32 %v813, %v829
        %v838 = vmul.f32 %v814, %v830
        %v839 = vmul.f32 %v815, %v831
        %v840 = vmul.f32 %v816, %v832
        %v841 = vadd.f32 %v833, %v315
        %v842 = vadd.f32 %v834, %v316
        %v843 = vadd.f32 %v835, %v317
        %v844 = vadd.f32 %v836, %v318
        %v845 = vadd.f32 %v837, %v319
        %v846 = vadd.f32 %v838, %v320
        %v847 = vadd.f32 %v839, %v321
        %v848 = vadd.f32 %v840, %v322
        %v849 = vpack.c.bf16 %v843, %v841
        %v850 = vpack.c.bf16 %v844, %v842
        %v851 = vpack.c.bf16 %v847, %v845
        %v852 = vpack.c.bf16 %v848, %v846
        %853 = vset.pattern.permute.xlu0 1
        %854 = vperm.xlu0 %853, %v303
        %v855 = vpop.permute.xlu0 %854
        %857 = vset.pattern.permute.xlu0 1
        %858 = vperm.xlu0 %857, %v304
        %v859 = vpop.permute.xlu0 %858
        %861 = vset.pattern.permute.xlu0 1
        %862 = vperm.xlu0 %861, %v305
        %v863 = vpop.permute.xlu0 %862
        %865 = vset.pattern.permute.xlu0 1
        %866 = vperm.xlu0 %865, %v306
        %v867 = vpop.permute.xlu0 %866
        %v873 = vunpack.c.l.b16 %v307
        %v874 = vunpack.c.l.b16 %v308
        %v875 = vunpack.c.l.b16 %v309
        %v876 = vunpack.c.l.b16 %v310
        %v877 = vpack.c.b16 %v874, %v873
        %v878 = vpack.c.b16 %v876, %v875
        %vm879 = vcmask 261120
        %v881 = vsel %vm879, %v877, 0
        %v884 = vsel %vm879, %v878, 0
        %886 = vmatprep.subr.bf16.mxu0 %v850
        %887 = vmatpush1.bf16.msra.mxu0 %v849
        %888 = vmatprep.subr.bf16.mxu0 %v852
        %889 = vmatpush1.bf16.msra.mxu0 %v851
        %890 = vmatprep.subr.bf16.mxu0 0
        %891 = vmatpush1.bf16.msra.mxu0 0
        %892 = vmatprep.subr.bf16.mxu0 0
        %893 = vmatpush1.bf16.msra.mxu0 0
        %894 = vmatprep.subr.bf16.mxu0 0
        %895 = vmatpush1.bf16.msra.mxu0 0
        %896 = vmatprep.subr.bf16.mxu0 0
        %897 = vmatpush1.bf16.msra.mxu0 0
        %898 = vmatprep.subr.bf16.mxu0 0
        %899 = vmatpush1.bf16.msra.mxu0 0
        %900 = vmatprep.subr.bf16.mxu0 0
        %901 = vmatpush1.bf16.msra.mxu0 0
        %902 = vmatprep.subr.bf16.mxu0 0
        %903 = vmatpush1.bf16.msra.mxu0 0
        %904 = vmatprep.subr.bf16.mxu0 0
        %905 = vmatpush1.bf16.msra.mxu0 0
        %906 = vmatprep.subr.bf16.mxu0 0
        %907 = vmatpush1.bf16.msra.mxu0 0
        %908 = vmatprep.subr.bf16.mxu0 0
        %909 = vmatpush1.bf16.msra.mxu0 0
        %910 = vmatprep.subr.bf16.mxu0 0
        %911 = vmatpush1.bf16.msra.mxu0 0
        %912 = vmatprep.subr.bf16.mxu0 0
        %913 = vmatpush1.bf16.msra.mxu0 0
        %914 = vmatprep.subr.bf16.mxu0 0
        %915 = vmatpush1.bf16.msra.mxu0 0
        %916 = vmatprep.subr.bf16.mxu0 0
        %917 = vmatpush1.bf16.msra.mxu0 0
        %918 = vmatprep.mubr.bf16.mxu0 0
        %919 = vmatmul.mubr.bf16.gmra.mrb[0].mxu0 %v881
        %v920 = vpop.f32.mrb[0].mxu0
        %v921 = vadd.f32 %v855, %v920
        %v922 = vpop.f32.mrb[0].mxu0
        %v923 = vadd.f32 %v855, %v922
        %v924 = vpop.f32.mrb[0].mxu0
        %v925 = vadd.f32 %v859, %v924
        %v926 = vpop.f32.mrb[0].mxu0
        %v927 = vadd.f32 %v859, %v926
        %928 = vmatprep.mubr.bf16.mxu0 0
        %929 = vmatmul.mubr.bf16.gmra.mrb[0].mxu0 %v884
        %v930 = vpop.f32.mrb[0].mxu0
        %v931 = vadd.f32 %v863, %v930
        %v932 = vpop.f32.mrb[0].mxu0
        %v933 = vadd.f32 %v863, %v932
        %v934 = vpop.f32.mrb[0].mxu0
        %v935 = vadd.f32 %v867, %v934
        %v936 = vpop.f32.mrb[0].mxu0
        %v937 = vadd.f32 %v867, %v936
        %938 = vdwg.mxu0
        %v939 = vmul.f32 %v921, 0.044715
        %v940 = vmul.f32 %v923, 0.044715
        %v941 = vmul.f32 %v925, 0.044715
        %v942 = vmul.f32 %v927, 0.044715
        %v943 = vmul.f32 %v931, 0.044715
        %v944 = vmul.f32 %v933, 0.044715
        %v945 = vmul.f32 %v935, 0.044715
        %v946 = vmul.f32 %v937, 0.044715
        %v947 = vmul.f32 %v939, %v921
        %v948 = vmul.f32 %v940, %v923
        %v949 = vmul.f32 %v941, %v925
        %v950 = vmul.f32 %v942, %v927
        %v951 = vmul.f32 %v943, %v931
        %v952 = vmul.f32 %v944, %v933
        %v953 = vmul.f32 %v945, %v935
        %v954 = vmul.f32 %v946, %v937
        %v955 = vmul.f32 %v947, %v921
        %v956 = vmul.f32 %v948, %v923
        %v957 = vmul.f32 %v949, %v925
        %v958 = vmul.f32 %v950, %v927
        %v959 = vmul.f32 %v951, %v931
        %v960 = vmul.f32 %v952, %v933
        %v961 = vmul.f32 %v953, %v935
        %v962 = vmul.f32 %v954, %v937
        %v963 = vadd.f32 %v921, %v955
        %v964 = vadd.f32 %v923, %v956
        %v965 = vadd.f32 %v925, %v957
        %v966 = vadd.f32 %v927, %v958
        %v967 = vadd.f32 %v931, %v959
        %v968 = vadd.f32 %v933, %v960
        %v969 = vadd.f32 %v935, %v961
        %v970 = vadd.f32 %v937, %v962
        %v971 = vmul.f32 %v963, 0.7978846
        %v972 = vmul.f32 %v964, 0.7978846
        %v973 = vmul.f32 %v965, 0.7978846
        %v974 = vmul.f32 %v966, 0.7978846
        %v975 = vmul.f32 %v967, 0.7978846
        %v976 = vmul.f32 %v968, 0.7978846
        %v977 = vmul.f32 %v969, 0.7978846
        %v978 = vmul.f32 %v970, 0.7978846
        %v979 = vmul.f32 %v921, 0.5
        %v980 = vmul.f32 %v923, 0.5
        %v981 = vmul.f32 %v925, 0.5
        %v982 = vmul.f32 %v927, 0.5
        %v983 = vmul.f32 %v931, 0.5
        %v984 = vmul.f32 %v933, 0.5
        %v985 = vmul.f32 %v935, 0.5
        %v986 = vmul.f32 %v937, 0.5
        %v987 = vtanh.pop %v971
        %v988 = vtanh.pop %v972
        %v989 = vtanh.pop %v973
        %v990 = vtanh.pop %v974
        %v991 = vtanh.pop %v975
        %v992 = vtanh.pop %v976
        %v993 = vtanh.pop %v977
        %v994 = vtanh.pop %v978
        %v995 = vadd.f32 %v987, 1.0
        %v996 = vadd.f32 %v988, 1.0
        %v997 = vadd.f32 %v989, 1.0
        %v998 = vadd.f32 %v990, 1.0
        %v999 = vadd.f32 %v991, 1.0
        %v1000 = vadd.f32 %v992, 1.0
        %v1001 = vadd.f32 %v993, 1.0
        %v1002 = vadd.f32 %v994, 1.0
        %v1003 = vmul.f32 %v979, %v995
        %v1004 = vmul.f32 %v980, %v996
        %v1005 = vmul.f32 %v981, %v997
        %v1006 = vmul.f32 %v982, %v998
        %v1007 = vmul.f32 %v983, %v999
        %v1008 = vmul.f32 %v984, %v1000
        %v1009 = vmul.f32 %v985, %v1001
        %v1010 = vmul.f32 %v986, %v1002
        %v1011 = vadd.f32 %v315, %v1003
        %v1012 = vadd.f32 %v316, %v1004
        %v1013 = vadd.f32 %v317, %v1005
        %v1014 = vadd.f32 %v318, %v1006
        %v1015 = vadd.f32 %v319, %v1007
        %v1016 = vadd.f32 %v320, %v1008
        %v1017 = vadd.f32 %v321, %v1009
        %v1018 = vadd.f32 %v322, %v1010
        %s1019 = scalar_lea.vmem [#allocation7], 256
        %v1020 = vld [vmem:[%s1019] sm:$0xff]
        %v1021 = vld [vmem:[%s1019 + $0x8] sm:$0xff]
        %v1022 = vld [vmem:[%s1019 + $0x10] sm:$0xff]
        %v1023 = vld [vmem:[%s1019 + $0x18] sm:$0xff]
        %v1024 = vld [vmem:[%s1019 + $0x20] sm:$0xff]
        %v1025 = vld [vmem:[%s1019 + $0x28] sm:$0xff]
        %v1026 = vld [vmem:[%s1019 + $0x30] sm:$0xff]
        %v1027 = vld [vmem:[%s1019 + $0x38] sm:$0xff]
        %v1028 = vmul.f32 %v1011, %v1020
        %v1029 = vmul.f32 %v1012, %v1021
        %v1030 = vmul.f32 %v1013, %v1022
        %v1031 = vmul.f32 %v1014, %v1023
        %v1032 = vmul.f32 %v1015, %v1024
        %v1033 = vmul.f32 %v1016, %v1025
        %v1034 = vmul.f32 %v1017, %v1026
        %v1035 = vmul.f32 %v1018, %v1027
        %1036 = vrot.lane.b32.xlu0 %v1011, 17
        %v1037 = vpop.permute.xlu0 %1036
        %1038 = vrot.lane.b32.xlu0 %v1013, 17
        %v1039 = vpop.permute.xlu0 %1038
        %1040 = vrot.lane.b32.xlu0 %v1015, 17
        %v1041 = vpop.permute.xlu0 %1040
        %1042 = vrot.lane.b32.xlu0 %v1017, 17
        %v1043 = vpop.permute.xlu0 %1042
        %1044 = vrot.lane.b32.xlu0 %v1012, 17
        %v1045 = vpop.permute.xlu0 %1044
        %1046 = vrot.lane.b32.xlu0 %v1014, 17
        %v1047 = vpop.permute.xlu0 %1046
        %1048 = vrot.lane.b32.xlu0 %v1016, 17
        %v1049 = vpop.permute.xlu0 %1048
        %1050 = vrot.lane.b32.xlu0 %v1018, 17
        %v1051 = vpop.permute.xlu0 %1050
        %v1052 = vsel %vm358, %v1037, %v1045
        %v1053 = vsel %vm358, %v1039, %v1047
        %v1054 = vsel %vm358, %v1041, %v1049
        %v1055 = vsel %vm358, %v1043, %v1051
        %v1056 = vsel %vm358, %v1045, %v1037
        %v1057 = vsel %vm358, %v1047, %v1039
        %v1058 = vsel %vm358, %v1049, %v1041
        %v1059 = vsel %vm358, %v1051, %v1043
        %v1060 = vld [vmem:[#allocation7] sm:$0xff]
        %v1061 = vld [vmem:[#allocation7 + $0x8] sm:$0xff]
        %v1062 = vld [vmem:[#allocation7 + $0x10] sm:$0xff]
        %v1063 = vld [vmem:[#allocation7 + $0x18] sm:$0xff]
        %v1064 = vld [vmem:[#allocation7 + $0x20] sm:$0xff]
        %v1065 = vld [vmem:[#allocation7 + $0x28] sm:$0xff]
        %v1066 = vld [vmem:[#allocation7 + $0x30] sm:$0xff]
        %v1067 = vld [vmem:[#allocation7 + $0x38] sm:$0xff]
        %v1068 = vmul.f32 %v1056, %v1060
        %v1069 = vmul.f32 %v1052, %v1061
        %v1070 = vmul.f32 %v1057, %v1062
        %v1071 = vmul.f32 %v1053, %v1063
        %v1072 = vmul.f32 %v1058, %v1064
        %v1073 = vmul.f32 %v1054, %v1065
        %v1074 = vmul.f32 %v1059, %v1066
        %v1075 = vmul.f32 %v1055, %v1067
        %v1076 = vadd.f32 %v1028, %v1068
        %v1077 = vadd.f32 %v1029, %v1069
        %v1078 = vadd.f32 %v1030, %v1070
        %v1079 = vadd.f32 %v1031, %v1071
        %v1080 = vadd.f32 %v1032, %v1072
        %v1081 = vadd.f32 %v1033, %v1073
        %v1082 = vadd.f32 %v1034, %v1074
        %v1083 = vadd.f32 %v1035, %v1075
        %1084 = vrot.lane.b32.xlu0 %v1011, 16
        %v1085 = vpop.permute.xlu0 %1084
        %1086 = vrot.lane.b32.xlu0 %v1013, 16
        %v1087 = vpop.permute.xlu0 %1086
        %1088 = vrot.lane.b32.xlu0 %v1015, 16
        %v1089 = vpop.permute.xlu0 %1088
        %1090 = vrot.lane.b32.xlu0 %v1017, 16
        %v1091 = vpop.permute.xlu0 %1090
        %1092 = vrot.lane.b32.xlu0 %v1012, 16
        %v1093 = vpop.permute.xlu0 %1092
        %1094 = vrot.lane.b32.xlu0 %v1014, 16
        %v1095 = vpop.permute.xlu0 %1094
        %1096 = vrot.lane.b32.xlu0 %v1016, 16
        %v1097 = vpop.permute.xlu0 %1096
        %1098 = vrot.lane.b32.xlu0 %v1018, 16
        %v1099 = vpop.permute.xlu0 %1098
        %v1100 = vsel %vm407, %v1085, %v1093
        %v1101 = vsel %vm407, %v1087, %v1095
        %v1102 = vsel %vm407, %v1089, %v1097
        %v1103 = vsel %vm407, %v1091, %v1099
        %v1104 = vsel %vm407, %v1093, %v1085
        %v1105 = vsel %vm407, %v1095, %v1087
        %v1106 = vsel %vm407, %v1097, %v1089
        %v1107 = vsel %vm407, %v1099, %v1091
        %s1108 = scalar_lea.vmem [#allocation7], 64
        %v1109 = vld [vmem:[%s1108] sm:$0xff]
        %v1110 = vld [vmem:[%s1108 + $0x8] sm:$0xff]
        %v1111 = vld [vmem:[%s1108 + $0x10] sm:$0xff]
        %v1112 = vld [vmem:[%s1108 + $0x18] sm:$0xff]
        %v1113 = vld [vmem:[%s1108 + $0x20] sm:$0xff]
        %v1114 = vld [vmem:[%s1108 + $0x28] sm:$0xff]
        %v1115 = vld [vmem:[%s1108 + $0x30] sm:$0xff]
        %v1116 = vld [vmem:[%s1108 + $0x38] sm:$0xff]
        %v1117 = vmul.f32 %v1104, %v1109
        %v1118 = vmul.f32 %v1100, %v1110
        %v1119 = vmul.f32 %v1105, %v1111
        %v1120 = vmul.f32 %v1101, %v1112
        %v1121 = vmul.f32 %v1106, %v1113
        %v1122 = vmul.f32 %v1102, %v1114
        %v1123 = vmul.f32 %v1107, %v1115
        %v1124 = vmul.f32 %v1103, %v1116
        %v1125 = vadd.f32 %v1076, %v1117
        %v1126 = vadd.f32 %v1077, %v1118
        %v1127 = vadd.f32 %v1078, %v1119
        %v1128 = vadd.f32 %v1079, %v1120
        %v1129 = vadd.f32 %v1080, %v1121
        %v1130 = vadd.f32 %v1081, %v1122
        %v1131 = vadd.f32 %v1082, %v1123
        %v1132 = vadd.f32 %v1083, %v1124
        %1133 = vrot.lane.b32.xlu0 %v1011, 15
        %v1134 = vpop.permute.xlu0 %1133
        %1135 = vrot.lane.b32.xlu0 %v1013, 15
        %v1136 = vpop.permute.xlu0 %1135
        %1137 = vrot.lane.b32.xlu0 %v1015, 15
        %v1138 = vpop.permute.xlu0 %1137
        %1139 = vrot.lane.b32.xlu0 %v1017, 15
        %v1140 = vpop.permute.xlu0 %1139
        %1141 = vrot.lane.b32.xlu0 %v1012, 15
        %v1142 = vpop.permute.xlu0 %1141
        %1143 = vrot.lane.b32.xlu0 %v1014, 15
        %v1144 = vpop.permute.xlu0 %1143
        %1145 = vrot.lane.b32.xlu0 %v1016, 15
        %v1146 = vpop.permute.xlu0 %1145
        %1147 = vrot.lane.b32.xlu0 %v1018, 15
        %v1148 = vpop.permute.xlu0 %1147
        %v1149 = vsel %vm457, %v1134, %v1142
        %v1150 = vsel %vm457, %v1136, %v1144
        %v1151 = vsel %vm457, %v1138, %v1146
        %v1152 = vsel %vm457, %v1140, %v1148
        %v1153 = vsel %vm457, %v1142, %v1134
        %v1154 = vsel %vm457, %v1144, %v1136
        %v1155 = vsel %vm457, %v1146, %v1138
        %v1156 = vsel %vm457, %v1148, %v1140
        %s1157 = scalar_lea.vmem [#allocation7], 128
        %v1158 = vld [vmem:[%s1157] sm:$0xff]
        %v1159 = vld [vmem:[%s1157 + $0x8] sm:$0xff]
        %v1160 = vld [vmem:[%s1157 + $0x10] sm:$0xff]
        %v1161 = vld [vmem:[%s1157 + $0x18] sm:$0xff]
        %v1162 = vld [vmem:[%s1157 + $0x20] sm:$0xff]
        %v1163 = vld [vmem:[%s1157 + $0x28] sm:$0xff]
        %v1164 = vld [vmem:[%s1157 + $0x30] sm:$0xff]
        %v1165 = vld [vmem:[%s1157 + $0x38] sm:$0xff]
        %v1166 = vmul.f32 %v1153, %v1158
        %v1167 = vmul.f32 %v1149, %v1159
        %v1168 = vmul.f32 %v1154, %v1160
        %v1169 = vmul.f32 %v1150, %v1161
        %v1170 = vmul.f32 %v1155, %v1162
        %v1171 = vmul.f32 %v1151, %v1163
        %v1172 = vmul.f32 %v1156, %v1164
        %v1173 = vmul.f32 %v1152, %v1165
        %v1174 = vadd.f32 %v1125, %v1166
        %v1175 = vadd.f32 %v1126, %v1167
        %v1176 = vadd.f32 %v1127, %v1168
        %v1177 = vadd.f32 %v1128, %v1169
        %v1178 = vadd.f32 %v1129, %v1170
        %v1179 = vadd.f32 %v1130, %v1171
        %v1180 = vadd.f32 %v1131, %v1172
        %v1181 = vadd.f32 %v1132, %v1173
        %1182 = vrot.lane.b32.xlu0 %v1011, 1
        %v1183 = vpop.permute.xlu0 %1182
        %1184 = vrot.lane.b32.xlu0 %v1013, 1
        %v1185 = vpop.permute.xlu0 %1184
        %1186 = vrot.lane.b32.xlu0 %v1015, 1
        %v1187 = vpop.permute.xlu0 %1186
        %1188 = vrot.lane.b32.xlu0 %v1017, 1
        %v1189 = vpop.permute.xlu0 %1188
        %1190 = vrot.lane.b32.xlu0 %v1012, 1
        %v1191 = vpop.permute.xlu0 %1190
        %1192 = vrot.lane.b32.xlu0 %v1014, 1
        %v1193 = vpop.permute.xlu0 %1192
        %1194 = vrot.lane.b32.xlu0 %v1016, 1
        %v1195 = vpop.permute.xlu0 %1194
        %1196 = vrot.lane.b32.xlu0 %v1018, 1
        %v1197 = vpop.permute.xlu0 %1196
        %v1198 = vsel %vm507, %v1183, %v1191
        %v1199 = vsel %vm507, %v1185, %v1193
        %v1200 = vsel %vm507, %v1187, %v1195
        %v1201 = vsel %vm507, %v1189, %v1197
        %v1202 = vsel %vm507, %v1191, %v1183
        %v1203 = vsel %vm507, %v1193, %v1185
        %v1204 = vsel %vm507, %v1195, %v1187
        %v1205 = vsel %vm507, %v1197, %v1189
        %s1206 = scalar_lea.vmem [#allocation7], 192
        %v1207 = vld [vmem:[%s1206] sm:$0xff]
        %v1208 = vld [vmem:[%s1206 + $0x8] sm:$0xff]
        %v1209 = vld [vmem:[%s1206 + $0x10] sm:$0xff]
        %v1210 = vld [vmem:[%s1206 + $0x18] sm:$0xff]
        %v1211 = vld [vmem:[%s1206 + $0x20] sm:$0xff]
        %v1212 = vld [vmem:[%s1206 + $0x28] sm:$0xff]
        %v1213 = vld [vmem:[%s1206 + $0x30] sm:$0xff]
        %v1214 = vld [vmem:[%s1206 + $0x38] sm:$0xff]
        %v1215 = vmul.f32 %v1202, %v1207
        %v1216 = vmul.f32 %v1198, %v1208
        %v1217 = vmul.f32 %v1203, %v1209
        %v1218 = vmul.f32 %v1199, %v1210
        %v1219 = vmul.f32 %v1204, %v1211
        %v1220 = vmul.f32 %v1200, %v1212
        %v1221 = vmul.f32 %v1205, %v1213
        %v1222 = vmul.f32 %v1201, %v1214
        %v1223 = vadd.f32 %v1174, %v1215
        %v1224 = vadd.f32 %v1175, %v1216
        %v1225 = vadd.f32 %v1176, %v1217
        %v1226 = vadd.f32 %v1177, %v1218
        %v1227 = vadd.f32 %v1178, %v1219
        %v1228 = vadd.f32 %v1179, %v1220
        %v1229 = vadd.f32 %v1180, %v1221
        %v1230 = vadd.f32 %v1181, %v1222
        %1231 = vrot.lane.b32.xlu0 %v1011, 127
        %v1232 = vpop.permute.xlu0 %1231
        %1233 = vrot.lane.b32.xlu0 %v1013, 127
        %v1234 = vpop.permute.xlu0 %1233
        %1235 = vrot.lane.b32.xlu0 %v1015, 127
        %v1236 = vpop.permute.xlu0 %1235
        %1237 = vrot.lane.b32.xlu0 %v1017, 127
        %v1238 = vpop.permute.xlu0 %1237
        %1239 = vrot.lane.b32.xlu0 %v1012, 127
        %v1240 = vpop.permute.xlu0 %1239
        %1241 = vrot.lane.b32.xlu0 %v1014, 127
        %v1242 = vpop.permute.xlu0 %1241
        %1243 = vrot.lane.b32.xlu0 %v1016, 127
        %v1244 = vpop.permute.xlu0 %1243
        %1245 = vrot.lane.b32.xlu0 %v1018, 127
        %v1246 = vpop.permute.xlu0 %1245
        %v1247 = vsel %vm557, %v1232, %v1240
        %v1248 = vsel %vm557, %v1234, %v1242
        %v1249 = vsel %vm557, %v1236, %v1244
        %v1250 = vsel %vm557, %v1238, %v1246
        %v1251 = vsel %vm557, %v1240, %v1232
        %v1252 = vsel %vm557, %v1242, %v1234
        %v1253 = vsel %vm557, %v1244, %v1236
        %v1254 = vsel %vm557, %v1246, %v1238
        %s1255 = scalar_lea.vmem [#allocation7], 320
        %v1256 = vld [vmem:[%s1255] sm:$0xff]
        %v1257 = vld [vmem:[%s1255 + $0x8] sm:$0xff]
        %v1258 = vld [vmem:[%s1255 + $0x10] sm:$0xff]
        %v1259 = vld [vmem:[%s1255 + $0x18] sm:$0xff]
        %v1260 = vld [vmem:[%s1255 + $0x20] sm:$0xff]
        %v1261 = vld [vmem:[%s1255 + $0x28] sm:$0xff]
        %v1262 = vld [vmem:[%s1255 + $0x30] sm:$0xff]
        %v1263 = vld [vmem:[%s1255 + $0x38] sm:$0xff]
        %v1264 = vmul.f32 %v1247, %v1256
        %v1265 = vmul.f32 %v1251, %v1257
        %v1266 = vmul.f32 %v1248, %v1258
        %v1267 = vmul.f32 %v1252, %v1259
        %v1268 = vmul.f32 %v1249, %v1260
        %v1269 = vmul.f32 %v1253, %v1261
        %v1270 = vmul.f32 %v1250, %v1262
        %v1271 = vmul.f32 %v1254, %v1263
        %v1272 = vadd.f32 %v1223, %v1264
        %v1273 = vadd.f32 %v1224, %v1265
        %v1274 = vadd.f32 %v1225, %v1266
        %v1275 = vadd.f32 %v1226, %v1267
        %v1276 = vadd.f32 %v1227, %v1268
        %v1277 = vadd.f32 %v1228, %v1269
        %v1278 = vadd.f32 %v1229, %v1270
        %v1279 = vadd.f32 %v1230, %v1271
        %1280 = vrot.lane.b32.xlu0 %v1011, 113
        %v1281 = vpop.permute.xlu0 %1280
        %1282 = vrot.lane.b32.xlu0 %v1013, 113
        %v1283 = vpop.permute.xlu0 %1282
        %1284 = vrot.lane.b32.xlu0 %v1015, 113
        %v1285 = vpop.permute.xlu0 %1284
        %1286 = vrot.lane.b32.xlu0 %v1017, 113
        %v1287 = vpop.permute.xlu0 %1286
        %1288 = vrot.lane.b32.xlu0 %v1012, 113
        %v1289 = vpop.permute.xlu0 %1288
        %1290 = vrot.lane.b32.xlu0 %v1014, 113
        %v1291 = vpop.permute.xlu0 %1290
        %1292 = vrot.lane.b32.xlu0 %v1016, 113
        %v1293 = vpop.permute.xlu0 %1292
        %1294 = vrot.lane.b32.xlu0 %v1018, 113
        %v1295 = vpop.permute.xlu0 %1294
        %v1296 = vsel %vm607, %v1281, %v1289
        %v1297 = vsel %vm607, %v1283, %v1291
        %v1298 = vsel %vm607, %v1285, %v1293
        %v1299 = vsel %vm607, %v1287, %v1295
        %v1300 = vsel %vm607, %v1289, %v1281
        %v1301 = vsel %vm607, %v1291, %v1283
        %v1302 = vsel %vm607, %v1293, %v1285
        %v1303 = vsel %vm607, %v1295, %v1287
        %s1304 = scalar_lea.vmem [#allocation7], 384
        %v1305 = vld [vmem:[%s1304] sm:$0xff]
        %v1306 = vld [vmem:[%s1304 + $0x8] sm:$0xff]
        %v1307 = vld [vmem:[%s1304 + $0x10] sm:$0xff]
        %v1308 = vld [vmem:[%s1304 + $0x18] sm:$0xff]
        %v1309 = vld [vmem:[%s1304 + $0x20] sm:$0xff]
        %v1310 = vld [vmem:[%s1304 + $0x28] sm:$0xff]
        %v1311 = vld [vmem:[%s1304 + $0x30] sm:$0xff]
        %v1312 = vld [vmem:[%s1304 + $0x38] sm:$0xff]
        %v1313 = vmul.f32 %v1296, %v1305
        %v1314 = vmul.f32 %v1300, %v1306
        %v1315 = vmul.f32 %v1297, %v1307
        %v1316 = vmul.f32 %v1301, %v1308
        %v1317 = vmul.f32 %v1298, %v1309
        %v1318 = vmul.f32 %v1302, %v1310
        %v1319 = vmul.f32 %v1299, %v1311
        %v1320 = vmul.f32 %v1303, %v1312
        %v1321 = vadd.f32 %v1272, %v1313
        %v1322 = vadd.f32 %v1273, %v1314
        %v1323 = vadd.f32 %v1274, %v1315
        %v1324 = vadd.f32 %v1275, %v1316
        %v1325 = vadd.f32 %v1276, %v1317
        %v1326 = vadd.f32 %v1277, %v1318
        %v1327 = vadd.f32 %v1278, %v1319
        %v1328 = vadd.f32 %v1279, %v1320
        %1329 = vrot.lane.b32.xlu0 %v1011, 112
        %v1330 = vpop.permute.xlu0 %1329
        %1331 = vrot.lane.b32.xlu0 %v1013, 112
        %v1332 = vpop.permute.xlu0 %1331
        %1333 = vrot.lane.b32.xlu0 %v1015, 112
        %v1334 = vpop.permute.xlu0 %1333
        %1335 = vrot.lane.b32.xlu0 %v1017, 112
        %v1336 = vpop.permute.xlu0 %1335
        %1337 = vrot.lane.b32.xlu0 %v1012, 112
        %v1338 = vpop.permute.xlu0 %1337
        %1339 = vrot.lane.b32.xlu0 %v1014, 112
        %v1340 = vpop.permute.xlu0 %1339
        %1341 = vrot.lane.b32.xlu0 %v1016, 112
        %v1342 = vpop.permute.xlu0 %1341
        %1343 = vrot.lane.b32.xlu0 %v1018, 112
        %v1344 = vpop.permute.xlu0 %1343
        %v1345 = vsel %vm657, %v1330, %v1338
        %v1346 = vsel %vm657, %v1332, %v1340
        %v1347 = vsel %vm657, %v1334, %v1342
        %v1348 = vsel %vm657, %v1336, %v1344
        %v1349 = vsel %vm657, %v1338, %v1330
        %v1350 = vsel %vm657, %v1340, %v1332
        %v1351 = vsel %vm657, %v1342, %v1334
        %v1352 = vsel %vm657, %v1344, %v1336
        %s1353 = scalar_lea.vmem [#allocation7], 448
        %v1354 = vld [vmem:[%s1353] sm:$0xff]
        %v1355 = vld [vmem:[%s1353 + $0x8] sm:$0xff]
        %v1356 = vld [vmem:[%s1353 + $0x10] sm:$0xff]
        %v1357 = vld [vmem:[%s1353 + $0x18] sm:$0xff]
        %v1358 = vld [vmem:[%s1353 + $0x20] sm:$0xff]
        %v1359 = vld [vmem:[%s1353 + $0x28] sm:$0xff]
        %v1360 = vld [vmem:[%s1353 + $0x30] sm:$0xff]
        %v1361 = vld [vmem:[%s1353 + $0x38] sm:$0xff]
        %v1362 = vmul.f32 %v1345, %v1354
        %v1363 = vmul.f32 %v1349, %v1355
        %v1364 = vmul.f32 %v1346, %v1356
        %v1365 = vmul.f32 %v1350, %v1357
        %v1366 = vmul.f32 %v1347, %v1358
        %v1367 = vmul.f32 %v1351, %v1359
        %v1368 = vmul.f32 %v1348, %v1360
        %v1369 = vmul.f32 %v1352, %v1361
        %v1370 = vadd.f32 %v1321, %v1362
        %v1371 = vadd.f32 %v1322, %v1363
        %v1372 = vadd.f32 %v1323, %v1364
        %v1373 = vadd.f32 %v1324, %v1365
        %v1374 = vadd.f32 %v1325, %v1366
        %v1375 = vadd.f32 %v1326, %v1367
        %v1376 = vadd.f32 %v1327, %v1368
        %v1377 = vadd.f32 %v1328, %v1369
        %1378 = vrot.lane.b32.xlu0 %v1011, 111
        %v1379 = vpop.permute.xlu0 %1378
        %1380 = vrot.lane.b32.xlu0 %v1013, 111
        %v1381 = vpop.permute.xlu0 %1380
        %1382 = vrot.lane.b32.xlu0 %v1015, 111
        %v1383 = vpop.permute.xlu0 %1382
        %1384 = vrot.lane.b32.xlu0 %v1017, 111
        %v1385 = vpop.permute.xlu0 %1384
        %1386 = vrot.lane.b32.xlu0 %v1012, 111
        %v1387 = vpop.permute.xlu0 %1386
        %1388 = vrot.lane.b32.xlu0 %v1014, 111
        %v1389 = vpop.permute.xlu0 %1388
        %1390 = vrot.lane.b32.xlu0 %v1016, 111
        %v1391 = vpop.permute.xlu0 %1390
        %1392 = vrot.lane.b32.xlu0 %v1018, 111
        %v1393 = vpop.permute.xlu0 %1392
        %v1394 = vsel %vm707, %v1379, %v1387
        %v1395 = vsel %vm707, %v1381, %v1389
        %v1396 = vsel %vm707, %v1383, %v1391
        %v1397 = vsel %vm707, %v1385, %v1393
        %v1398 = vsel %vm707, %v1387, %v1379
        %v1399 = vsel %vm707, %v1389, %v1381
        %v1400 = vsel %vm707, %v1391, %v1383
        %v1401 = vsel %vm707, %v1393, %v1385
        %s1402 = scalar_lea.vmem [#allocation7], 512
        %v1403 = vld [vmem:[%s1402] sm:$0xff]
        %v1404 = vld [vmem:[%s1402 + $0x8] sm:$0xff]
        %v1405 = vld [vmem:[%s1402 + $0x10] sm:$0xff]
        %v1406 = vld [vmem:[%s1402 + $0x18] sm:$0xff]
        %v1407 = vld [vmem:[%s1402 + $0x20] sm:$0xff]
        %v1408 = vld [vmem:[%s1402 + $0x28] sm:$0xff]
        %v1409 = vld [vmem:[%s1402 + $0x30] sm:$0xff]
        %v1410 = vld [vmem:[%s1402 + $0x38] sm:$0xff]
        %v1411 = vmul.f32 %v1394, %v1403
        %v1412 = vmul.f32 %v1398, %v1404
        %v1413 = vmul.f32 %v1395, %v1405
        %v1414 = vmul.f32 %v1399, %v1406
        %v1415 = vmul.f32 %v1396, %v1407
        %v1416 = vmul.f32 %v1400, %v1408
        %v1417 = vmul.f32 %v1397, %v1409
        %v1418 = vmul.f32 %v1401, %v1410
        %v1419 = vadd.f32 %v1370, %v1411
        %v1420 = vadd.f32 %v1371, %v1412
        %v1421 = vadd.f32 %v1372, %v1413
        %v1422 = vadd.f32 %v1373, %v1414
        %v1423 = vadd.f32 %v1374, %v1415
        %v1424 = vadd.f32 %v1375, %v1416
        %v1425 = vadd.f32 %v1376, %v1417
        %v1426 = vadd.f32 %v1377, %v1418
        %1427 = vset.pattern.permute.xlu0 2
        %1428 = vperm.xlu0 %1427, %v303
        %v1429 = vpop.permute.xlu0 %1428
        %1431 = vset.pattern.permute.xlu0 2
        %1432 = vperm.xlu0 %1431, %v304
        %v1433 = vpop.permute.xlu0 %1432
        %1435 = vset.pattern.permute.xlu0 2
        %1436 = vperm.xlu0 %1435, %v305
        %v1437 = vpop.permute.xlu0 %1436
        %1439 = vset.pattern.permute.xlu0 2
        %1440 = vperm.xlu0 %1439, %v306
        %v1441 = vpop.permute.xlu0 %1440
        %v1443 = vadd.f32 %v1419, %v1429
        %v1444 = vadd.f32 %v1420, %v1429
        %v1445 = vadd.f32 %v1421, %v1433
        %v1446 = vadd.f32 %v1422, %v1433
        %v1447 = vadd.f32 %v1423, %v1437
        %v1448 = vadd.f32 %v1424, %v1437
        %v1449 = vadd.f32 %v1425, %v1441
        %v1450 = vadd.f32 %v1426, %v1441
        %v1451 = vmul.f32 %v1443, 0.044715
        %v1452 = vmul.f32 %v1444, 0.044715
        %v1453 = vmul.f32 %v1445, 0.044715
        %v1454 = vmul.f32 %v1446, 0.044715
        %v1455 = vmul.f32 %v1447, 0.044715
        %v1456 = vmul.f32 %v1448, 0.044715
        %v1457 = vmul.f32 %v1449, 0.044715
        %v1458 = vmul.f32 %v1450, 0.044715
        %v1459 = vmul.f32 %v1451, %v1443
        %v1460 = vmul.f32 %v1452, %v1444
        %v1461 = vmul.f32 %v1453, %v1445
        %v1462 = vmul.f32 %v1454, %v1446
        %v1463 = vmul.f32 %v1455, %v1447
        %v1464 = vmul.f32 %v1456, %v1448
        %v1465 = vmul.f32 %v1457, %v1449
        %v1466 = vmul.f32 %v1458, %v1450
        %v1467 = vmul.f32 %v1459, %v1443
        %v1468 = vmul.f32 %v1460, %v1444
        %v1469 = vmul.f32 %v1461, %v1445
        %v1470 = vmul.f32 %v1462, %v1446
        %v1471 = vmul.f32 %v1463, %v1447
        %v1472 = vmul.f32 %v1464, %v1448
        %v1473 = vmul.f32 %v1465, %v1449
        %v1474 = vmul.f32 %v1466, %v1450
        %v1475 = vadd.f32 %v1443, %v1467
        %v1476 = vadd.f32 %v1444, %v1468
        %v1477 = vadd.f32 %v1445, %v1469
        %v1478 = vadd.f32 %v1446, %v1470
        %v1479 = vadd.f32 %v1447, %v1471
        %v1480 = vadd.f32 %v1448, %v1472
        %v1481 = vadd.f32 %v1449, %v1473
        %v1482 = vadd.f32 %v1450, %v1474
        %v1483 = vmul.f32 %v1475, 0.7978846
        %v1484 = vmul.f32 %v1476, 0.7978846
        %v1485 = vmul.f32 %v1477, 0.7978846
        %v1486 = vmul.f32 %v1478, 0.7978846
        %v1487 = vmul.f32 %v1479, 0.7978846
        %v1488 = vmul.f32 %v1480, 0.7978846
        %v1489 = vmul.f32 %v1481, 0.7978846
        %v1490 = vmul.f32 %v1482, 0.7978846
        %v1491 = vmul.f32 %v1443, 0.5
        %v1492 = vmul.f32 %v1444, 0.5
        %v1493 = vmul.f32 %v1445, 0.5
        %v1494 = vmul.f32 %v1446, 0.5
        %v1495 = vmul.f32 %v1447, 0.5
        %v1496 = vmul.f32 %v1448, 0.5
        %v1497 = vmul.f32 %v1449, 0.5
        %v1498 = vmul.f32 %v1450, 0.5
        %v1499 = vtanh.pop %v1483
        %v1500 = vtanh.pop %v1484
        %v1501 = vtanh.pop %v1485
        %v1502 = vtanh.pop %v1486
        %v1503 = vtanh.pop %v1487
        %v1504 = vtanh.pop %v1488
        %v1505 = vtanh.pop %v1489
        %v1506 = vtanh.pop %v1490
        %v1507 = vadd.f32 %v1499, 1.0
        %v1508 = vadd.f32 %v1500, 1.0
        %v1509 = vadd.f32 %v1501, 1.0
        %v1510 = vadd.f32 %v1502, 1.0
        %v1511 = vadd.f32 %v1503, 1.0
        %v1512 = vadd.f32 %v1504, 1.0
        %v1513 = vadd.f32 %v1505, 1.0
        %v1514 = vadd.f32 %v1506, 1.0
        %v1515 = vmul.f32 %v1491, %v1507
        %v1516 = vmul.f32 %v1492, %v1508
        %v1517 = vmul.f32 %v1493, %v1509
        %v1518 = vmul.f32 %v1494, %v1510
        %v1519 = vmul.f32 %v1495, %v1511
        %v1520 = vmul.f32 %v1496, %v1512
        %v1521 = vmul.f32 %v1497, %v1513
        %v1522 = vmul.f32 %v1498, %v1514
        %v1523 = vadd.f32 %v1515, %v315
        %v1524 = vadd.f32 %v1516, %v316
        %v1525 = vadd.f32 %v1517, %v317
        %v1526 = vadd.f32 %v1518, %v318
        %v1527 = vadd.f32 %v1519, %v319
        %v1528 = vadd.f32 %v1520, %v320
        %v1529 = vadd.f32 %v1521, %v321
        %v1530 = vadd.f32 %v1522, %v322
        %v1531 = vpack.c.bf16 %v1525, %v1523
        %v1532 = vpack.c.bf16 %v1526, %v1524
        %v1533 = vpack.c.bf16 %v1529, %v1527
        %v1534 = vpack.c.bf16 %v1530, %v1528
        %1535 = vset.pattern.permute.xlu0 3
        %1536 = vperm.xlu0 %1535, %v303
        %v1537 = vpop.permute.xlu0 %1536
        %1539 = vset.pattern.permute.xlu0 3
        %1540 = vperm.xlu0 %1539, %v304
        %v1541 = vpop.permute.xlu0 %1540
        %1543 = vset.pattern.permute.xlu0 3
        %1544 = vperm.xlu0 %1543, %v305
        %v1545 = vpop.permute.xlu0 %1544
        %1547 = vset.pattern.permute.xlu0 3
        %1548 = vperm.xlu0 %1547, %v306
        %v1549 = vpop.permute.xlu0 %1548
        %v1555 = vunpack.c.l.b16 %v311
        %v1556 = vunpack.c.l.b16 %v312
        %v1557 = vunpack.c.l.b16 %v313
        %v1558 = vunpack.c.l.b16 %v314
        %v1559 = vpack.c.b16 %v1556, %v1555
        %v1560 = vpack.c.b16 %v1558, %v1557
        %v1562 = vsel %vm879, %v1559, 0
        %v1565 = vsel %vm879, %v1560, 0
        %1567 = vmatprep.subr.bf16.mxu0 %v1532
        %1568 = vmatpush1.bf16.msra.mxu0 %v1531
        %1569 = vmatprep.subr.bf16.mxu0 %v1534
        %1570 = vmatpush1.bf16.msra.mxu0 %v1533
        %1571 = vmatprep.subr.bf16.mxu0 0
        %1572 = vmatpush1.bf16.msra.mxu0 0
        %1573 = vmatprep.subr.bf16.mxu0 0
        %1574 = vmatpush1.bf16.msra.mxu0 0
        %1575 = vmatprep.subr.bf16.mxu0 0
        %1576 = vmatpush1.bf16.msra.mxu0 0
        %1577 = vmatprep.subr.bf16.mxu0 0
        %1578 = vmatpush1.bf16.msra.mxu0 0
        %1579 = vmatprep.subr.bf16.mxu0 0
        %1580 = vmatpush1.bf16.msra.mxu0 0
        %1581 = vmatprep.subr.bf16.mxu0 0
        %1582 = vmatpush1.bf16.msra.mxu0 0
        %1583 = vmatprep.subr.bf16.mxu0 0
        %1584 = vmatpush1.bf16.msra.mxu0 0
        %1585 = vmatprep.subr.bf16.mxu0 0
        %1586 = vmatpush1.bf16.msra.mxu0 0
        %1587 = vmatprep.subr.bf16.mxu0 0
        %1588 = vmatpush1.bf16.msra.mxu0 0
        %1589 = vmatprep.subr.bf16.mxu0 0
        %1590 = vmatpush1.bf16.msra.mxu0 0
        %1591 = vmatprep.subr.bf16.mxu0 0
        %1592 = vmatpush1.bf16.msra.mxu0 0
        %1593 = vmatprep.subr.bf16.mxu0 0
        %1594 = vmatpush1.bf16.msra.mxu0 0
        %1595 = vmatprep.subr.bf16.mxu0 0
        %1596 = vmatpush1.bf16.msra.mxu0 0
        %1597 = vmatprep.subr.bf16.mxu0 0
        %1598 = vmatpush1.bf16.msra.mxu0 0
        %1599 = vmatprep.mubr.bf16.mxu0 0
        %1600 = vmatmul.mubr.bf16.gmra.mrb[0].mxu0 %v1562
        %v1601 = vpop.f32.mrb[0].mxu0
        %v1602 = vadd.f32 %v1537, %v1601
        %v1603 = vpop.f32.mrb[0].mxu0
        %v1604 = vadd.f32 %v1537, %v1603
        %v1605 = vpop.f32.mrb[0].mxu0
        %v1606 = vadd.f32 %v1541, %v1605
        %v1607 = vpop.f32.mrb[0].mxu0
        %v1608 = vadd.f32 %v1541, %v1607
        %1609 = vmatprep.mubr.bf16.mxu0 0
        %1610 = vmatmul.mubr.bf16.gmra.mrb[0].mxu0 %v1565
        %v1611 = vpop.f32.mrb[0].mxu0
        %v1612 = vadd.f32 %v1545, %v1611
        %v1613 = vpop.f32.mrb[0].mxu0
        %v1614 = vadd.f32 %v1545, %v1613
        %v1615 = vpop.f32.mrb[0].mxu0
        %v1616 = vadd.f32 %v1549, %v1615
        %v1617 = vpop.f32.mrb[0].mxu0
        %v1618 = vadd.f32 %v1549, %v1617
        %1619 = vdwg.mxu0
        %v1620 = vmul.f32 %v1602, 0.044715
        %v1621 = vmul.f32 %v1604, 0.044715
        %v1622 = vmul.f32 %v1606, 0.044715
        %v1623 = vmul.f32 %v1608, 0.044715
        %v1624 = vmul.f32 %v1612, 0.044715
        %v1625 = vmul.f32 %v1614, 0.044715
        %v1626 = vmul.f32 %v1616, 0.044715
        %v1627 = vmul.f32 %v1618, 0.044715
        %v1628 = vmul.f32 %v1620, %v1602
        %v1629 = vmul.f32 %v1621, %v1604
        %v1630 = vmul.f32 %v1622, %v1606
        %v1631 = vmul.f32 %v1623, %v1608
        %v1632 = vmul.f32 %v1624, %v1612
        %v1633 = vmul.f32 %v1625, %v1614
        %v1634 = vmul.f32 %v1626, %v1616
        %v1635 = vmul.f32 %v1627, %v1618
        %v1636 = vmul.f32 %v1628, %v1602
        %v1637 = vmul.f32 %v1629, %v1604
        %v1638 = vmul.f32 %v1630, %v1606
        %v1639 = vmul.f32 %v1631, %v1608
        %v1640 = vmul.f32 %v1632, %v1612
        %v1641 = vmul.f32 %v1633, %v1614
        %v1642 = vmul.f32 %v1634, %v1616
        %v1643 = vmul.f32 %v1635, %v1618
        %v1644 = vadd.f32 %v1602, %v1636
        %v1645 = vadd.f32 %v1604, %v1637
        %v1646 = vadd.f32 %v1606, %v1638
        %v1647 = vadd.f32 %v1608, %v1639
        %v1648 = vadd.f32 %v1612, %v1640
        %v1649 = vadd.f32 %v1614, %v1641
        %v1650 = vadd.f32 %v1616, %v1642
        %v1651 = vadd.f32 %v1618, %v1643
        %v1652 = vmul.f32 %v1644, 0.7978846
        %v1653 = vmul.f32 %v1645, 0.7978846
        %v1654 = vmul.f32 %v1646, 0.7978846
        %v1655 = vmul.f32 %v1647, 0.7978846
        %v1656 = vmul.f32 %v1648, 0.7978846
        %v1657 = vmul.f32 %v1649, 0.7978846
        %v1658 = vmul.f32 %v1650, 0.7978846
        %v1659 = vmul.f32 %v1651, 0.7978846
        %v1660 = vmul.f32 %v1602, 0.5
        %v1661 = vmul.f32 %v1604, 0.5
        %v1662 = vmul.f32 %v1606, 0.5
        %v1663 = vmul.f32 %v1608, 0.5
        %v1664 = vmul.f32 %v1612, 0.5
        %v1665 = vmul.f32 %v1614, 0.5
        %v1666 = vmul.f32 %v1616, 0.5
        %v1667 = vmul.f32 %v1618, 0.5
        %v1668 = vtanh.pop %v1652
        %v1669 = vtanh.pop %v1653
        %v1670 = vtanh.pop %v1654
        %v1671 = vtanh.pop %v1655
        %v1672 = vtanh.pop %v1656
        %v1673 = vtanh.pop %v1657
        %v1674 = vtanh.pop %v1658
        %v1675 = vtanh.pop %v1659
        %v1676 = vadd.f32 %v1668, 1.0
        %v1677 = vadd.f32 %v1669, 1.0
        %v1678 = vadd.f32 %v1670, 1.0
        %v1679 = vadd.f32 %v1671, 1.0
        %v1680 = vadd.f32 %v1672, 1.0
        %v1681 = vadd.f32 %v1673, 1.0
        %v1682 = vadd.f32 %v1674, 1.0
        %v1683 = vadd.f32 %v1675, 1.0
        %v1684 = vmul.f32 %v1660, %v1676
        %v1685 = vmul.f32 %v1661, %v1677
        %v1686 = vmul.f32 %v1662, %v1678
        %v1687 = vmul.f32 %v1663, %v1679
        %v1688 = vmul.f32 %v1664, %v1680
        %v1689 = vmul.f32 %v1665, %v1681
        %v1690 = vmul.f32 %v1666, %v1682
        %v1691 = vmul.f32 %v1667, %v1683
        %v1692 = vadd.f32 %v315, %v1684
        %v1693 = vadd.f32 %v316, %v1685
        %v1694 = vadd.f32 %v317, %v1686
        %v1695 = vadd.f32 %v318, %v1687
        %v1696 = vadd.f32 %v319, %v1688
        %v1697 = vadd.f32 %v320, %v1689
        %v1698 = vadd.f32 %v321, %v1690
        %v1699 = vadd.f32 %v322, %v1691
        %1700 = vst [vmem:[%s299] sm:$0xff] %v1692
        %1701 = vst [vmem:[%s299 + $0x8] sm:$0xff] %v1693
        %1702 = vst [vmem:[%s299 + $0x10] sm:$0xff] %v1694
        %1703 = vst [vmem:[%s299 + $0x18] sm:$0xff] %v1695
        %1704 = vst [vmem:[%s299 + $0x20] sm:$0xff] %v1696
        %1705 = vst [vmem:[%s299 + $0x28] sm:$0xff] %v1697
        %1706 = vst [vmem:[%s299 + $0x30] sm:$0xff] %v1698
        %1707 = vst [vmem:[%s299 + $0x38] sm:$0xff] %v1699
        %s1708 = scalar_lea.vmem %s263, 64 [#allocation2]
        %v1709 = vld [vmem:[%s1708] sm:$0xff]
        %v1710 = vld [vmem:[%s1708 + $0x8] sm:$0xff]
        %v1711 = vld [vmem:[%s1708 + $0x10] sm:$0xff]
        %v1712 = vld [vmem:[%s1708 + $0x18] sm:$0xff]
        %v1713 = vld [vmem:[%s1708 + $0x20] sm:$0xff]
        %v1714 = vld [vmem:[%s1708 + $0x28] sm:$0xff]
        %v1715 = vld [vmem:[%s1708 + $0x30] sm:$0xff]
        %v1716 = vld [vmem:[%s1708 + $0x38] sm:$0xff]
        %v1717 = vld [vmem:[%s323] sm:$0xff]
        %v1718 = vld [vmem:[%s323 + $0x8] sm:$0xff]
        %v1719 = vld [vmem:[%s323 + $0x10] sm:$0xff]
        %v1720 = vld [vmem:[%s323 + $0x18] sm:$0xff]
        %v1721 = vld [vmem:[%s323 + $0x20] sm:$0xff]
        %v1722 = vld [vmem:[%s323 + $0x28] sm:$0xff]
        %v1723 = vld [vmem:[%s323 + $0x30] sm:$0xff]
        %v1724 = vld [vmem:[%s323 + $0x38] sm:$0xff]
        %v1725 = vmul.f32 %v1709, %v1717
        %v1726 = vmul.f32 %v1710, %v1718
        %v1727 = vmul.f32 %v1711, %v1719
        %v1728 = vmul.f32 %v1712, %v1720
        %v1729 = vmul.f32 %v1713, %v1721
        %v1730 = vmul.f32 %v1714, %v1722
        %v1731 = vmul.f32 %v1715, %v1723
        %v1732 = vmul.f32 %v1716, %v1724
        %1733 = vrot.lane.b32.xlu0 %v1709, 17
        %v1734 = vpop.permute.xlu0 %1733
        %1735 = vrot.lane.b32.xlu0 %v1711, 17
        %v1736 = vpop.permute.xlu0 %1735
        %1737 = vrot.lane.b32.xlu0 %v1713, 17
        %v1738 = vpop.permute.xlu0 %1737
        %1739 = vrot.lane.b32.xlu0 %v1715, 17
        %v1740 = vpop.permute.xlu0 %1739
        %1741 = vrot.lane.b32.xlu0 %v1710, 17
        %v1742 = vpop.permute.xlu0 %1741
        %1743 = vrot.lane.b32.xlu0 %v1712, 17
        %v1744 = vpop.permute.xlu0 %1743
        %1745 = vrot.lane.b32.xlu0 %v1714, 17
        %v1746 = vpop.permute.xlu0 %1745
        %1747 = vrot.lane.b32.xlu0 %v1716, 17
        %v1748 = vpop.permute.xlu0 %1747
        %v1749 = vsel %vm358, %v1734, %v1742
        %v1750 = vsel %vm358, %v1736, %v1744
        %v1751 = vsel %vm358, %v1738, %v1746
        %v1752 = vsel %vm358, %v1740, %v1748
        %v1753 = vsel %vm358, %v1742, %v1734
        %v1754 = vsel %vm358, %v1744, %v1736
        %v1755 = vsel %vm358, %v1746, %v1738
        %v1756 = vsel %vm358, %v1748, %v1740
        %v1757 = vld [vmem:[#allocation5] sm:$0xff]
        %v1758 = vld [vmem:[#allocation5 + $0x8] sm:$0xff]
        %v1759 = vld [vmem:[#allocation5 + $0x10] sm:$0xff]
        %v1760 = vld [vmem:[#allocation5 + $0x18] sm:$0xff]
        %v1761 = vld [vmem:[#allocation5 + $0x20] sm:$0xff]
        %v1762 = vld [vmem:[#allocation5 + $0x28] sm:$0xff]
        %v1763 = vld [vmem:[#allocation5 + $0x30] sm:$0xff]
        %v1764 = vld [vmem:[#allocation5 + $0x38] sm:$0xff]
        %v1765 = vmul.f32 %v1753, %v1757
        %v1766 = vmul.f32 %v1749, %v1758
        %v1767 = vmul.f32 %v1754, %v1759
        %v1768 = vmul.f32 %v1750, %v1760
        %v1769 = vmul.f32 %v1755, %v1761
        %v1770 = vmul.f32 %v1751, %v1762
        %v1771 = vmul.f32 %v1756, %v1763
        %v1772 = vmul.f32 %v1752, %v1764
        %v1773 = vadd.f32 %v1725, %v1765
        %v1774 = vadd.f32 %v1726, %v1766
        %v1775 = vadd.f32 %v1727, %v1767
        %v1776 = vadd.f32 %v1728, %v1768
        %v1777 = vadd.f32 %v1729, %v1769
        %v1778 = vadd.f32 %v1730, %v1770
        %v1779 = vadd.f32 %v1731, %v1771
        %v1780 = vadd.f32 %v1732, %v1772
        %1781 = vrot.lane.b32.xlu0 %v1709, 16
        %v1782 = vpop.permute.xlu0 %1781
        %1783 = vrot.lane.b32.xlu0 %v1711, 16
        %v1784 = vpop.permute.xlu0 %1783
        %1785 = vrot.lane.b32.xlu0 %v1713, 16
        %v1786 = vpop.permute.xlu0 %1785
        %1787 = vrot.lane.b32.xlu0 %v1715, 16
        %v1788 = vpop.permute.xlu0 %1787
        %1789 = vrot.lane.b32.xlu0 %v1710, 16
        %v1790 = vpop.permute.xlu0 %1789
        %1791 = vrot.lane.b32.xlu0 %v1712, 16
        %v1792 = vpop.permute.xlu0 %1791
        %1793 = vrot.lane.b32.xlu0 %v1714, 16
        %v1794 = vpop.permute.xlu0 %1793
        %1795 = vrot.lane.b32.xlu0 %v1716, 16
        %v1796 = vpop.permute.xlu0 %1795
        %v1797 = vsel %vm407, %v1782, %v1790
        %v1798 = vsel %vm407, %v1784, %v1792
        %v1799 = vsel %vm407, %v1786, %v1794
        %v1800 = vsel %vm407, %v1788, %v1796
        %v1801 = vsel %vm407, %v1790, %v1782
        %v1802 = vsel %vm407, %v1792, %v1784
        %v1803 = vsel %vm407, %v1794, %v1786
        %v1804 = vsel %vm407, %v1796, %v1788
        %v1805 = vld [vmem:[%s416] sm:$0xff]
        %v1806 = vld [vmem:[%s416 + $0x8] sm:$0xff]
        %v1807 = vld [vmem:[%s416 + $0x10] sm:$0xff]
        %v1808 = vld [vmem:[%s416 + $0x18] sm:$0xff]
        %v1809 = vld [vmem:[%s416 + $0x20] sm:$0xff]
        %v1810 = vld [vmem:[%s416 + $0x28] sm:$0xff]
        %v1811 = vld [vmem:[%s416 + $0x30] sm:$0xff]
        %v1812 = vld [vmem:[%s416 + $0x38] sm:$0xff]
        %v1813 = vmul.f32 %v1801, %v1805
        %v1814 = vmul.f32 %v1797, %v1806
        %v1815 = vmul.f32 %v1802, %v1807
        %v1816 = vmul.f32 %v1798, %v1808
        %v1817 = vmul.f32 %v1803, %v1809
        %v1818 = vmul.f32 %v1799, %v1810
        %v1819 = vmul.f32 %v1804, %v1811
        %v1820 = vmul.f32 %v1800, %v1812
        %v1821 = vadd.f32 %v1773, %v1813
        %v1822 = vadd.f32 %v1774, %v1814
        %v1823 = vadd.f32 %v1775, %v1815
        %v1824 = vadd.f32 %v1776, %v1816
        %v1825 = vadd.f32 %v1777, %v1817
        %v1826 = vadd.f32 %v1778, %v1818
        %v1827 = vadd.f32 %v1779, %v1819
        %v1828 = vadd.f32 %v1780, %v1820
        %1829 = vrot.lane.b32.xlu0 %v1709, 15
        %v1830 = vpop.permute.xlu0 %1829
        %1831 = vrot.lane.b32.xlu0 %v1711, 15
        %v1832 = vpop.permute.xlu0 %1831
        %1833 = vrot.lane.b32.xlu0 %v1713, 15
        %v1834 = vpop.permute.xlu0 %1833
        %1835 = vrot.lane.b32.xlu0 %v1715, 15
        %v1836 = vpop.permute.xlu0 %1835
        %1837 = vrot.lane.b32.xlu0 %v1710, 15
        %v1838 = vpop.permute.xlu0 %1837
        %1839 = vrot.lane.b32.xlu0 %v1712, 15
        %v1840 = vpop.permute.xlu0 %1839
        %1841 = vrot.lane.b32.xlu0 %v1714, 15
        %v1842 = vpop.permute.xlu0 %1841
        %1843 = vrot.lane.b32.xlu0 %v1716, 15
        %v1844 = vpop.permute.xlu0 %1843
        %v1845 = vsel %vm457, %v1830, %v1838
        %v1846 = vsel %vm457, %v1832, %v1840
        %v1847 = vsel %vm457, %v1834, %v1842
        %v1848 = vsel %vm457, %v1836, %v1844
        %v1849 = vsel %vm457, %v1838, %v1830
        %v1850 = vsel %vm457, %v1840, %v1832
        %v1851 = vsel %vm457, %v1842, %v1834
        %v1852 = vsel %vm457, %v1844, %v1836
        %v1853 = vld [vmem:[%s466] sm:$0xff]
        %v1854 = vld [vmem:[%s466 + $0x8] sm:$0xff]
        %v1855 = vld [vmem:[%s466 + $0x10] sm:$0xff]
        %v1856 = vld [vmem:[%s466 + $0x18] sm:$0xff]
        %v1857 = vld [vmem:[%s466 + $0x20] sm:$0xff]
        %v1858 = vld [vmem:[%s466 + $0x28] sm:$0xff]
        %v1859 = vld [vmem:[%s466 + $0x30] sm:$0xff]
        %v1860 = vld [vmem:[%s466 + $0x38] sm:$0xff]
        %v1861 = vmul.f32 %v1849, %v1853
        %v1862 = vmul.f32 %v1845, %v1854
        %v1863 = vmul.f32 %v1850, %v1855
        %v1864 = vmul.f32 %v1846, %v1856
        %v1865 = vmul.f32 %v1851, %v1857
        %v1866 = vmul.f32 %v1847, %v1858
        %v1867 = vmul.f32 %v1852, %v1859
        %v1868 = vmul.f32 %v1848, %v1860
        %v1869 = vadd.f32 %v1821, %v1861
        %v1870 = vadd.f32 %v1822, %v1862
        %v1871 = vadd.f32 %v1823, %v1863
        %v1872 = vadd.f32 %v1824, %v1864
        %v1873 = vadd.f32 %v1825, %v1865
        %v1874 = vadd.f32 %v1826, %v1866
        %v1875 = vadd.f32 %v1827, %v1867
        %v1876 = vadd.f32 %v1828, %v1868
        %1877 = vrot.lane.b32.xlu0 %v1709, 1
        %v1878 = vpop.permute.xlu0 %1877
        %1879 = vrot.lane.b32.xlu0 %v1711, 1
        %v1880 = vpop.permute.xlu0 %1879
        %1881 = vrot.lane.b32.xlu0 %v1713, 1
        %v1882 = vpop.permute.xlu0 %1881
        %1883 = vrot.lane.b32.xlu0 %v1715, 1
        %v1884 = vpop.permute.xlu0 %1883
        %1885 = vrot.lane.b32.xlu0 %v1710, 1
        %v1886 = vpop.permute.xlu0 %1885
        %1887 = vrot.lane.b32.xlu0 %v1712, 1
        %v1888 = vpop.permute.xlu0 %1887
        %1889 = vrot.lane.b32.xlu0 %v1714, 1
        %v1890 = vpop.permute.xlu0 %1889
        %1891 = vrot.lane.b32.xlu0 %v1716, 1
        %v1892 = vpop.permute.xlu0 %1891
        %v1893 = vsel %vm507, %v1878, %v1886
        %v1894 = vsel %vm507, %v1880, %v1888
        %v1895 = vsel %vm507, %v1882, %v1890
        %v1896 = vsel %vm507, %v1884, %v1892
        %v1897 = vsel %vm507, %v1886, %v1878
        %v1898 = vsel %vm507, %v1888, %v1880
        %v1899 = vsel %vm507, %v1890, %v1882
        %v1900 = vsel %vm507, %v1892, %v1884
        %v1901 = vld [vmem:[%s516] sm:$0xff]
        %v1902 = vld [vmem:[%s516 + $0x8] sm:$0xff]
        %v1903 = vld [vmem:[%s516 + $0x10] sm:$0xff]
        %v1904 = vld [vmem:[%s516 + $0x18] sm:$0xff]
        %v1905 = vld [vmem:[%s516 + $0x20] sm:$0xff]
        %v1906 = vld [vmem:[%s516 + $0x28] sm:$0xff]
        %v1907 = vld [vmem:[%s516 + $0x30] sm:$0xff]
        %v1908 = vld [vmem:[%s516 + $0x38] sm:$0xff]
        %v1909 = vmul.f32 %v1897, %v1901
        %v1910 = vmul.f32 %v1893, %v1902
        %v1911 = vmul.f32 %v1898, %v1903
        %v1912 = vmul.f32 %v1894, %v1904
        %v1913 = vmul.f32 %v1899, %v1905
        %v1914 = vmul.f32 %v1895, %v1906
        %v1915 = vmul.f32 %v1900, %v1907
        %v1916 = vmul.f32 %v1896, %v1908
        %v1917 = vadd.f32 %v1869, %v1909
        %v1918 = vadd.f32 %v1870, %v1910
        %v1919 = vadd.f32 %v1871, %v1911
        %v1920 = vadd.f32 %v1872, %v1912
        %v1921 = vadd.f32 %v1873, %v1913
        %v1922 = vadd.f32 %v1874, %v1914
        %v1923 = vadd.f32 %v1875, %v1915
        %v1924 = vadd.f32 %v1876, %v1916
        %1925 = vrot.lane.b32.xlu0 %v1709, 127
        %v1926 = vpop.permute.xlu0 %1925
        %1927 = vrot.lane.b32.xlu0 %v1711, 127
        %v1928 = vpop.permute.xlu0 %1927
        %1929 = vrot.lane.b32.xlu0 %v1713, 127
        %v1930 = vpop.permute.xlu0 %1929
        %1931 = vrot.lane.b32.xlu0 %v1715, 127
        %v1932 = vpop.permute.xlu0 %1931
        %1933 = vrot.lane.b32.xlu0 %v1710, 127
        %v1934 = vpop.permute.xlu0 %1933
        %1935 = vrot.lane.b32.xlu0 %v1712, 127
        %v1936 = vpop.permute.xlu0 %1935
        %1937 = vrot.lane.b32.xlu0 %v1714, 127
        %v1938 = vpop.permute.xlu0 %1937
        %1939 = vrot.lane.b32.xlu0 %v1716, 127
        %v1940 = vpop.permute.xlu0 %1939
        %v1941 = vsel %vm557, %v1926, %v1934
        %v1942 = vsel %vm557, %v1928, %v1936
        %v1943 = vsel %vm557, %v1930, %v1938
        %v1944 = vsel %vm557, %v1932, %v1940
        %v1945 = vsel %vm557, %v1934, %v1926
        %v1946 = vsel %vm557, %v1936, %v1928
        %v1947 = vsel %vm557, %v1938, %v1930
        %v1948 = vsel %vm557, %v1940, %v1932
        %v1949 = vld [vmem:[%s566] sm:$0xff]
        %v1950 = vld [vmem:[%s566 + $0x8] sm:$0xff]
        %v1951 = vld [vmem:[%s566 + $0x10] sm:$0xff]
        %v1952 = vld [vmem:[%s566 + $0x18] sm:$0xff]
        %v1953 = vld [vmem:[%s566 + $0x20] sm:$0xff]
        %v1954 = vld [vmem:[%s566 + $0x28] sm:$0xff]
        %v1955 = vld [vmem:[%s566 + $0x30] sm:$0xff]
        %v1956 = vld [vmem:[%s566 + $0x38] sm:$0xff]
        %v1957 = vmul.f32 %v1941, %v1949
        %v1958 = vmul.f32 %v1945, %v1950
        %v1959 = vmul.f32 %v1942, %v1951
        %v1960 = vmul.f32 %v1946, %v1952
        %v1961 = vmul.f32 %v1943, %v1953
        %v1962 = vmul.f32 %v1947, %v1954
        %v1963 = vmul.f32 %v1944, %v1955
        %v1964 = vmul.f32 %v1948, %v1956
        %v1965 = vadd.f32 %v1917, %v1957
        %v1966 = vadd.f32 %v1918, %v1958
        %v1967 = vadd.f32 %v1919, %v1959
        %v1968 = vadd.f32 %v1920, %v1960
        %v1969 = vadd.f32 %v1921, %v1961
        %v1970 = vadd.f32 %v1922, %v1962
        %v1971 = vadd.f32 %v1923, %v1963
        %v1972 = vadd.f32 %v1924, %v1964
        %1973 = vrot.lane.b32.xlu0 %v1709, 113
        %v1974 = vpop.permute.xlu0 %1973
        %1975 = vrot.lane.b32.xlu0 %v1711, 113
        %v1976 = vpop.permute.xlu0 %1975
        %1977 = vrot.lane.b32.xlu0 %v1713, 113
        %v1978 = vpop.permute.xlu0 %1977
        %1979 = vrot.lane.b32.xlu0 %v1715, 113
        %v1980 = vpop.permute.xlu0 %1979
        %1981 = vrot.lane.b32.xlu0 %v1710, 113
        %v1982 = vpop.permute.xlu0 %1981
        %1983 = vrot.lane.b32.xlu0 %v1712, 113
        %v1984 = vpop.permute.xlu0 %1983
        %1985 = vrot.lane.b32.xlu0 %v1714, 113
        %v1986 = vpop.permute.xlu0 %1985
        %1987 = vrot.lane.b32.xlu0 %v1716, 113
        %v1988 = vpop.permute.xlu0 %1987
        %v1989 = vsel %vm607, %v1974, %v1982
        %v1990 = vsel %vm607, %v1976, %v1984
        %v1991 = vsel %vm607, %v1978, %v1986
        %v1992 = vsel %vm607, %v1980, %v1988
        %v1993 = vsel %vm607, %v1982, %v1974
        %v1994 = vsel %vm607, %v1984, %v1976
        %v1995 = vsel %vm607, %v1986, %v1978
        %v1996 = vsel %vm607, %v1988, %v1980
        %v1997 = vld [vmem:[%s616] sm:$0xff]
        %v1998 = vld [vmem:[%s616 + $0x8] sm:$0xff]
        %v1999 = vld [vmem:[%s616 + $0x10] sm:$0xff]
        %v2000 = vld [vmem:[%s616 + $0x18] sm:$0xff]
        %v2001 = vld [vmem:[%s616 + $0x20] sm:$0xff]
        %v2002 = vld [vmem:[%s616 + $0x28] sm:$0xff]
        %v2003 = vld [vmem:[%s616 + $0x30] sm:$0xff]
        %v2004 = vld [vmem:[%s616 + $0x38] sm:$0xff]
        %v2005 = vmul.f32 %v1989, %v1997
        %v2006 = vmul.f32 %v1993, %v1998
        %v2007 = vmul.f32 %v1990, %v1999
        %v2008 = vmul.f32 %v1994, %v2000
        %v2009 = vmul.f32 %v1991, %v2001
        %v2010 = vmul.f32 %v1995, %v2002
        %v2011 = vmul.f32 %v1992, %v2003
        %v2012 = vmul.f32 %v1996, %v2004
        %v2013 = vadd.f32 %v1965, %v2005
        %v2014 = vadd.f32 %v1966, %v2006
        %v2015 = vadd.f32 %v1967, %v2007
        %v2016 = vadd.f32 %v1968, %v2008
        %v2017 = vadd.f32 %v1969, %v2009
        %v2018 = vadd.f32 %v1970, %v2010
        %v2019 = vadd.f32 %v1971, %v2011
        %v2020 = vadd.f32 %v1972, %v2012
        %2021 = vrot.lane.b32.xlu0 %v1709, 112
        %v2022 = vpop.permute.xlu0 %2021
        %2023 = vrot.lane.b32.xlu0 %v1711, 112
        %v2024 = vpop.permute.xlu0 %2023
        %2025 = vrot.lane.b32.xlu0 %v1713, 112
        %v2026 = vpop.permute.xlu0 %2025
        %2027 = vrot.lane.b32.xlu0 %v1715, 112
        %v2028 = vpop.permute.xlu0 %2027
        %2029 = vrot.lane.b32.xlu0 %v1710, 112
        %v2030 = vpop.permute.xlu0 %2029
        %2031 = vrot.lane.b32.xlu0 %v1712, 112
        %v2032 = vpop.permute.xlu0 %2031
        %2033 = vrot.lane.b32.xlu0 %v1714, 112
        %v2034 = vpop.permute.xlu0 %2033
        %2035 = vrot.lane.b32.xlu0 %v1716, 112
        %v2036 = vpop.permute.xlu0 %2035
        %v2037 = vsel %vm657, %v2022, %v2030
        %v2038 = vsel %vm657, %v2024, %v2032
        %v2039 = vsel %vm657, %v2026, %v2034
        %v2040 = vsel %vm657, %v2028, %v2036
        %v2041 = vsel %vm657, %v2030, %v2022
        %v2042 = vsel %vm657, %v2032, %v2024
        %v2043 = vsel %vm657, %v2034, %v2026
        %v2044 = vsel %vm657, %v2036, %v2028
        %v2045 = vld [vmem:[%s666] sm:$0xff]
        %v2046 = vld [vmem:[%s666 + $0x8] sm:$0xff]
        %v2047 = vld [vmem:[%s666 + $0x10] sm:$0xff]
        %v2048 = vld [vmem:[%s666 + $0x18] sm:$0xff]
        %v2049 = vld [vmem:[%s666 + $0x20] sm:$0xff]
        %v2050 = vld [vmem:[%s666 + $0x28] sm:$0xff]
        %v2051 = vld [vmem:[%s666 + $0x30] sm:$0xff]
        %v2052 = vld [vmem:[%s666 + $0x38] sm:$0xff]
        %v2053 = vmul.f32 %v2037, %v2045
        %v2054 = vmul.f32 %v2041, %v2046
        %v2055 = vmul.f32 %v2038, %v2047
        %v2056 = vmul.f32 %v2042, %v2048
        %v2057 = vmul.f32 %v2039, %v2049
        %v2058 = vmul.f32 %v2043, %v2050
        %v2059 = vmul.f32 %v2040, %v2051
        %v2060 = vmul.f32 %v2044, %v2052
        %v2061 = vadd.f32 %v2013, %v2053
        %v2062 = vadd.f32 %v2014, %v2054
        %v2063 = vadd.f32 %v2015, %v2055
        %v2064 = vadd.f32 %v2016, %v2056
        %v2065 = vadd.f32 %v2017, %v2057
        %v2066 = vadd.f32 %v2018, %v2058
        %v2067 = vadd.f32 %v2019, %v2059
        %v2068 = vadd.f32 %v2020, %v2060
        %2069 = vrot.lane.b32.xlu0 %v1709, 111
        %v2070 = vpop.permute.xlu0 %2069
        %2071 = vrot.lane.b32.xlu0 %v1711, 111
        %v2072 = vpop.permute.xlu0 %2071
        %2073 = vrot.lane.b32.xlu0 %v1713, 111
        %v2074 = vpop.permute.xlu0 %2073
        %2075 = vrot.lane.b32.xlu0 %v1715, 111
        %v2076 = vpop.permute.xlu0 %2075
        %2077 = vrot.lane.b32.xlu0 %v1710, 111
        %v2078 = vpop.permute.xlu0 %2077
        %2079 = vrot.lane.b32.xlu0 %v1712, 111
        %v2080 = vpop.permute.xlu0 %2079
        %2081 = vrot.lane.b32.xlu0 %v1714, 111
        %v2082 = vpop.permute.xlu0 %2081
        %2083 = vrot.lane.b32.xlu0 %v1716, 111
        %v2084 = vpop.permute.xlu0 %2083
        %v2085 = vsel %vm707, %v2070, %v2078
        %v2086 = vsel %vm707, %v2072, %v2080
        %v2087 = vsel %vm707, %v2074, %v2082
        %v2088 = vsel %vm707, %v2076, %v2084
        %v2089 = vsel %vm707, %v2078, %v2070
        %v2090 = vsel %vm707, %v2080, %v2072
        %v2091 = vsel %vm707, %v2082, %v2074
        %v2092 = vsel %vm707, %v2084, %v2076
        %v2093 = vld [vmem:[%s716] sm:$0xff]
        %v2094 = vld [vmem:[%s716 + $0x8] sm:$0xff]
        %v2095 = vld [vmem:[%s716 + $0x10] sm:$0xff]
        %v2096 = vld [vmem:[%s716 + $0x18] sm:$0xff]
        %v2097 = vld [vmem:[%s716 + $0x20] sm:$0xff]
        %v2098 = vld [vmem:[%s716 + $0x28] sm:$0xff]
        %v2099 = vld [vmem:[%s716 + $0x30] sm:$0xff]
        %v2100 = vld [vmem:[%s716 + $0x38] sm:$0xff]
        %v2101 = vmul.f32 %v2085, %v2093
        %v2102 = vmul.f32 %v2089, %v2094
        %v2103 = vmul.f32 %v2086, %v2095
        %v2104 = vmul.f32 %v2090, %v2096
        %v2105 = vmul.f32 %v2087, %v2097
        %v2106 = vmul.f32 %v2091, %v2098
        %v2107 = vmul.f32 %v2088, %v2099
        %v2108 = vmul.f32 %v2092, %v2100
        %v2109 = vadd.f32 %v2061, %v2101
        %v2110 = vadd.f32 %v2062, %v2102
        %v2111 = vadd.f32 %v2063, %v2103
        %v2112 = vadd.f32 %v2064, %v2104
        %v2113 = vadd.f32 %v2065, %v2105
        %v2114 = vadd.f32 %v2066, %v2106
        %v2115 = vadd.f32 %v2067, %v2107
        %v2116 = vadd.f32 %v2068, %v2108
        %v2117 = vadd.f32 %v2109, %v744
        %v2118 = vadd.f32 %v2110, %v744
        %v2119 = vadd.f32 %v2111, %v749
        %v2120 = vadd.f32 %v2112, %v749
        %v2121 = vadd.f32 %v2113, %v754
        %v2122 = vadd.f32 %v2114, %v754
        %v2123 = vadd.f32 %v2115, %v759
        %v2124 = vadd.f32 %v2116, %v759
        %v2125 = vmul.f32 %v2117, 0.044715
        %v2126 = vmul.f32 %v2118, 0.044715
        %v2127 = vmul.f32 %v2119, 0.044715
        %v2128 = vmul.f32 %v2120, 0.044715
        %v2129 = vmul.f32 %v2121, 0.044715
        %v2130 = vmul.f32 %v2122, 0.044715
        %v2131 = vmul.f32 %v2123, 0.044715
        %v2132 = vmul.f32 %v2124, 0.044715
        %v2133 = vmul.f32 %v2125, %v2117
        %v2134 = vmul.f32 %v2126, %v2118
        %v2135 = vmul.f32 %v2127, %v2119
        %v2136 = vmul.f32 %v2128, %v2120
        %v2137 = vmul.f32 %v2129, %v2121
        %v2138 = vmul.f32 %v2130, %v2122
        %v2139 = vmul.f32 %v2131, %v2123
        %v2140 = vmul.f32 %v2132, %v2124
        %v2141 = vmul.f32 %v2133, %v2117
        %v2142 = vmul.f32 %v2134, %v2118
        %v2143 = vmul.f32 %v2135, %v2119
        %v2144 = vmul.f32 %v2136, %v2120
        %v2145 = vmul.f32 %v2137, %v2121
        %v2146 = vmul.f32 %v2138, %v2122
        %v2147 = vmul.f32 %v2139, %v2123
        %v2148 = vmul.f32 %v2140, %v2124
        %v2149 = vadd.f32 %v2117, %v2141
        %v2150 = vadd.f32 %v2118, %v2142
        %v2151 = vadd.f32 %v2119, %v2143
        %v2152 = vadd.f32 %v2120, %v2144
        %v2153 = vadd.f32 %v2121, %v2145
        %v2154 = vadd.f32 %v2122, %v2146
        %v2155 = vadd.f32 %v2123, %v2147
        %v2156 = vadd.f32 %v2124, %v2148
        %v2157 = vmul.f32 %v2149, 0.7978846
        %v2158 = vmul.f32 %v2150, 0.7978846
        %v2159 = vmul.f32 %v2151, 0.7978846
        %v2160 = vmul.f32 %v2152, 0.7978846
        %v2161 = vmul.f32 %v2153, 0.7978846
        %v2162 = vmul.f32 %v2154, 0.7978846
        %v2163 = vmul.f32 %v2155, 0.7978846
        %v2164 = vmul.f32 %v2156, 0.7978846
        %v2165 = vmul.f32 %v2117, 0.5
        %v2166 = vmul.f32 %v2118, 0.5
        %v2167 = vmul.f32 %v2119, 0.5
        %v2168 = vmul.f32 %v2120, 0.5
        %v2169 = vmul.f32 %v2121, 0.5
        %v2170 = vmul.f32 %v2122, 0.5
        %v2171 = vmul.f32 %v2123, 0.5
        %v2172 = vmul.f32 %v2124, 0.5
        %v2173 = vtanh.pop %v2157
        %v2174 = vtanh.pop %v2158
        %v2175 = vtanh.pop %v2159
        %v2176 = vtanh.pop %v2160
        %v2177 = vtanh.pop %v2161
        %v2178 = vtanh.pop %v2162
        %v2179 = vtanh.pop %v2163
        %v2180 = vtanh.pop %v2164
        %v2181 = vadd.f32 %v2173, 1.0
        %v2182 = vadd.f32 %v2174, 1.0
        %v2183 = vadd.f32 %v2175, 1.0
        %v2184 = vadd.f32 %v2176, 1.0
        %v2185 = vadd.f32 %v2177, 1.0
        %v2186 = vadd.f32 %v2178, 1.0
        %v2187 = vadd.f32 %v2179, 1.0
        %v2188 = vadd.f32 %v2180, 1.0
        %v2189 = vmul.f32 %v2165, %v2181
        %v2190 = vmul.f32 %v2166, %v2182
        %v2191 = vmul.f32 %v2167, %v2183
        %v2192 = vmul.f32 %v2168, %v2184
        %v2193 = vmul.f32 %v2169, %v2185
        %v2194 = vmul.f32 %v2170, %v2186
        %v2195 = vmul.f32 %v2171, %v2187
        %v2196 = vmul.f32 %v2172, %v2188
        %v2197 = vadd.f32 %v2189, %v1709
        %v2198 = vadd.f32 %v2190, %v1710
        %v2199 = vadd.f32 %v2191, %v1711
        %v2200 = vadd.f32 %v2192, %v1712
        %v2201 = vadd.f32 %v2193, %v1713
        %v2202 = vadd.f32 %v2194, %v1714
        %v2203 = vadd.f32 %v2195, %v1715
        %v2204 = vadd.f32 %v2196, %v1716
        %v2205 = vpack.c.bf16 %v2199, %v2197
        %v2206 = vpack.c.bf16 %v2200, %v2198
        %v2207 = vpack.c.bf16 %v2203, %v2201
        %v2208 = vpack.c.bf16 %v2204, %v2202
        %2209 = vmatprep.subr.bf16.mxu0 %v2206
        %2210 = vmatpush1.bf16.msra.mxu0 %v2205
        %2211 = vmatprep.subr.bf16.mxu0 %v2208
        %2212 = vmatpush1.bf16.msra.mxu0 %v2207
        %2213 = vmatprep.subr.bf16.mxu0 0
        %2214 = vmatpush1.bf16.msra.mxu0 0
        %2215 = vmatprep.subr.bf16.mxu0 0
        %2216 = vmatpush1.bf16.msra.mxu0 0
        %2217 = vmatprep.subr.bf16.mxu0 0
        %2218 = vmatpush1.bf16.msra.mxu0 0
        %2219 = vmatprep.subr.bf16.mxu0 0
        %2220 = vmatpush1.bf16.msra.mxu0 0
        %2221 = vmatprep.subr.bf16.mxu0 0
        %2222 = vmatpush1.bf16.msra.mxu0 0
        %2223 = vmatprep.subr.bf16.mxu0 0
        %2224 = vmatpush1.bf16.msra.mxu0 0
        %2225 = vmatprep.subr.bf16.mxu0 0
        %2226 = vmatpush1.bf16.msra.mxu0 0
        %2227 = vmatprep.subr.bf16.mxu0 0
        %2228 = vmatpush1.bf16.msra.mxu0 0
        %2229 = vmatprep.subr.bf16.mxu0 0
        %2230 = vmatpush1.bf16.msra.mxu0 0
        %2231 = vmatprep.subr.bf16.mxu0 0
        %2232 = vmatpush1.bf16.msra.mxu0 0
        %2233 = vmatprep.subr.bf16.mxu0 0
        %2234 = vmatpush1.bf16.msra.mxu0 0
        %2235 = vmatprep.subr.bf16.mxu0 0
        %2236 = vmatpush1.bf16.msra.mxu0 0
        %2237 = vmatprep.subr.bf16.mxu0 0
        %2238 = vmatpush1.bf16.msra.mxu0 0
        %2239 = vmatprep.subr.bf16.mxu0 0
        %2240 = vmatpush1.bf16.msra.mxu0 0
        %2241 = vmatprep.mubr.bf16.mxu0 0
        %2242 = vmatmul.mubr.bf16.gmra.mrb[0].mxu0 %v881
        %v2243 = vpop.f32.mrb[0].mxu0
        %v2244 = vadd.f32 %v855, %v2243
        %v2245 = vpop.f32.mrb[0].mxu0
        %v2246 = vadd.f32 %v855, %v2245
        %v2247 = vpop.f32.mrb[0].mxu0
        %v2248 = vadd.f32 %v859, %v2247
        %v2249 = vpop.f32.mrb[0].mxu0
        %v2250 = vadd.f32 %v859, %v2249
        %2251 = vmatprep.mubr.bf16.mxu0 0
        %2252 = vmatmul.mubr.bf16.gmra.mrb[0].mxu0 %v884
        %v2253 = vpop.f32.mrb[0].mxu0
        %v2254 = vadd.f32 %v863, %v2253
        %v2255 = vpop.f32.mrb[0].mxu0
        %v2256 = vadd.f32 %v863, %v2255
        %v2257 = vpop.f32.mrb[0].mxu0
        %v2258 = vadd.f32 %v867, %v2257
        %v2259 = vpop.f32.mrb[0].mxu0
        %v2260 = vadd.f32 %v867, %v2259
        %2261 = vdwg.mxu0
        %v2262 = vmul.f32 %v2244, 0.044715
        %v2263 = vmul.f32 %v2246, 0.044715
        %v2264 = vmul.f32 %v2248, 0.044715
        %v2265 = vmul.f32 %v2250, 0.044715
        %v2266 = vmul.f32 %v2254, 0.044715
        %v2267 = vmul.f32 %v2256, 0.044715
        %v2268 = vmul.f32 %v2258, 0.044715
        %v2269 = vmul.f32 %v2260, 0.044715
        %v2270 = vmul.f32 %v2262, %v2244
        %v2271 = vmul.f32 %v2263, %v2246
        %v2272 = vmul.f32 %v2264, %v2248
        %v2273 = vmul.f32 %v2265, %v2250
        %v2274 = vmul.f32 %v2266, %v2254
        %v2275 = vmul.f32 %v2267, %v2256
        %v2276 = vmul.f32 %v2268, %v2258
        %v2277 = vmul.f32 %v2269, %v2260
        %v2278 = vmul.f32 %v2270, %v2244
        %v2279 = vmul.f32 %v2271, %v2246
        %v2280 = vmul.f32 %v2272, %v2248
        %v2281 = vmul.f32 %v2273, %v2250
        %v2282 = vmul.f32 %v2274, %v2254
        %v2283 = vmul.f32 %v2275, %v2256
        %v2284 = vmul.f32 %v2276, %v2258
        %v2285 = vmul.f32 %v2277, %v2260
        %v2286 = vadd.f32 %v2244, %v2278
        %v2287 = vadd.f32 %v2246, %v2279
        %v2288 = vadd.f32 %v2248, %v2280
        %v2289 = vadd.f32 %v2250, %v2281
        %v2290 = vadd.f32 %v2254, %v2282
        %v2291 = vadd.f32 %v2256, %v2283
        %v2292 = vadd.f32 %v2258, %v2284
        %v2293 = vadd.f32 %v2260, %v2285
        %v2294 = vmul.f32 %v2286, 0.7978846
        %v2295 = vmul.f32 %v2287, 0.7978846
        %v2296 = vmul.f32 %v2288, 0.7978846
        %v2297 = vmul.f32 %v2289, 0.7978846
        %v2298 = vmul.f32 %v2290, 0.7978846
        %v2299 = vmul.f32 %v2291, 0.7978846
        %v2300 = vmul.f32 %v2292, 0.7978846
        %v2301 = vmul.f32 %v2293, 0.7978846
        %v2302 = vmul.f32 %v2244, 0.5
        %v2303 = vmul.f32 %v2246, 0.5
        %v2304 = vmul.f32 %v2248, 0.5
        %v2305 = vmul.f32 %v2250, 0.5
        %v2306 = vmul.f32 %v2254, 0.5
        %v2307 = vmul.f32 %v2256, 0.5
        %v2308 = vmul.f32 %v2258, 0.5
        %v2309 = vmul.f32 %v2260, 0.5
        %v2310 = vtanh.pop %v2294
        %v2311 = vtanh.pop %v2295
        %v2312 = vtanh.pop %v2296
        %v2313 = vtanh.pop %v2297
        %v2314 = vtanh.pop %v2298
        %v2315 = vtanh.pop %v2299
        %v2316 = vtanh.pop %v2300
        %v2317 = vtanh.pop %v2301
        %v2318 = vadd.f32 %v2310, 1.0
        %v2319 = vadd.f32 %v2311, 1.0
        %v2320 = vadd.f32 %v2312, 1.0
        %v2321 = vadd.f32 %v2313, 1.0
        %v2322 = vadd.f32 %v2314, 1.0
        %v2323 = vadd.f32 %v2315, 1.0
        %v2324 = vadd.f32 %v2316, 1.0
        %v2325 = vadd.f32 %v2317, 1.0
        %v2326 = vmul.f32 %v2302, %v2318
        %v2327 = vmul.f32 %v2303, %v2319
        %v2328 = vmul.f32 %v2304, %v2320
        %v2329 = vmul.f32 %v2305, %v2321
        %v2330 = vmul.f32 %v2306, %v2322
        %v2331 = vmul.f32 %v2307, %v2323
        %v2332 = vmul.f32 %v2308, %v2324
        %v2333 = vmul.f32 %v2309, %v2325
        %v2334 = vadd.f32 %v1709, %v2326
        %v2335 = vadd.f32 %v1710, %v2327
        %v2336 = vadd.f32 %v1711, %v2328
        %v2337 = vadd.f32 %v1712, %v2329
        %v2338 = vadd.f32 %v1713, %v2330
        %v2339 = vadd.f32 %v1714, %v2331
        %v2340 = vadd.f32 %v1715, %v2332
        %v2341 = vadd.f32 %v1716, %v2333
        %v2342 = vld [vmem:[%s1019] sm:$0xff]
        %v2343 = vld [vmem:[%s1019 + $0x8] sm:$0xff]
        %v2344 = vld [vmem:[%s1019 + $0x10] sm:$0xff]
        %v2345 = vld [vmem:[%s1019 + $0x18] sm:$0xff]
        %v2346 = vld [vmem:[%s1019 + $0x20] sm:$0xff]
        %v2347 = vld [vmem:[%s1019 + $0x28] sm:$0xff]
        %v2348 = vld [vmem:[%s1019 + $0x30] sm:$0xff]
        %v2349 = vld [vmem:[%s1019 + $0x38] sm:$0xff]
        %v2350 = vmul.f32 %v2334, %v2342
        %v2351 = vmul.f32 %v2335, %v2343
        %v2352 = vmul.f32 %v2336, %v2344
        %v2353 = vmul.f32 %v2337, %v2345
        %v2354 = vmul.f32 %v2338, %v2346
        %v2355 = vmul.f32 %v2339, %v2347
        %v2356 = vmul.f32 %v2340, %v2348
        %v2357 = vmul.f32 %v2341, %v2349
        %2358 = vrot.lane.b32.xlu0 %v2334, 17
        %v2359 = vpop.permute.xlu0 %2358
        %2360 = vrot.lane.b32.xlu0 %v2336, 17
        %v2361 = vpop.permute.xlu0 %2360
        %2362 = vrot.lane.b32.xlu0 %v2338, 17
        %v2363 = vpop.permute.xlu0 %2362
        %2364 = vrot.lane.b32.xlu0 %v2340, 17
        %v2365 = vpop.permute.xlu0 %2364
        %2366 = vrot.lane.b32.xlu0 %v2335, 17
        %v2367 = vpop.permute.xlu0 %2366
        %2368 = vrot.lane.b32.xlu0 %v2337, 17
        %v2369 = vpop.permute.xlu0 %2368
        %2370 = vrot.lane.b32.xlu0 %v2339, 17
        %v2371 = vpop.permute.xlu0 %2370
        %2372 = vrot.lane.b32.xlu0 %v2341, 17
        %v2373 = vpop.permute.xlu0 %2372
        %v2374 = vsel %vm358, %v2359, %v2367
        %v2375 = vsel %vm358, %v2361, %v2369
        %v2376 = vsel %vm358, %v2363, %v2371
        %v2377 = vsel %vm358, %v2365, %v2373
        %v2378 = vsel %vm358, %v2367, %v2359
        %v2379 = vsel %vm358, %v2369, %v2361
        %v2380 = vsel %vm358, %v2371, %v2363
        %v2381 = vsel %vm358, %v2373, %v2365
        %v2382 = vld [vmem:[#allocation7] sm:$0xff]
        %v2383 = vld [vmem:[#allocation7 + $0x8] sm:$0xff]
        %v2384 = vld [vmem:[#allocation7 + $0x10] sm:$0xff]
        %v2385 = vld [vmem:[#allocation7 + $0x18] sm:$0xff]
        %v2386 = vld [vmem:[#allocation7 + $0x20] sm:$0xff]
        %v2387 = vld [vmem:[#allocation7 + $0x28] sm:$0xff]
        %v2388 = vld [vmem:[#allocation7 + $0x30] sm:$0xff]
        %v2389 = vld [vmem:[#allocation7 + $0x38] sm:$0xff]
        %v2390 = vmul.f32 %v2378, %v2382
        %v2391 = vmul.f32 %v2374, %v2383
        %v2392 = vmul.f32 %v2379, %v2384
        %v2393 = vmul.f32 %v2375, %v2385
        %v2394 = vmul.f32 %v2380, %v2386
        %v2395 = vmul.f32 %v2376, %v2387
        %v2396 = vmul.f32 %v2381, %v2388
        %v2397 = vmul.f32 %v2377, %v2389
        %v2398 = vadd.f32 %v2350, %v2390
        %v2399 = vadd.f32 %v2351, %v2391
        %v2400 = vadd.f32 %v2352, %v2392
        %v2401 = vadd.f32 %v2353, %v2393
        %v2402 = vadd.f32 %v2354, %v2394
        %v2403 = vadd.f32 %v2355, %v2395
        %v2404 = vadd.f32 %v2356, %v2396
        %v2405 = vadd.f32 %v2357, %v2397
        %2406 = vrot.lane.b32.xlu0 %v2334, 16
        %v2407 = vpop.permute.xlu0 %2406
        %2408 = vrot.lane.b32.xlu0 %v2336, 16
        %v2409 = vpop.permute.xlu0 %2408
        %2410 = vrot.lane.b32.xlu0 %v2338, 16
        %v2411 = vpop.permute.xlu0 %2410
        %2412 = vrot.lane.b32.xlu0 %v2340, 16
        %v2413 = vpop.permute.xlu0 %2412
        %2414 = vrot.lane.b32.xlu0 %v2335, 16
        %v2415 = vpop.permute.xlu0 %2414
        %2416 = vrot.lane.b32.xlu0 %v2337, 16
        %v2417 = vpop.permute.xlu0 %2416
        %2418 = vrot.lane.b32.xlu0 %v2339, 16
        %v2419 = vpop.permute.xlu0 %2418
        %2420 = vrot.lane.b32.xlu0 %v2341, 16
        %v2421 = vpop.permute.xlu0 %2420
        %v2422 = vsel %vm407, %v2407, %v2415
        %v2423 = vsel %vm407, %v2409, %v2417
        %v2424 = vsel %vm407, %v2411, %v2419
        %v2425 = vsel %vm407, %v2413, %v2421
        %v2426 = vsel %vm407, %v2415, %v2407
        %v2427 = vsel %vm407, %v2417, %v2409
        %v2428 = vsel %vm407, %v2419, %v2411
        %v2429 = vsel %vm407, %v2421, %v2413
        %v2430 = vld [vmem:[%s1108] sm:$0xff]
        %v2431 = vld [vmem:[%s1108 + $0x8] sm:$0xff]
        %v2432 = vld [vmem:[%s1108 + $0x10] sm:$0xff]
        %v2433 = vld [vmem:[%s1108 + $0x18] sm:$0xff]
        %v2434 = vld [vmem:[%s1108 + $0x20] sm:$0xff]
        %v2435 = vld [vmem:[%s1108 + $0x28] sm:$0xff]
        %v2436 = vld [vmem:[%s1108 + $0x30] sm:$0xff]
        %v2437 = vld [vmem:[%s1108 + $0x38] sm:$0xff]
        %v2438 = vmul.f32 %v2426, %v2430
        %v2439 = vmul.f32 %v2422, %v2431
        %v2440 = vmul.f32 %v2427, %v2432
        %v2441 = vmul.f32 %v2423, %v2433
        %v2442 = vmul.f32 %v2428, %v2434
        %v2443 = vmul.f32 %v2424, %v2435
        %v2444 = vmul.f32 %v2429, %v2436
        %v2445 = vmul.f32 %v2425, %v2437
        %v2446 = vadd.f32 %v2398, %v2438
        %v2447 = vadd.f32 %v2399, %v2439
        %v2448 = vadd.f32 %v2400, %v2440
        %v2449 = vadd.f32 %v2401, %v2441
        %v2450 = vadd.f32 %v2402, %v2442
        %v2451 = vadd.f32 %v2403, %v2443
        %v2452 = vadd.f32 %v2404, %v2444
        %v2453 = vadd.f32 %v2405, %v2445
        %2454 = vrot.lane.b32.xlu0 %v2334, 15
        %v2455 = vpop.permute.xlu0 %2454
        %2456 = vrot.lane.b32.xlu0 %v2336, 15
        %v2457 = vpop.permute.xlu0 %2456
        %2458 = vrot.lane.b32.xlu0 %v2338, 15
        %v2459 = vpop.permute.xlu0 %2458
        %2460 = vrot.lane.b32.xlu0 %v2340, 15
        %v2461 = vpop.permute.xlu0 %2460
        %2462 = vrot.lane.b32.xlu0 %v2335, 15
        %v2463 = vpop.permute.xlu0 %2462
        %2464 = vrot.lane.b32.xlu0 %v2337, 15
        %v2465 = vpop.permute.xlu0 %2464
        %2466 = vrot.lane.b32.xlu0 %v2339, 15
        %v2467 = vpop.permute.xlu0 %2466
        %2468 = vrot.lane.b32.xlu0 %v2341, 15
        %v2469 = vpop.permute.xlu0 %2468
        %v2470 = vsel %vm457, %v2455, %v2463
        %v2471 = vsel %vm457, %v2457, %v2465
        %v2472 = vsel %vm457, %v2459, %v2467
        %v2473 = vsel %vm457, %v2461, %v2469
        %v2474 = vsel %vm457, %v2463, %v2455
        %v2475 = vsel %vm457, %v2465, %v2457
        %v2476 = vsel %vm457, %v2467, %v2459
        %v2477 = vsel %vm457, %v2469, %v2461
        %v2478 = vld [vmem:[%s1157] sm:$0xff]
        %v2479 = vld [vmem:[%s1157 + $0x8] sm:$0xff]
        %v2480 = vld [vmem:[%s1157 + $0x10] sm:$0xff]
        %v2481 = vld [vmem:[%s1157 + $0x18] sm:$0xff]
        %v2482 = vld [vmem:[%s1157 + $0x20] sm:$0xff]
        %v2483 = vld [vmem:[%s1157 + $0x28] sm:$0xff]
        %v2484 = vld [vmem:[%s1157 + $0x30] sm:$0xff]
        %v2485 = vld [vmem:[%s1157 + $0x38] sm:$0xff]
        %v2486 = vmul.f32 %v2474, %v2478
        %v2487 = vmul.f32 %v2470, %v2479
        %v2488 = vmul.f32 %v2475, %v2480
        %v2489 = vmul.f32 %v2471, %v2481
        %v2490 = vmul.f32 %v2476, %v2482
        %v2491 = vmul.f32 %v2472, %v2483
        %v2492 = vmul.f32 %v2477, %v2484
        %v2493 = vmul.f32 %v2473, %v2485
        %v2494 = vadd.f32 %v2446, %v2486
        %v2495 = vadd.f32 %v2447, %v2487
        %v2496 = vadd.f32 %v2448, %v2488
        %v2497 = vadd.f32 %v2449, %v2489
        %v2498 = vadd.f32 %v2450, %v2490
        %v2499 = vadd.f32 %v2451, %v2491
        %v2500 = vadd.f32 %v2452, %v2492
        %v2501 = vadd.f32 %v2453, %v2493
        %2502 = vrot.lane.b32.xlu0 %v2334, 1
        %v2503 = vpop.permute.xlu0 %2502
        %2504 = vrot.lane.b32.xlu0 %v2336, 1
        %v2505 = vpop.permute.xlu0 %2504
        %2506 = vrot.lane.b32.xlu0 %v2338, 1
        %v2507 = vpop.permute.xlu0 %2506
        %2508 = vrot.lane.b32.xlu0 %v2340, 1
        %v2509 = vpop.permute.xlu0 %2508
        %2510 = vrot.lane.b32.xlu0 %v2335, 1
        %v2511 = vpop.permute.xlu0 %2510
        %2512 = vrot.lane.b32.xlu0 %v2337, 1
        %v2513 = vpop.permute.xlu0 %2512
        %2514 = vrot.lane.b32.xlu0 %v2339, 1
        %v2515 = vpop.permute.xlu0 %2514
        %2516 = vrot.lane.b32.xlu0 %v2341, 1
        %v2517 = vpop.permute.xlu0 %2516
        %v2518 = vsel %vm507, %v2503, %v2511
        %v2519 = vsel %vm507, %v2505, %v2513
        %v2520 = vsel %vm507, %v2507, %v2515
        %v2521 = vsel %vm507, %v2509, %v2517
        %v2522 = vsel %vm507, %v2511, %v2503
        %v2523 = vsel %vm507, %v2513, %v2505
        %v2524 = vsel %vm507, %v2515, %v2507
        %v2525 = vsel %vm507, %v2517, %v2509
        %v2526 = vld [vmem:[%s1206] sm:$0xff]
        %v2527 = vld [vmem:[%s1206 + $0x8] sm:$0xff]
        %v2528 = vld [vmem:[%s1206 + $0x10] sm:$0xff]
        %v2529 = vld [vmem:[%s1206 + $0x18] sm:$0xff]
        %v2530 = vld [vmem:[%s1206 + $0x20] sm:$0xff]
        %v2531 = vld [vmem:[%s1206 + $0x28] sm:$0xff]
        %v2532 = vld [vmem:[%s1206 + $0x30] sm:$0xff]
        %v2533 = vld [vmem:[%s1206 + $0x38] sm:$0xff]
        %v2534 = vmul.f32 %v2522, %v2526
        %v2535 = vmul.f32 %v2518, %v2527
        %v2536 = vmul.f32 %v2523, %v2528
        %v2537 = vmul.f32 %v2519, %v2529
        %v2538 = vmul.f32 %v2524, %v2530
        %v2539 = vmul.f32 %v2520, %v2531
        %v2540 = vmul.f32 %v2525, %v2532
        %v2541 = vmul.f32 %v2521, %v2533
        %v2542 = vadd.f32 %v2494, %v2534
        %v2543 = vadd.f32 %v2495, %v2535
        %v2544 = vadd.f32 %v2496, %v2536
        %v2545 = vadd.f32 %v2497, %v2537
        %v2546 = vadd.f32 %v2498, %v2538
        %v2547 = vadd.f32 %v2499, %v2539
        %v2548 = vadd.f32 %v2500, %v2540
        %v2549 = vadd.f32 %v2501, %v2541
        %2550 = vrot.lane.b32.xlu0 %v2334, 127
        %v2551 = vpop.permute.xlu0 %2550
        %2552 = vrot.lane.b32.xlu0 %v2336, 127
        %v2553 = vpop.permute.xlu0 %2552
        %2554 = vrot.lane.b32.xlu0 %v2338, 127
        %v2555 = vpop.permute.xlu0 %2554
        %2556 = vrot.lane.b32.xlu0 %v2340, 127
        %v2557 = vpop.permute.xlu0 %2556
        %2558 = vrot.lane.b32.xlu0 %v2335, 127
        %v2559 = vpop.permute.xlu0 %2558
        %2560 = vrot.lane.b32.xlu0 %v2337, 127
        %v2561 = vpop.permute.xlu0 %2560
        %2562 = vrot.lane.b32.xlu0 %v2339, 127
        %v2563 = vpop.permute.xlu0 %2562
        %2564 = vrot.lane.b32.xlu0 %v2341, 127
        %v2565 = vpop.permute.xlu0 %2564
        %v2566 = vsel %vm557, %v2551, %v2559
        %v2567 = vsel %vm557, %v2553, %v2561
        %v2568 = vsel %vm557, %v2555, %v2563
        %v2569 = vsel %vm557, %v2557, %v2565
        %v2570 = vsel %vm557, %v2559, %v2551
        %v2571 = vsel %vm557, %v2561, %v2553
        %v2572 = vsel %vm557, %v2563, %v2555
        %v2573 = vsel %vm557, %v2565, %v2557
        %v2574 = vld [vmem:[%s1255] sm:$0xff]
        %v2575 = vld [vmem:[%s1255 + $0x8] sm:$0xff]
        %v2576 = vld [vmem:[%s1255 + $0x10] sm:$0xff]
        %v2577 = vld [vmem:[%s1255 + $0x18] sm:$0xff]
        %v2578 = vld [vmem:[%s1255 + $0x20] sm:$0xff]
        %v2579 = vld [vmem:[%s1255 + $0x28] sm:$0xff]
        %v2580 = vld [vmem:[%s1255 + $0x30] sm:$0xff]
        %v2581 = vld [vmem:[%s1255 + $0x38] sm:$0xff]
        %v2582 = vmul.f32 %v2566, %v2574
        %v2583 = vmul.f32 %v2570, %v2575
        %v2584 = vmul.f32 %v2567, %v2576
        %v2585 = vmul.f32 %v2571, %v2577
        %v2586 = vmul.f32 %v2568, %v2578
        %v2587 = vmul.f32 %v2572, %v2579
        %v2588 = vmul.f32 %v2569, %v2580
        %v2589 = vmul.f32 %v2573, %v2581
        %v2590 = vadd.f32 %v2542, %v2582
        %v2591 = vadd.f32 %v2543, %v2583
        %v2592 = vadd.f32 %v2544, %v2584
        %v2593 = vadd.f32 %v2545, %v2585
        %v2594 = vadd.f32 %v2546, %v2586
        %v2595 = vadd.f32 %v2547, %v2587
        %v2596 = vadd.f32 %v2548, %v2588
        %v2597 = vadd.f32 %v2549, %v2589
        %2598 = vrot.lane.b32.xlu0 %v2334, 113
        %v2599 = vpop.permute.xlu0 %2598
        %2600 = vrot.lane.b32.xlu0 %v2336, 113
        %v2601 = vpop.permute.xlu0 %2600
        %2602 = vrot.lane.b32.xlu0 %v2338, 113
        %v2603 = vpop.permute.xlu0 %2602
        %2604 = vrot.lane.b32.xlu0 %v2340, 113
        %v2605 = vpop.permute.xlu0 %2604
        %2606 = vrot.lane.b32.xlu0 %v2335, 113
        %v2607 = vpop.permute.xlu0 %2606
        %2608 = vrot.lane.b32.xlu0 %v2337, 113
        %v2609 = vpop.permute.xlu0 %2608
        %2610 = vrot.lane.b32.xlu0 %v2339, 113
        %v2611 = vpop.permute.xlu0 %2610
        %2612 = vrot.lane.b32.xlu0 %v2341, 113
        %v2613 = vpop.permute.xlu0 %2612
        %v2614 = vsel %vm607, %v2599, %v2607
        %v2615 = vsel %vm607, %v2601, %v2609
        %v2616 = vsel %vm607, %v2603, %v2611
        %v2617 = vsel %vm607, %v2605, %v2613
        %v2618 = vsel %vm607, %v2607, %v2599
        %v2619 = vsel %vm607, %v2609, %v2601
        %v2620 = vsel %vm607, %v2611, %v2603
        %v2621 = vsel %vm607, %v2613, %v2605
        %v2622 = vld [vmem:[%s1304] sm:$0xff]
        %v2623 = vld [vmem:[%s1304 + $0x8] sm:$0xff]
        %v2624 = vld [vmem:[%s1304 + $0x10] sm:$0xff]
        %v2625 = vld [vmem:[%s1304 + $0x18] sm:$0xff]
        %v2626 = vld [vmem:[%s1304 + $0x20] sm:$0xff]
        %v2627 = vld [vmem:[%s1304 + $0x28] sm:$0xff]
        %v2628 = vld [vmem:[%s1304 + $0x30] sm:$0xff]
        %v2629 = vld [vmem:[%s1304 + $0x38] sm:$0xff]
        %v2630 = vmul.f32 %v2614, %v2622
        %v2631 = vmul.f32 %v2618, %v2623
        %v2632 = vmul.f32 %v2615, %v2624
        %v2633 = vmul.f32 %v2619, %v2625
        %v2634 = vmul.f32 %v2616, %v2626
        %v2635 = vmul.f32 %v2620, %v2627
        %v2636 = vmul.f32 %v2617, %v2628
        %v2637 = vmul.f32 %v2621, %v2629
        %v2638 = vadd.f32 %v2590, %v2630
        %v2639 = vadd.f32 %v2591, %v2631
        %v2640 = vadd.f32 %v2592, %v2632
        %v2641 = vadd.f32 %v2593, %v2633
        %v2642 = vadd.f32 %v2594, %v2634
        %v2643 = vadd.f32 %v2595, %v2635
        %v2644 = vadd.f32 %v2596, %v2636
        %v2645 = vadd.f32 %v2597, %v2637
        %2646 = vrot.lane.b32.xlu0 %v2334, 112
        %v2647 = vpop.permute.xlu0 %2646
        %2648 = vrot.lane.b32.xlu0 %v2336, 112
        %v2649 = vpop.permute.xlu0 %2648
        %2650 = vrot.lane.b32.xlu0 %v2338, 112
        %v2651 = vpop.permute.xlu0 %2650
        %2652 = vrot.lane.b32.xlu0 %v2340, 112
        %v2653 = vpop.permute.xlu0 %2652
        %2654 = vrot.lane.b32.xlu0 %v2335, 112
        %v2655 = vpop.permute.xlu0 %2654
        %2656 = vrot.lane.b32.xlu0 %v2337, 112
        %v2657 = vpop.permute.xlu0 %2656
        %2658 = vrot.lane.b32.xlu0 %v2339, 112
        %v2659 = vpop.permute.xlu0 %2658
        %2660 = vrot.lane.b32.xlu0 %v2341, 112
        %v2661 = vpop.permute.xlu0 %2660
        %v2662 = vsel %vm657, %v2647, %v2655
        %v2663 = vsel %vm657, %v2649, %v2657
        %v2664 = vsel %vm657, %v2651, %v2659
        %v2665 = vsel %vm657, %v2653, %v2661
        %v2666 = vsel %vm657, %v2655, %v2647
        %v2667 = vsel %vm657, %v2657, %v2649
        %v2668 = vsel %vm657, %v2659, %v2651
        %v2669 = vsel %vm657, %v2661, %v2653
        %v2670 = vld [vmem:[%s1353] sm:$0xff]
        %v2671 = vld [vmem:[%s1353 + $0x8] sm:$0xff]
        %v2672 = vld [vmem:[%s1353 + $0x10] sm:$0xff]
        %v2673 = vld [vmem:[%s1353 + $0x18] sm:$0xff]
        %v2674 = vld [vmem:[%s1353 + $0x20] sm:$0xff]
        %v2675 = vld [vmem:[%s1353 + $0x28] sm:$0xff]
        %v2676 = vld [vmem:[%s1353 + $0x30] sm:$0xff]
        %v2677 = vld [vmem:[%s1353 + $0x38] sm:$0xff]
        %v2678 = vmul.f32 %v2662, %v2670
        %v2679 = vmul.f32 %v2666, %v2671
        %v2680 = vmul.f32 %v2663, %v2672
        %v2681 = vmul.f32 %v2667, %v2673
        %v2682 = vmul.f32 %v2664, %v2674
        %v2683 = vmul.f32 %v2668, %v2675
        %v2684 = vmul.f32 %v2665, %v2676
        %v2685 = vmul.f32 %v2669, %v2677
        %v2686 = vadd.f32 %v2638, %v2678
        %v2687 = vadd.f32 %v2639, %v2679
        %v2688 = vadd.f32 %v2640, %v2680
        %v2689 = vadd.f32 %v2641, %v2681
        %v2690 = vadd.f32 %v2642, %v2682
        %v2691 = vadd.f32 %v2643, %v2683
        %v2692 = vadd.f32 %v2644, %v2684
        %v2693 = vadd.f32 %v2645, %v2685
        %2694 = vrot.lane.b32.xlu0 %v2334, 111
        %v2695 = vpop.permute.xlu0 %2694
        %2696 = vrot.lane.b32.xlu0 %v2336, 111
        %v2697 = vpop.permute.xlu0 %2696
        %2698 = vrot.lane.b32.xlu0 %v2338, 111
        %v2699 = vpop.permute.xlu0 %2698
        %2700 = vrot.lane.b32.xlu0 %v2340, 111
        %v2701 = vpop.permute.xlu0 %2700
        %2702 = vrot.lane.b32.xlu0 %v2335, 111
        %v2703 = vpop.permute.xlu0 %2702
        %2704 = vrot.lane.b32.xlu0 %v2337, 111
        %v2705 = vpop.permute.xlu0 %2704
        %2706 = vrot.lane.b32.xlu0 %v2339, 111
        %v2707 = vpop.permute.xlu0 %2706
        %2708 = vrot.lane.b32.xlu0 %v2341, 111
        %v2709 = vpop.permute.xlu0 %2708
        %v2710 = vsel %vm707, %v2695, %v2703
        %v2711 = vsel %vm707, %v2697, %v2705
        %v2712 = vsel %vm707, %v2699, %v2707
        %v2713 = vsel %vm707, %v2701, %v2709
        %v2714 = vsel %vm707, %v2703, %v2695
        %v2715 = vsel %vm707, %v2705, %v2697
        %v2716 = vsel %vm707, %v2707, %v2699
        %v2717 = vsel %vm707, %v2709, %v2701
        %v2718 = vld [vmem:[%s1402] sm:$0xff]
        %v2719 = vld [vmem:[%s1402 + $0x8] sm:$0xff]
        %v2720 = vld [vmem:[%s1402 + $0x10] sm:$0xff]
        %v2721 = vld [vmem:[%s1402 + $0x18] sm:$0xff]
        %v2722 = vld [vmem:[%s1402 + $0x20] sm:$0xff]
        %v2723 = vld [vmem:[%s1402 + $0x28] sm:$0xff]
        %v2724 = vld [vmem:[%s1402 + $0x30] sm:$0xff]
        %v2725 = vld [vmem:[%s1402 + $0x38] sm:$0xff]
        %v2726 = vmul.f32 %v2710, %v2718
        %v2727 = vmul.f32 %v2714, %v2719
        %v2728 = vmul.f32 %v2711, %v2720
        %v2729 = vmul.f32 %v2715, %v2721
        %v2730 = vmul.f32 %v2712, %v2722
        %v2731 = vmul.f32 %v2716, %v2723
        %v2732 = vmul.f32 %v2713, %v2724
        %v2733 = vmul.f32 %v2717, %v2725
        %v2734 = vadd.f32 %v2686, %v2726
        %v2735 = vadd.f32 %v2687, %v2727
        %v2736 = vadd.f32 %v2688, %v2728
        %v2737 = vadd.f32 %v2689, %v2729
        %v2738 = vadd.f32 %v2690, %v2730
        %v2739 = vadd.f32 %v2691, %v2731
        %v2740 = vadd.f32 %v2692, %v2732
        %v2741 = vadd.f32 %v2693, %v2733
        %v2742 = vadd.f32 %v2734, %v1429
        %v2743 = vadd.f32 %v2735, %v1429
        %v2744 = vadd.f32 %v2736, %v1433
        %v2745 = vadd.f32 %v2737, %v1433
        %v2746 = vadd.f32 %v2738, %v1437
        %v2747 = vadd.f32 %v2739, %v1437
        %v2748 = vadd.f32 %v2740, %v1441
        %v2749 = vadd.f32 %v2741, %v1441
        %v2750 = vmul.f32 %v2742, 0.044715
        %v2751 = vmul.f32 %v2743, 0.044715
        %v2752 = vmul.f32 %v2744, 0.044715
        %v2753 = vmul.f32 %v2745, 0.044715
        %v2754 = vmul.f32 %v2746, 0.044715
        %v2755 = vmul.f32 %v2747, 0.044715
        %v2756 = vmul.f32 %v2748, 0.044715
        %v2757 = vmul.f32 %v2749, 0.044715
        %v2758 = vmul.f32 %v2750, %v2742
        %v2759 = vmul.f32 %v2751, %v2743
        %v2760 = vmul.f32 %v2752, %v2744
        %v2761 = vmul.f32 %v2753, %v2745
        %v2762 = vmul.f32 %v2754, %v2746
        %v2763 = vmul.f32 %v2755, %v2747
        %v2764 = vmul.f32 %v2756, %v2748
        %v2765 = vmul.f32 %v2757, %v2749
        %v2766 = vmul.f32 %v2758, %v2742
        %v2767 = vmul.f32 %v2759, %v2743
        %v2768 = vmul.f32 %v2760, %v2744
        %v2769 = vmul.f32 %v2761, %v2745
        %v2770 = vmul.f32 %v2762, %v2746
        %v2771 = vmul.f32 %v2763, %v2747
        %v2772 = vmul.f32 %v2764, %v2748
        %v2773 = vmul.f32 %v2765, %v2749
        %v2774 = vadd.f32 %v2742, %v2766
        %v2775 = vadd.f32 %v2743, %v2767
        %v2776 = vadd.f32 %v2744, %v2768
        %v2777 = vadd.f32 %v2745, %v2769
        %v2778 = vadd.f32 %v2746, %v2770
        %v2779 = vadd.f32 %v2747, %v2771
        %v2780 = vadd.f32 %v2748, %v2772
        %v2781 = vadd.f32 %v2749, %v2773
        %v2782 = vmul.f32 %v2774, 0.7978846
        %v2783 = vmul.f32 %v2775, 0.7978846
        %v2784 = vmul.f32 %v2776, 0.7978846
        %v2785 = vmul.f32 %v2777, 0.7978846
        %v2786 = vmul.f32 %v2778, 0.7978846
        %v2787 = vmul.f32 %v2779, 0.7978846
        %v2788 = vmul.f32 %v2780, 0.7978846
        %v2789 = vmul.f32 %v2781, 0.7978846
        %v2790 = vmul.f32 %v2742, 0.5
        %v2791 = vmul.f32 %v2743, 0.5
        %v2792 = vmul.f32 %v2744, 0.5
        %v2793 = vmul.f32 %v2745, 0.5
        %v2794 = vmul.f32 %v2746, 0.5
        %v2795 = vmul.f32 %v2747, 0.5
        %v2796 = vmul.f32 %v2748, 0.5
        %v2797 = vmul.f32 %v2749, 0.5
        %v2798 = vtanh.pop %v2782
        %v2799 = vtanh.pop %v2783
        %v2800 = vtanh.pop %v2784
        %v2801 = vtanh.pop %v2785
        %v2802 = vtanh.pop %v2786
        %v2803 = vtanh.pop %v2787
        %v2804 = vtanh.pop %v2788
        %v2805 = vtanh.pop %v2789
        %v2806 = vadd.f32 %v2798, 1.0
        %v2807 = vadd.f32 %v2799, 1.0
        %v2808 = vadd.f32 %v2800, 1.0
        %v2809 = vadd.f32 %v2801, 1.0
        %v2810 = vadd.f32 %v2802, 1.0
        %v2811 = vadd.f32 %v2803, 1.0
        %v2812 = vadd.f32 %v2804, 1.0
        %v2813 = vadd.f32 %v2805, 1.0
        %v2814 = vmul.f32 %v2790, %v2806
        %v2815 = vmul.f32 %v2791, %v2807
        %v2816 = vmul.f32 %v2792, %v2808
        %v2817 = vmul.f32 %v2793, %v2809
        %v2818 = vmul.f32 %v2794, %v2810
        %v2819 = vmul.f32 %v2795, %v2811
        %v2820 = vmul.f32 %v2796, %v2812
        %v2821 = vmul.f32 %v2797, %v2813
        %v2822 = vadd.f32 %v2814, %v1709
        %v2823 = vadd.f32 %v2815, %v1710
        %v2824 = vadd.f32 %v2816, %v1711
        %v2825 = vadd.f32 %v2817, %v1712
        %v2826 = vadd.f32 %v2818, %v1713
        %v2827 = vadd.f32 %v2819, %v1714
        %v2828 = vadd.f32 %v2820, %v1715
        %v2829 = vadd.f32 %v2821, %v1716
        %v2830 = vpack.c.bf16 %v2824, %v2822
        %v2831 = vpack.c.bf16 %v2825, %v2823
        %v2832 = vpack.c.bf16 %v2828, %v2826
        %v2833 = vpack.c.bf16 %v2829, %v2827
        %2834 = vmatprep.subr.bf16.mxu0 %v2831
        %2835 = vmatpush1.bf16.msra.mxu0 %v2830
        %2836 = vmatprep.subr.bf16.mxu0 %v2833
        %2837 = vmatpush1.bf16.msra.mxu0 %v2832
        %2838 = vmatprep.subr.bf16.mxu0 0
        %2839 = vmatpush1.bf16.msra.mxu0 0
        %2840 = vmatprep.subr.bf16.mxu0 0
        %2841 = vmatpush1.bf16.msra.mxu0 0
        %2842 = vmatprep.subr.bf16.mxu0 0
        %2843 = vmatpush1.bf16.msra.mxu0 0
        %2844 = vmatprep.subr.bf16.mxu0 0
        %2845 = vmatpush1.bf16.msra.mxu0 0
        %2846 = vmatprep.subr.bf16.mxu0 0
        %2847 = vmatpush1.bf16.msra.mxu0 0
        %2848 = vmatprep.subr.bf16.mxu0 0
        %2849 = vmatpush1.bf16.msra.mxu0 0
        %2850 = vmatprep.subr.bf16.mxu0 0
        %2851 = vmatpush1.bf16.msra.mxu0 0
        %2852 = vmatprep.subr.bf16.mxu0 0
        %2853 = vmatpush1.bf16.msra.mxu0 0
        %2854 = vmatprep.subr.bf16.mxu0 0
        %2855 = vmatpush1.bf16.msra.mxu0 0
        %2856 = vmatprep.subr.bf16.mxu0 0
        %2857 = vmatpush1.bf16.msra.mxu0 0
        %2858 = vmatprep.subr.bf16.mxu0 0
        %2859 = vmatpush1.bf16.msra.mxu0 0
        %2860 = vmatprep.subr.bf16.mxu0 0
        %2861 = vmatpush1.bf16.msra.mxu0 0
        %2862 = vmatprep.subr.bf16.mxu0 0
        %2863 = vmatpush1.bf16.msra.mxu0 0
        %2864 = vmatprep.subr.bf16.mxu0 0
        %2865 = vmatpush1.bf16.msra.mxu0 0
        %2866 = vmatprep.mubr.bf16.mxu0 0
        %2867 = vmatmul.mubr.bf16.gmra.mrb[0].mxu0 %v1562
        %v2868 = vpop.f32.mrb[0].mxu0
        %v2869 = vadd.f32 %v1537, %v2868
        %v2870 = vpop.f32.mrb[0].mxu0
        %v2871 = vadd.f32 %v1537, %v2870
        %v2872 = vpop.f32.mrb[0].mxu0
        %v2873 = vadd.f32 %v1541, %v2872
        %v2874 = vpop.f32.mrb[0].mxu0
        %v2875 = vadd.f32 %v1541, %v2874
        %2876 = vmatprep.mubr.bf16.mxu0 0
        %2877 = vmatmul.mubr.bf16.gmra.mrb[0].mxu0 %v1565
        %v2878 = vpop.f32.mrb[0].mxu0
        %v2879 = vadd.f32 %v1545, %v2878
        %v2880 = vpop.f32.mrb[0].mxu0
        %v2881 = vadd.f32 %v1545, %v2880
        %v2882 = vpop.f32.mrb[0].mxu0
        %v2883 = vadd.f32 %v1549, %v2882
        %v2884 = vpop.f32.mrb[0].mxu0
        %v2885 = vadd.f32 %v1549, %v2884
        %2886 = vdwg.mxu0
        %v2887 = vmul.f32 %v2869, 0.044715
        %v2888 = vmul.f32 %v2871, 0.044715
        %v2889 = vmul.f32 %v2873, 0.044715
        %v2890 = vmul.f32 %v2875, 0.044715
        %v2891 = vmul.f32 %v2879, 0.044715
        %v2892 = vmul.f32 %v2881, 0.044715
        %v2893 = vmul.f32 %v2883, 0.044715
        %v2894 = vmul.f32 %v2885, 0.044715
        %v2895 = vmul.f32 %v2887, %v2869
        %v2896 = vmul.f32 %v2888, %v2871
        %v2897 = vmul.f32 %v2889, %v2873
        %v2898 = vmul.f32 %v2890, %v2875
        %v2899 = vmul.f32 %v2891, %v2879
        %v2900 = vmul.f32 %v2892, %v2881
        %v2901 = vmul.f32 %v2893, %v2883
        %v2902 = vmul.f32 %v2894, %v2885
        %v2903 = vmul.f32 %v2895, %v2869
        %v2904 = vmul.f32 %v2896, %v2871
        %v2905 = vmul.f32 %v2897, %v2873
        %v2906 = vmul.f32 %v2898, %v2875
        %v2907 = vmul.f32 %v2899, %v2879
        %v2908 = vmul.f32 %v2900, %v2881
        %v2909 = vmul.f32 %v2901, %v2883
        %v2910 = vmul.f32 %v2902, %v2885
        %v2911 = vadd.f32 %v2869, %v2903
        %v2912 = vadd.f32 %v2871, %v2904
        %v2913 = vadd.f32 %v2873, %v2905
        %v2914 = vadd.f32 %v2875, %v2906
        %v2915 = vadd.f32 %v2879, %v2907
        %v2916 = vadd.f32 %v2881, %v2908
        %v2917 = vadd.f32 %v2883, %v2909
        %v2918 = vadd.f32 %v2885, %v2910
        %v2919 = vmul.f32 %v2911, 0.7978846
        %v2920 = vmul.f32 %v2912, 0.7978846
        %v2921 = vmul.f32 %v2913, 0.7978846
        %v2922 = vmul.f32 %v2914, 0.7978846
        %v2923 = vmul.f32 %v2915, 0.7978846
        %v2924 = vmul.f32 %v2916, 0.7978846
        %v2925 = vmul.f32 %v2917, 0.7978846
        %v2926 = vmul.f32 %v2918, 0.7978846
        %v2927 = vmul.f32 %v2869, 0.5
        %v2928 = vmul.f32 %v2871, 0.5
        %v2929 = vmul.f32 %v2873, 0.5
        %v2930 = vmul.f32 %v2875, 0.5
        %v2931 = vmul.f32 %v2879, 0.5
        %v2932 = vmul.f32 %v2881, 0.5
        %v2933 = vmul.f32 %v2883, 0.5
        %v2934 = vmul.f32 %v2885, 0.5
        %v2935 = vtanh.pop %v2919
        %v2936 = vtanh.pop %v2920
        %v2937 = vtanh.pop %v2921
        %v2938 = vtanh.pop %v2922
        %v2939 = vtanh.pop %v2923
        %v2940 = vtanh.pop %v2924
        %v2941 = vtanh.pop %v2925
        %v2942 = vtanh.pop %v2926
        %v2943 = vadd.f32 %v2935, 1.0
        %v2944 = vadd.f32 %v2936, 1.0
        %v2945 = vadd.f32 %v2937, 1.0
        %v2946 = vadd.f32 %v2938, 1.0
        %v2947 = vadd.f32 %v2939, 1.0
        %v2948 = vadd.f32 %v2940, 1.0
        %v2949 = vadd.f32 %v2941, 1.0
        %v2950 = vadd.f32 %v2942, 1.0
        %v2951 = vmul.f32 %v2927, %v2943
        %v2952 = vmul.f32 %v2928, %v2944
        %v2953 = vmul.f32 %v2929, %v2945
        %v2954 = vmul.f32 %v2930, %v2946
        %v2955 = vmul.f32 %v2931, %v2947
        %v2956 = vmul.f32 %v2932, %v2948
        %v2957 = vmul.f32 %v2933, %v2949
        %v2958 = vmul.f32 %v2934, %v2950
        %v2959 = vadd.f32 %v1709, %v2951
        %v2960 = vadd.f32 %v1710, %v2952
        %v2961 = vadd.f32 %v1711, %v2953
        %v2962 = vadd.f32 %v1712, %v2954
        %v2963 = vadd.f32 %v1713, %v2955
        %v2964 = vadd.f32 %v1714, %v2956
        %v2965 = vadd.f32 %v1715, %v2957
        %v2966 = vadd.f32 %v1716, %v2958
        %s2967 = scalar_lea.vmem %s299, 64 [#allocation8]
        %2968 = vst [vmem:[%s2967] sm:$0xff] %v2959
        %2969 = vst [vmem:[%s2967 + $0x8] sm:$0xff] %v2960
        %2970 = vst [vmem:[%s2967 + $0x10] sm:$0xff] %v2961
        %2971 = vst [vmem:[%s2967 + $0x18] sm:$0xff] %v2962
        %2972 = vst [vmem:[%s2967 + $0x20] sm:$0xff] %v2963
        %2973 = vst [vmem:[%s2967 + $0x28] sm:$0xff] %v2964
        %2974 = vst [vmem:[%s2967 + $0x30] sm:$0xff] %v2965
        %2975 = vst [vmem:[%s2967 + $0x38] sm:$0xff] %v2966
        %s2976 = sand.u32 %s163, 1
        %s2977 = scalar_lea.sflag [#allocation4], %s2976
        %s2978 = sand.u32 %s163, 1
        %s2979 = smul.addr %s2978, 128
        %s2980 = scalar_lea.vmem [#allocation8], %s2979
        // Predicated region
        $region57: #{tpu_custom_call.1} parent=43 // pred_check
          %p2981 = pneg %p173
        $region58: #{tpu_custom_call.1} parent=43 // pred_check_branch
          %2983 = sbr.rel (%p2981) target = $region60
        $region59: #{tpu_custom_call.1} parent=43 // pred_region
          %s2984 = smul.u32 2, %s24
          %s2986 = ssub.s32 2048, 2048
          %2987 = vsyncadd %s2977, %s2986
          %s2988 = smul.addr %s2984, 8
          %s2989 = smul.addr %s2988, 128
          %s2990 = scalar_lea.hbm %s6, %s2989
          %s2991 = sshll.u32 %s2980, 4
          %s2992 = int_to_ptr.vmem [resolvable:$true] %s2991
          %2997 = dma.vmem_to_hbm [thread:$0]  %s2992, 2048, %s2990, %s2977, 256, 256, 16
        $region60: #{tpu_custom_call.1} parent=43 // pred_fallthru
          _
      $region44: #{tpu_custom_call.1} parent=5 // pred_fallthru
        _
      %p2998 = scmp.le.s32.totalorder 2, %s19
      // Predicated region
      $region61: #{tpu_custom_call.1} parent=5 // pred_check
        %p2999 = pneg %p2998
      $region62: #{tpu_custom_call.1} parent=5 // pred_check_branch
        %3001 = sbr.rel (%p2999) target = $region64
      $region63: #{tpu_custom_call.1} parent=5 // pred_region
        %s3002 = ssub.s32 %s19, 2
        // Predicated region
        $region65: #{tpu_custom_call.1} parent=63 // pred_check
          %p3003 = pneg %p179
        $region66: #{tpu_custom_call.1} parent=63 // pred_check_branch
          %3005 = sbr.rel (%p3003) target = $region68
        $region67: #{tpu_custom_call.1} parent=63 // pred_region
          %s3006 = sand.u32 %s164, 1
          %s3007 = scalar_lea.sflag [#allocation4], %s3006
          %s3008 = sand.u32 %s164, 1
          %s3009 = smul.addr %s3008, 128
          %s3010 = scalar_lea.vmem [#allocation8], %s3009
          %3011 = dma.done %s3007, 2048
        $region68: #{tpu_custom_call.1} parent=63 // pred_fallthru
          _
      $region64: #{tpu_custom_call.1} parent=5 // pred_fallthru
        _
    $region6: #{tpu_custom_call.1} parent=1 // loop_footer
      %s23 = sadd.s32 1, %s19
    $region7: #{tpu_custom_call.1} parent=1 // loop_footer_branch
      %18 = sbr.rel target = $region3
    $region8: #{tpu_custom_call.1} parent=1 // loop_exit
      _
    %3012 = vsyncpa [#allocation3], 1
    %s3013 = scalar_lea.sflag [#allocation3], 1
    %3014 = vsyncpa %s3013, 1
    %3015 = vsyncpa [#allocation6], 1
    %3016 = vsyncpa [#allocation4], 1
    %s3017 = scalar_lea.sflag [#allocation4], 1
    %3018 = vsyncpa %s3017, 1

</llo_original>
